<compile_context>
chip_gen: v6e
topology: v6e:2x2x1
jax: 0.10.0
libtpu: 0.0.40
codegen_flags: <defaults>
</compile_context>

<pallas_src>
import jax
import jax.numpy as jnp
from jax import lax
from jax.experimental import pallas as pl
from jax.experimental.pallas import tpu as pltpu


# ----------------------------- shared math helpers ---------------------------

def _layernorm(x, g, b, eps=1e-5):
    mu = jnp.mean(x, axis=-1, keepdims=True)
    xc = x - mu
    var = jnp.mean(xc * xc, axis=-1, keepdims=True)
    return xc * lax.rsqrt(var + eps) * g + b


# ----------------------------- main (depth-streamed) kernel ------------------

def _make_block_kernel(heads, t, e):
    s = e // heads

    def attention(xq, xkv, wq, wk, wv, wu, bu, bias):
        """former-style MHA.  The 1/e^0.25 scale is pre-folded into wq/wk."""
        B, Tq, _ = xq.shape
        Tk = xkv.shape[1]
        xq2 = xq.reshape(B * Tq, e).astype(jnp.bfloat16)
        xkv2 = xkv.reshape(B * Tk, e).astype(jnp.bfloat16)
        # Full-width lane-dense projections: one (B*T, e) @ (e, e) MXU GEMM each.
        q = jnp.dot(xq2, wq, preferred_element_type=jnp.float32)
        k = jnp.dot(xkv2, wk, preferred_element_type=jnp.float32)
        v = jnp.dot(xkv2, wv, preferred_element_type=jnp.float32)
        q = q.astype(jnp.bfloat16).reshape(B, Tq, e)
        k = k.astype(jnp.bfloat16).reshape(B, Tk, e)
        v = v.astype(jnp.bfloat16).reshape(B, Tk, e)
        # Scores for ALL heads stacked along the leading axis -> one softmax.
        sc = jnp.concatenate(
            [jnp.einsum('bqc,bkc->bqk',
                        q[..., h * s:(h + 1) * s], k[..., h * s:(h + 1) * s],
                        preferred_element_type=jnp.float32)
             for h in range(heads)], axis=0)                   # (H*B, Tq, Tk) f32
        if bias is not None:
            sc = sc + bias
        sc = sc - jnp.max(sc, axis=-1, keepdims=True)
        p = jnp.exp(sc)
        p = (p / jnp.sum(p, axis=-1, keepdims=True)).astype(jnp.bfloat16)  # exact
        # Per-head PV; heads re-laid onto the lane axis -> one full-K unify GEMM.
        ho = jnp.concatenate(
            [jnp.einsum('bqk,bkc->bqc',
                        p[h * B:(h + 1) * B], v[..., h * s:(h + 1) * s],
                        preferred_element_type=jnp.float32)
             for h in range(heads)], axis=-1)                  # (B, Tq, e) f32
        out = jnp.dot(ho.reshape(B * Tq, e).astype(jnp.bfloat16), wu,
                      preferred_element_type=jnp.float32) + bu
        return out.reshape(B, Tq, e)

    def kernel(x_ref,
               sa_wq_ref, sa_wk_ref, sa_wv_ref, sa_wu_ref,
               ca_wq_ref, ca_wk_ref, ca_wv_ref, ca_wu_ref,
               vec_ref, ff_w1_ref, ff_b1_ref, ff_w2_ref,
               h_out_ref,
               x_state, bias_state):
        d = pl.program_id(1)

        # Residual stream carried across the depth grid axis in VMEM scratch;
        # the causal additive mask is built once per batch tile.
        @pl.when(d == 0)
        def _():
            x_state[...] = x_ref[...].astype(jnp.float32)
            row = lax.broadcasted_iota(jnp.int32, (t, t), 0)
            col = lax.broadcasted_iota(jnp.int32, (t, t), 1)
            bias_state[...] = jnp.where(col > row, -1e30, 0.0).astype(jnp.float32)

        x = x_state[...]           # (B, t, e) f32 current-layer input (residual)
        z = x_ref[...]             # (B, t, e) bf16; ztokens == token_embedding(x)
        bias = bias_state[...]     # (t, t) causal additive mask (diagonal kept)
        B = x.shape[0]

        def V(i):                  # (1, e) slice of the packed per-layer vectors
            return vec_ref[0, i:i + 1, :]
        # packed order: 0 sa_bu, 1 ca_bu, 2 ln1_g, 3 ln1_b, 4 ln2_g, 5 ln2_b,
        #               6 ln3_g, 7 ln3_b, 8 ff_b2

        # ---- self-attention (causal) ----
        att = attention(x, x, sa_wq_ref[0], sa_wk_ref[0], sa_wv_ref[0],
                        sa_wu_ref[0], V(0), bias)
        x1 = _layernorm(att + x, V(2), V(3))
        # Dropout(p=0.1) -> identity (eval-mode forward).

        # ---- cross-attention: queries = self-attn output, keys/values = z ----
        att2 = attention(att, z, ca_wq_ref[0], ca_wk_ref[0], ca_wv_ref[0],
                         ca_wu_ref[0], V(1), None)
        x2 = _layernorm(att2 + x1, V(4), V(5))

        # ---- feed-forward (ReLU activations kept in bf16) ----
        h1 = jnp.dot(x2.reshape(B * t, e).astype(jnp.bfloat16), ff_w1_ref[0],
                     preferred_element_type=jnp.float32) + ff_b1_ref[0]
        h1 = jnp.maximum(h1, 0.0).astype(jnp.bfloat16)
        ff = jnp.dot(h1, ff_w2_ref[0], preferred_element_type=jnp.float32) + V(8)
        x_new = _layernorm(ff.reshape(B, t, e) + x2, V(6), V(7))

        x_state[...] = x_new

        # Emit only the bf16 hidden state (top projection is a separate kernel).
        @pl.when(d == pl.num_programs(1) - 1)
        def _():
            h_out_ref[...] = x_new.astype(h_out_ref.dtype)

    return kernel


# ----------------------------- top (vocab) projection kernel -----------------

def _make_top_kernel(output_mult):
    def kernel(h_ref, w_ref, b_ref, o_ref):
        B, T, E = h_ref.shape
        y = jnp.dot(h_ref[...].reshape(B * T, E), w_ref[...],
                    preferred_element_type=jnp.float32)
        y = (y + b_ref[...]) * output_mult
        o_ref[...] = y.reshape(o_ref.shape).astype(o_ref.dtype)
    return kernel


# ----------------------------- wrapper ---------------------------------------

def conditional_transformer_forward(params, x_tok, z_tok, heads, output_mult=1.0,
                                    batch_tile=None, vocab_tile=512):
    assert x_tok.shape[0] == z_tok.shape[0], (x_tok.shape, z_tok.shape)
    emb_tab = params['token_embedding']
    pos_tab = params['pos_embedding']
    b, t = x_tok.shape
    num_tokens, e = emb_tab.shape
    depth = params['sa_wq'].shape[0]
    assert e % heads == 0

    if batch_tile is None:
        # >= 2 batch tiles so the "parallel" axis can shard across both v7x cores.
        batch_tile = b // 2 if (b % 2 == 0 and b >= 2) else b
    assert b % batch_tile == 0
    nb = b // batch_tile

    # Host-side glue: embedding gathers.  ztokens = token_embedding(x) in the
    # reference (upstream quirk) -> z stream == initial x stream; only x is sent.
    xtokens = jnp.take(emb_tab, x_tok, axis=0)
    pos = pos_tab[:t][None, :, :]
    x_emb = (xtokens + pos).astype(jnp.bfloat16)              # bf16 HBM read

    # ---- host-side weight prep: bf16 MXU operands, scale folded, vecs packed ---
    scale = 1.0 / (float(e) ** 0.25)
    sa_wq = (params['sa_wq'] * scale).astype(jnp.bfloat16)
    sa_wk = (params['sa_wk'] * scale).astype(jnp.bfloat16)
    sa_wv = params['sa_wv'].astype(jnp.bfloat16)
    sa_wu = params['sa_wu'].astype(jnp.bfloat16)
    ca_wq = (params['ca_wq'] * scale).astype(jnp.bfloat16)
    ca_wk = (params['ca_wk'] * scale).astype(jnp.bfloat16)
    ca_wv = params['ca_wv'].astype(jnp.bfloat16)
    ca_wu = params['ca_wu'].astype(jnp.bfloat16)
    vecs = jnp.stack([params['sa_bu'], params['ca_bu'],
                      params['ln1_g'], params['ln1_b'],
                      params['ln2_g'], params['ln2_b'],
                      params['ln3_g'], params['ln3_b'],
                      params['ff_b2']], axis=1).astype(jnp.float32)   # (depth,9,e)
    ff_w1 = params['ff_w1'].astype(jnp.bfloat16)                      # (depth,e,4e)
    ff_b1 = params['ff_b1'].reshape(depth, 1, -1).astype(jnp.float32)
    ff_w2 = params['ff_w2'].astype(jnp.bfloat16)                      # (depth,4e,e)

    # One layer's weights streamed (double-buffered) per depth step.
    # (On 128 MiB parts (v5e/v6e) all layers could be kept resident instead if
    #  depth*32*e^2 bytes fits; streaming is the generation-portable default.)
    streamed = [sa_wq, sa_wk, sa_wv, sa_wu, ca_wq, ca_wk, ca_wv, ca_wu,
                vecs, ff_w1, ff_b1, ff_w2]
    in_specs = [pl.BlockSpec((batch_tile, t, e), lambda i, d: (i, 0, 0))]
    in_specs += [pl.BlockSpec((1,) + w.shape[1:], lambda i, d: (d, 0, 0))
                 for w in streamed]

    hidden = pl.pallas_call(
        _make_block_kernel(heads, t, e),
        out_shape=jax.ShapeDtypeStruct((b, t, e), jnp.bfloat16),
        grid=(nb, depth),
        in_specs=in_specs,
        out_specs=pl.BlockSpec((batch_tile, t, e), lambda i, d: (i, 0, 0)),
        scratch_shapes=[pltpu.VMEM((batch_tile, t, e), jnp.float32),  # residual
                        pltpu.VMEM((t, t), jnp.float32)],             # causal bias
        compiler_params=pltpu.CompilerParams(
            dimension_semantics=("parallel", "arbitrary"),
            vmem_limit_bytes=64 * 1024 * 1024),   # <= physical on v5e/v6e/v7x
    )(x_emb, *streamed)

    # ---- vocab projection: separate pallas_call tiled over (batch, vocab) ----
    v_tile = min(int(vocab_tile), ((num_tokens + 127) // 128) * 128)
    v_tile = ((v_tile + 127) // 128) * 128
    vp = ((num_tokens + v_tile - 1) // v_tile) * v_tile
    top_w = jnp.zeros((e, vp), jnp.bfloat16).at[:, :num_tokens].set(
        params['top_w'].astype(jnp.bfloat16))
    top_b = jnp.zeros((1, vp), jnp.float32).at[:, :num_tokens].set(
        params['top_b'].reshape(1, num_tokens).astype(jnp.float32))

    logits = pl.pallas_call(
        _make_top_kernel(float(output_mult)),
        out_shape=jax.ShapeDtypeStruct((b, t, vp), jnp.float32),
        grid=(nb, vp // v_tile),
        in_specs=[pl.BlockSpec((batch_tile, t, e), lambda i, j: (i, 0, 0)),
                  pl.BlockSpec((e, v_tile), lambda i, j: (0, j)),
                  pl.BlockSpec((1, v_tile), lambda i, j: (0, j))],
        out_specs=pl.BlockSpec((batch_tile, t, v_tile), lambda i, j: (i, 0, j)),
        compiler_params=pltpu.CompilerParams(
            dimension_semantics=("parallel", "parallel")),
    )(hidden, top_w, top_b)

    return logits[..., :num_tokens]


# ----------------------------- pure-JAX reference (f32 sanity check) ---------

def _mha_ref(q_in, kv_in, wq, wk, wv, wu, bu, heads, causal):
    t_, e_ = q_in.shape
    tk = kv_in.shape[0]
    s_ = e_ // heads
    scale = 1.0 / (float(e_) ** 0.25)
    q = (q_in @ wq) * scale
    k = (kv_in @ wk) * scale
    v = kv_in @ wv
    outs = []
    for h in range(heads):
        qh, kh, vh = (q[:, h * s_:(h + 1) * s_], k[:, h * s_:(h + 1) * s_],
                      v[:, h * s_:(h + 1) * s_])
        dot = qh @ kh.T
        if causal:
            row = lax.broadcasted_iota(jnp.int32, (t_, tk), 0)
            col = lax.broadcasted_iota(jnp.int32, (t_, tk), 1)
            dot = jnp.where(col > row, -1e30, dot)
        dot = dot - jnp.max(dot, axis=-1, keepdims=True)
        p = jnp.exp(dot)
        p = p / jnp.sum(p, axis=-1, keepdims=True)
        outs.append(p @ vh)
    return jnp.concatenate(outs, axis=-1) @ wu + bu


def reference_forward(params, x_tok, z_tok, heads, output_mult=1.0):
    emb_tab, pos_tab = params['token_embedding'], params['pos_embedding']
    b, t = x_tok.shape
    xtokens = jnp.take(emb_tab, x_tok, axis=0)
    pos = pos_tab[:t][None, :, :]
    x_all = (xtokens + pos).astype(jnp.float32)
    z_all = (xtokens + pos).astype(jnp.float32)   # reproduces upstream quirk
    depth = params['sa_wq'].shape[0]

    def single(xb, zb):
        x, z = xb, zb
        for d in range(depth):
            att = _mha_ref(x, x, params['sa_wq'][d], params['sa_wk'][d],
                           params['sa_wv'][d], params['sa_wu'][d],
                           params['sa_bu'][d:d + 1], heads, True)
            x1 = _layernorm(att + x, params['ln1_g'][d:d + 1], params['ln1_b'][d:d + 1])
            att2 = _mha_ref(att, z, params['ca_wq'][d], params['ca_wk'][d],
                            params['ca_wv'][d], params['ca_wu'][d],
                            params['ca_bu'][d:d + 1], heads, False)
            x2 = _layernorm(att2 + x1, params['ln2_g'][d:d + 1], params['ln2_b'][d:d + 1])
            h1 = jnp.maximum(x2 @ params['ff_w1'][d] + params['ff_b1'][d:d + 1], 0.0)
            ff = h1 @ params['ff_w2'][d] + params['ff_b2'][d:d + 1]
            x = _layernorm(ff + x2, params['ln3_g'][d:d + 1], params['ln3_b'][d:d + 1])
        return (x @ params['top_w'] + params['top_b']) * output_mult

    return jax.vmap(single)(x_all, z_all)


# ----------------------------- parameter init --------------------------------

def init_params(key, emb, heads, depth, seq_length, num_tokens, ff_mult=4):
    keys = iter(jax.random.split(key, 32))

    def nrm(shape, std):
        return jax.random.normal(next(keys), shape, dtype=jnp.float32) * std

    std_e = (1.0 / emb) ** 0.5
    p = {
        'token_embedding': nrm((num_tokens, emb), 1.0),
        'pos_embedding': nrm((seq_length, emb), 1.0),
    }
    for name in ['sa_wq', 'sa_wk', 'sa_wv', 'sa_wu', 'ca_wq', 'ca_wk', 'ca_wv', 'ca_wu']:
        p[name] = nrm((depth, emb, emb), std_e)            # (in, out) layout
    p['sa_bu'] = jnp.zeros((depth, emb), jnp.float32)
    p['ca_bu'] = jnp.zeros((depth, emb), jnp.float32)
    for name in ['ln1_g', 'ln2_g', 'ln3_g']:
        p[name] = jnp.ones((depth, emb), jnp.float32)
    for name in ['ln1_b', 'ln2_b', 'ln3_b']:
        p[name] = jnp.zeros((depth, emb), jnp.float32)
    p['ff_w1'] = nrm((depth, emb, ff_mult * emb), std_e)
    p['ff_b1'] = jnp.zeros((depth, ff_mult * emb), jnp.float32)
    p['ff_w2'] = nrm((depth, ff_mult * emb, emb), (1.0 / (ff_mult * emb)) ** 0.5)
    p['ff_b2'] = jnp.zeros((depth, emb), jnp.float32)
    p['top_w'] = nrm((emb, num_tokens), 1.0 / emb)
    p['top_b'] = jnp.zeros((1, num_tokens), jnp.float32)
    return p


# ----------------------------- main -------------------------------------------

if __name__ == "__main__":
    emb, heads, depth = 32, 4, 2
    seq_length, num_tokens = 8, 50
    batch = 2

    key = jax.random.PRNGKey(0)
    kp, kx, kz = jax.random.split(key, 3)
    params = init_params(kp, emb, heads, depth, seq_length, num_tokens)

    x_tok = jax.random.randint(kx, (batch, seq_length), 0, num_tokens, dtype=jnp.int32)
    z_tok = jax.random.randint(kz, (batch, seq_length), 0, num_tokens, dtype=jnp.int32)

    out = conditional_transformer_forward(params, x_tok, z_tok, heads, output_mult=1.0)
    out = jax.block_until_ready(out)
    assert out.shape == (batch, seq_length, num_tokens), out.shape

    ref = jax.block_until_ready(reference_forward(params, x_tok, z_tok, heads, 1.0))
    # Kernel runs its matmuls on the MXU in bf16 (f32 accumulation); softmax
    # normalization is exact division, so only bf16 rounding remains.
    err = float(jnp.max(jnp.abs(out - ref)))
    assert jnp.allclose(out, ref, rtol=3e-2, atol=3e-2), err
    print("KERNEL_OK")
</pallas_src>

<mosaic_0001>
module attributes {stable_mosaic.version = 11 : i64} {
  func.func @kernel(%arg0: i32, %arg1: i32, %arg2: memref<1x8x32xbf16, #tpu.memory_space<vmem>>, %arg3: memref<1x32x32xbf16, #tpu.memory_space<vmem>>, %arg4: memref<1x32x32xbf16, #tpu.memory_space<vmem>>, %arg5: memref<1x32x32xbf16, #tpu.memory_space<vmem>>, %arg6: memref<1x32x32xbf16, #tpu.memory_space<vmem>>, %arg7: memref<1x32x32xbf16, #tpu.memory_space<vmem>>, %arg8: memref<1x32x32xbf16, #tpu.memory_space<vmem>>, %arg9: memref<1x32x32xbf16, #tpu.memory_space<vmem>>, %arg10: memref<1x32x32xbf16, #tpu.memory_space<vmem>>, %arg11: memref<1x9x32xf32, #tpu.memory_space<vmem>>, %arg12: memref<1x32x128xbf16, #tpu.memory_space<vmem>>, %arg13: memref<1x1x128xf32, #tpu.memory_space<vmem>>, %arg14: memref<1x128x32xbf16, #tpu.memory_space<vmem>>, %arg15: memref<1x8x32xbf16, #tpu.memory_space<vmem>>, %arg16: memref<1x8x32xf32, #tpu.memory_space<vmem>>, %arg17: memref<8x8xf32, #tpu.memory_space<vmem>>) attributes {dimension_semantics = [#tpu.dimension_semantics<parallel>, #tpu.dimension_semantics<arbitrary>], iteration_bounds = array<i64: 2, 2>, scalar_prefetch = 0 : i64, scratch_operands = 2 : i64, tpu.core_type = #tpu.core_type<tc>, window_params = [{transform_indices = @transform_0, window_bounds = array<i64: 1, 8, 32>}, {transform_indices = @transform_1, window_bounds = array<i64: 1, 32, 32>}, {transform_indices = @transform_2, window_bounds = array<i64: 1, 32, 32>}, {transform_indices = @transform_3, window_bounds = array<i64: 1, 32, 32>}, {transform_indices = @transform_4, window_bounds = array<i64: 1, 32, 32>}, {transform_indices = @transform_5, window_bounds = array<i64: 1, 32, 32>}, {transform_indices = @transform_6, window_bounds = array<i64: 1, 32, 32>}, {transform_indices = @transform_7, window_bounds = array<i64: 1, 32, 32>}, {transform_indices = @transform_8, window_bounds = array<i64: 1, 32, 32>}, {transform_indices = @transform_9, window_bounds = array<i64: 1, 9, 32>}, {transform_indices = @transform_10, window_bounds = array<i64: 1, 32, 128>}, {transform_indices = @transform_11, window_bounds = array<i64: 1, 1, 128>}, {transform_indices = @transform_12, window_bounds = array<i64: 1, 128, 32>}, {transform_indices = @transform_13, window_bounds = array<i64: 1, 8, 32>}]} {
    %c0_i32 = arith.constant 0 : i32
    %0 = arith.cmpi eq, %arg1, %c0_i32 : i32
    %1 = arith.extui %0 : i1 to i32
    %c0_i32_0 = arith.constant 0 : i32
    %2 = arith.cmpi ne, %1, %c0_i32_0 : i32
    scf.if %2 {
      %c0_109 = arith.constant 0 : index
      %c0_110 = arith.constant 0 : index
      %c0_111 = arith.constant 0 : index
      %243 = vector.load %arg2[%c0_109, %c0_110, %c0_111] : memref<1x8x32xbf16, #tpu.memory_space<vmem>>, vector<1x8x32xbf16>
      %244 = arith.extf %243 : vector<1x8x32xbf16> to vector<1x8x32xf32>
      %c0_112 = arith.constant 0 : index
      %c0_113 = arith.constant 0 : index
      %c0_114 = arith.constant 0 : index
      %245 = vector.load %arg16[%c0_112, %c0_113, %c0_114] : memref<1x8x32xf32, #tpu.memory_space<vmem>>, vector<1x8x32xf32>
      tpu.vector_store %arg16[%c0_112, %c0_113, %c0_114], %244 {strides = array<i32>} : memref<1x8x32xf32, #tpu.memory_space<vmem>>, vector<1x8x32xf32>,
      %246 = tpu.iota {dimensions = array<i32: 0>} : vector<8x8xi32>
      %247 = tpu.iota {dimensions = array<i32: 1>} : vector<8x8xi32>
      %248 = arith.cmpi sgt, %247, %246 : vector<8x8xi32>
      %cst_115 = arith.constant -1.000000e+30 : f32
      %cst_116 = arith.constant 0.000000e+00 : f32
      %249 = vector.broadcast %cst_115 : f32 to vector<8x8xf32>
      %250 = vector.broadcast %cst_116 : f32 to vector<8x8xf32>
      %251 = arith.select %248, %249, %250 : vector<8x8xi1>, vector<8x8xf32>
      %c0_117 = arith.constant 0 : index
      %c0_118 = arith.constant 0 : index
      %252 = vector.load %arg17[%c0_117, %c0_118] : memref<8x8xf32, #tpu.memory_space<vmem>>, vector<8x8xf32>
      tpu.vector_store %arg17[%c0_117, %c0_118], %251 {strides = array<i32>} : memref<8x8xf32, #tpu.memory_space<vmem>>, vector<8x8xf32>,
    } else {
    }
    %c0 = arith.constant 0 : index
    %c0_1 = arith.constant 0 : index
    %c0_2 = arith.constant 0 : index
    %3 = vector.load %arg16[%c0, %c0_1, %c0_2] : memref<1x8x32xf32, #tpu.memory_space<vmem>>, vector<1x8x32xf32>
    %c0_3 = arith.constant 0 : index
    %c0_4 = arith.constant 0 : index
    %c0_5 = arith.constant 0 : index
    %4 = vector.load %arg2[%c0_3, %c0_4, %c0_5] : memref<1x8x32xbf16, #tpu.memory_space<vmem>>, vector<1x8x32xbf16>
    %c0_6 = arith.constant 0 : index
    %c0_7 = arith.constant 0 : index
    %5 = vector.load %arg17[%c0_6, %c0_7] : memref<8x8xf32, #tpu.memory_space<vmem>>, vector<8x8xf32>
    %c0_8 = arith.constant 0 : index
    %c0_9 = arith.constant 0 : index
    %c0_10 = arith.constant 0 : index
    %6 = vector.load %arg3[%c0_8, %c0_9, %c0_10] : memref<1x32x32xbf16, #tpu.memory_space<vmem>>, vector<1x32x32xbf16>
    %7 = vector.shape_cast %6 : vector<1x32x32xbf16> to vector<32x32xbf16>
    %c0_11 = arith.constant 0 : index
    %c0_12 = arith.constant 0 : index
    %c0_13 = arith.constant 0 : index
    %8 = vector.load %arg4[%c0_11, %c0_12, %c0_13] : memref<1x32x32xbf16, #tpu.memory_space<vmem>>, vector<1x32x32xbf16>
    %9 = vector.shape_cast %8 : vector<1x32x32xbf16> to vector<32x32xbf16>
    %c0_14 = arith.constant 0 : index
    %c0_15 = arith.constant 0 : index
    %c0_16 = arith.constant 0 : index
    %10 = vector.load %arg5[%c0_14, %c0_15, %c0_16] : memref<1x32x32xbf16, #tpu.memory_space<vmem>>, vector<1x32x32xbf16>
    %11 = vector.shape_cast %10 : vector<1x32x32xbf16> to vector<32x32xbf16>
    %c0_17 = arith.constant 0 : index
    %c0_18 = arith.constant 0 : index
    %c0_19 = arith.constant 0 : index
    %12 = vector.load %arg6[%c0_17, %c0_18, %c0_19] : memref<1x32x32xbf16, #tpu.memory_space<vmem>>, vector<1x32x32xbf16>
    %13 = vector.shape_cast %12 : vector<1x32x32xbf16> to vector<32x32xbf16>
    %c0_20 = arith.constant 0 : index
    %c0_21 = arith.constant 0 : index
    %c0_22 = arith.constant 0 : index
    %14 = vector.load %arg11[%c0_20, %c0_21, %c0_22] : memref<1x9x32xf32, #tpu.memory_space<vmem>>, vector<1x1x32xf32>
    %15 = vector.shape_cast %14 : vector<1x1x32xf32> to vector<1x32xf32>
    %16 = vector.shape_cast %3 : vector<1x8x32xf32> to vector<8x32xf32>
    %17 = arith.truncf %16 : vector<8x32xf32> to vector<8x32xbf16>
    %18 = vector.shape_cast %3 : vector<1x8x32xf32> to vector<8x32xf32>
    %19 = arith.truncf %18 : vector<8x32xf32> to vector<8x32xbf16>
    %cst = arith.constant dense<0.000000e+00> : vector<8x32xf32>
    %20 = tpu.matmul %17, %7, %cst {dimension_numbers = #tpu.dot_dimension_numbers<[1], [0], [0], [1], [0, 0, 1, 1], [], []>} : vector<8x32xbf16>, vector<32x32xbf16>, vector<8x32xf32> -> vector<8x32xf32>
    %cst_23 = arith.constant dense<0.000000e+00> : vector<8x32xf32>
    %21 = tpu.matmul %19, %9, %cst_23 {dimension_numbers = #tpu.dot_dimension_numbers<[1], [0], [0], [1], [0, 0, 1, 1], [], []>} : vector<8x32xbf16>, vector<32x32xbf16>, vector<8x32xf32> -> vector<8x32xf32>
    %cst_24 = arith.constant dense<0.000000e+00> : vector<8x32xf32>
    %22 = tpu.matmul %19, %11, %cst_24 {dimension_numbers = #tpu.dot_dimension_numbers<[1], [0], [0], [1], [0, 0, 1, 1], [], []>} : vector<8x32xbf16>, vector<32x32xbf16>, vector<8x32xf32> -> vector<8x32xf32>
    %23 = arith.truncf %20 : vector<8x32xf32> to vector<8x32xbf16>
    %24 = vector.shape_cast %23 : vector<8x32xbf16> to vector<1x8x32xbf16>
    %25 = arith.truncf %21 : vector<8x32xf32> to vector<8x32xbf16>
    %26 = vector.shape_cast %25 : vector<8x32xbf16> to vector<1x8x32xbf16>
    %27 = arith.truncf %22 : vector<8x32xf32> to vector<8x32xbf16>
    %28 = vector.shape_cast %27 : vector<8x32xbf16> to vector<1x8x32xbf16>
    %29 = vector.extract_strided_slice %24 {offsets = [0, 0, 0], sizes = [1, 8, 8], strides = [1, 1, 1]} : vector<1x8x32xbf16> to vector<1x8x8xbf16>
    %30 = vector.extract_strided_slice %26 {offsets = [0, 0, 0], sizes = [1, 8, 8], strides = [1, 1, 1]} : vector<1x8x32xbf16> to vector<1x8x8xbf16>
    "tpu.trace_start"() <{level = 10 : i32, message = "bqc,bkc->bqk"}> : () -> ()
    %cst_25 = arith.constant dense<0.000000e+00> : vector<1x8x8xf32>
    %31 = tpu.matmul %29, %30, %cst_25 {dimension_numbers = #tpu.dot_dimension_numbers<[2], [2], [1], [1], [0, 0, 0, 1, 1, 1], [0], [0]>} : vector<1x8x8xbf16>, vector<1x8x8xbf16>, vector<1x8x8xf32> -> vector<1x8x8xf32>
    "tpu.trace_stop"() : () -> ()
    %32 = vector.extract_strided_slice %24 {offsets = [0, 0, 8], sizes = [1, 8, 8], strides = [1, 1, 1]} : vector<1x8x32xbf16> to vector<1x8x8xbf16>
    %33 = vector.extract_strided_slice %26 {offsets = [0, 0, 8], sizes = [1, 8, 8], strides = [1, 1, 1]} : vector<1x8x32xbf16> to vector<1x8x8xbf16>
    "tpu.trace_start"() <{level = 10 : i32, message = "bqc,bkc->bqk"}> : () -> ()
    %cst_26 = arith.constant dense<0.000000e+00> : vector<1x8x8xf32>
    %34 = tpu.matmul %32, %33, %cst_26 {dimension_numbers = #tpu.dot_dimension_numbers<[2], [2], [1], [1], [0, 0, 0, 1, 1, 1], [0], [0]>} : vector<1x8x8xbf16>, vector<1x8x8xbf16>, vector<1x8x8xf32> -> vector<1x8x8xf32>
    "tpu.trace_stop"() : () -> ()
    %35 = vector.extract_strided_slice %24 {offsets = [0, 0, 16], sizes = [1, 8, 8], strides = [1, 1, 1]} : vector<1x8x32xbf16> to vector<1x8x8xbf16>
    %36 = vector.extract_strided_slice %26 {offsets = [0, 0, 16], sizes = [1, 8, 8], strides = [1, 1, 1]} : vector<1x8x32xbf16> to vector<1x8x8xbf16>
    "tpu.trace_start"() <{level = 10 : i32, message = "bqc,bkc->bqk"}> : () -> ()
    %cst_27 = arith.constant dense<0.000000e+00> : vector<1x8x8xf32>
    %37 = tpu.matmul %35, %36, %cst_27 {dimension_numbers = #tpu.dot_dimension_numbers<[2], [2], [1], [1], [0, 0, 0, 1, 1, 1], [0], [0]>} : vector<1x8x8xbf16>, vector<1x8x8xbf16>, vector<1x8x8xf32> -> vector<1x8x8xf32>
    "tpu.trace_stop"() : () -> ()
    %38 = vector.extract_strided_slice %24 {offsets = [0, 0, 24], sizes = [1, 8, 8], strides = [1, 1, 1]} : vector<1x8x32xbf16> to vector<1x8x8xbf16>
    %39 = vector.extract_strided_slice %26 {offsets = [0, 0, 24], sizes = [1, 8, 8], strides = [1, 1, 1]} : vector<1x8x32xbf16> to vector<1x8x8xbf16>
    "tpu.trace_start"() <{level = 10 : i32, message = "bqc,bkc->bqk"}> : () -> ()
    %cst_28 = arith.constant dense<0.000000e+00> : vector<1x8x8xf32>
    %40 = tpu.matmul %38, %39, %cst_28 {dimension_numbers = #tpu.dot_dimension_numbers<[2], [2], [1], [1], [0, 0, 0, 1, 1, 1], [0], [0]>} : vector<1x8x8xbf16>, vector<1x8x8xbf16>, vector<1x8x8xf32> -> vector<1x8x8xf32>
    "tpu.trace_stop"() : () -> ()
    %41 = tpu.concatenate %31, %34, %37, %40 in 0 : vector<1x8x8xf32>, vector<1x8x8xf32>, vector<1x8x8xf32>, vector<1x8x8xf32> -> vector<4x8x8xf32>
    %42 = vector.shape_cast %5 : vector<8x8xf32> to vector<1x8x8xf32>
    %43 = vector.broadcast %42 : vector<1x8x8xf32> to vector<4x8x8xf32>
    %44 = arith.addf %41, %43 : vector<4x8x8xf32>
    %cst_29 = arith.constant dense<0xFF800000> : vector<4x8xf32>
    %45 = vector.multi_reduction <maximumf>, %44, %cst_29 [2] : vector<4x8x8xf32> to vector<4x8xf32>
    %46 = vector.shape_cast %45 : vector<4x8xf32> to vector<4x8x1xf32>
    %47 = vector.broadcast %46 : vector<4x8x1xf32> to vector<4x8x8xf32>
    %48 = arith.subf %44, %47 : vector<4x8x8xf32>
    %49 = math.exp %48 : vector<4x8x8xf32>
    %cst_30 = arith.constant dense<0.000000e+00> : vector<4x8xf32>
    %50 = vector.multi_reduction <add>, %49, %cst_30 [2] : vector<4x8x8xf32> to vector<4x8xf32>
    %51 = vector.shape_cast %50 : vector<4x8xf32> to vector<4x8x1xf32>
    %52 = vector.broadcast %51 : vector<4x8x1xf32> to vector<4x8x8xf32>
    %53 = arith.divf %49, %52 : vector<4x8x8xf32>
    %54 = arith.truncf %53 : vector<4x8x8xf32> to vector<4x8x8xbf16>
    %55 = vector.extract_strided_slice %54 {offsets = [0, 0, 0], sizes = [1, 8, 8], strides = [1, 1, 1]} : vector<4x8x8xbf16> to vector<1x8x8xbf16>
    %56 = vector.extract_strided_slice %28 {offsets = [0, 0, 0], sizes = [1, 8, 8], strides = [1, 1, 1]} : vector<1x8x32xbf16> to vector<1x8x8xbf16>
    "tpu.trace_start"() <{level = 10 : i32, message = "bqk,bkc->bqc"}> : () -> ()
    %cst_31 = arith.constant dense<0.000000e+00> : vector<1x8x8xf32>
    %57 = tpu.matmul %55, %56, %cst_31 {dimension_numbers = #tpu.dot_dimension_numbers<[2], [1], [1], [2], [0, 0, 0, 1, 1, 2], [0], [0]>} : vector<1x8x8xbf16>, vector<1x8x8xbf16>, vector<1x8x8xf32> -> vector<1x8x8xf32>
    "tpu.trace_stop"() : () -> ()
    %58 = vector.extract_strided_slice %54 {offsets = [1, 0, 0], sizes = [1, 8, 8], strides = [1, 1, 1]} : vector<4x8x8xbf16> to vector<1x8x8xbf16>
    %59 = vector.extract_strided_slice %28 {offsets = [0, 0, 8], sizes = [1, 8, 8], strides = [1, 1, 1]} : vector<1x8x32xbf16> to vector<1x8x8xbf16>
    "tpu.trace_start"() <{level = 10 : i32, message = "bqk,bkc->bqc"}> : () -> ()
    %cst_32 = arith.constant dense<0.000000e+00> : vector<1x8x8xf32>
    %60 = tpu.matmul %58, %59, %cst_32 {dimension_numbers = #tpu.dot_dimension_numbers<[2], [1], [1], [2], [0, 0, 0, 1, 1, 2], [0], [0]>} : vector<1x8x8xbf16>, vector<1x8x8xbf16>, vector<1x8x8xf32> -> vector<1x8x8xf32>
    "tpu.trace_stop"() : () -> ()
    %61 = vector.extract_strided_slice %54 {offsets = [2, 0, 0], sizes = [1, 8, 8], strides = [1, 1, 1]} : vector<4x8x8xbf16> to vector<1x8x8xbf16>
    %62 = vector.extract_strided_slice %28 {offsets = [0, 0, 16], sizes = [1, 8, 8], strides = [1, 1, 1]} : vector<1x8x32xbf16> to vector<1x8x8xbf16>
    "tpu.trace_start"() <{level = 10 : i32, message = "bqk,bkc->bqc"}> : () -> ()
    %cst_33 = arith.constant dense<0.000000e+00> : vector<1x8x8xf32>
    %63 = tpu.matmul %61, %62, %cst_33 {dimension_numbers = #tpu.dot_dimension_numbers<[2], [1], [1], [2], [0, 0, 0, 1, 1, 2], [0], [0]>} : vector<1x8x8xbf16>, vector<1x8x8xbf16>, vector<1x8x8xf32> -> vector<1x8x8xf32>
    "tpu.trace_stop"() : () -> ()
    %64 = vector.extract_strided_slice %54 {offsets = [3, 0, 0], sizes = [1, 8, 8], strides = [1, 1, 1]} : vector<4x8x8xbf16> to vector<1x8x8xbf16>
    %65 = vector.extract_strided_slice %28 {offsets = [0, 0, 24], sizes = [1, 8, 8], strides = [1, 1, 1]} : vector<1x8x32xbf16> to vector<1x8x8xbf16>
    "tpu.trace_start"() <{level = 10 : i32, message = "bqk,bkc->bqc"}> : () -> ()
    %cst_34 = arith.constant dense<0.000000e+00> : vector<1x8x8xf32>
    %66 = tpu.matmul %64, %65, %cst_34 {dimension_numbers = #tpu.dot_dimension_numbers<[2], [1], [1], [2], [0, 0, 0, 1, 1, 2], [0], [0]>} : vector<1x8x8xbf16>, vector<1x8x8xbf16>, vector<1x8x8xf32> -> vector<1x8x8xf32>
    "tpu.trace_stop"() : () -> ()
    %67 = tpu.concatenate %57, %60, %63, %66 in 2 : vector<1x8x8xf32>, vector<1x8x8xf32>, vector<1x8x8xf32>, vector<1x8x8xf32> -> vector<1x8x32xf32>
    %68 = vector.shape_cast %67 : vector<1x8x32xf32> to vector<8x32xf32>
    %69 = arith.truncf %68 : vector<8x32xf32> to vector<8x32xbf16>
    %cst_35 = arith.constant dense<0.000000e+00> : vector<8x32xf32>
    %70 = tpu.matmul %69, %13, %cst_35 {dimension_numbers = #tpu.dot_dimension_numbers<[1], [0], [0], [1], [0, 0, 1, 1], [], []>} : vector<8x32xbf16>, vector<32x32xbf16>, vector<8x32xf32> -> vector<8x32xf32>
    %71 = vector.broadcast %15 : vector<1x32xf32> to vector<8x32xf32>
    %72 = arith.addf %70, %71 : vector<8x32xf32>
    %73 = vector.shape_cast %72 : vector<8x32xf32> to vector<1x8x32xf32>
    %74 = arith.addf %73, %3 : vector<1x8x32xf32>
    %c0_36 = arith.constant 0 : index
    %c2 = arith.constant 2 : index
    %c0_37 = arith.constant 0 : index
    %75 = vector.load %arg11[%c0_36, %c2, %c0_37] : memref<1x9x32xf32, #tpu.memory_space<vmem>>, vector<1x1x32xf32>
    %76 = vector.shape_cast %75 : vector<1x1x32xf32> to vector<1x32xf32>
    %c0_38 = arith.constant 0 : index
    %c3 = arith.constant 3 : index
    %c0_39 = arith.constant 0 : index
    %77 = vector.load %arg11[%c0_38, %c3, %c0_39] : memref<1x9x32xf32, #tpu.memory_space<vmem>>, vector<1x1x32xf32>
    %78 = vector.shape_cast %77 : vector<1x1x32xf32> to vector<1x32xf32>
    %cst_40 = arith.constant dense<0.000000e+00> : vector<1x8xf32>
    %79 = vector.multi_reduction <add>, %74, %cst_40 [2] : vector<1x8x32xf32> to vector<1x8xf32>
    %80 = vector.shape_cast %79 : vector<1x8xf32> to vector<1x8x1xf32>
    %cst_41 = arith.constant 3.200000e+01 : f32
    %81 = vector.broadcast %cst_41 : f32 to vector<1x8x1xf32>
    %82 = arith.divf %80, %81 : vector<1x8x1xf32>
    %83 = vector.broadcast %82 : vector<1x8x1xf32> to vector<1x8x32xf32>
    %84 = arith.subf %74, %83 : vector<1x8x32xf32>
    %85 = arith.mulf %84, %84 : vector<1x8x32xf32>
    %cst_42 = arith.constant dense<0.000000e+00> : vector<1x8xf32>
    %86 = vector.multi_reduction <add>, %85, %cst_42 [2] : vector<1x8x32xf32> to vector<1x8xf32>
    %87 = vector.shape_cast %86 : vector<1x8xf32> to vector<1x8x1xf32>
    %cst_43 = arith.constant 3.200000e+01 : f32
    %88 = vector.broadcast %cst_43 : f32 to vector<1x8x1xf32>
    %89 = arith.divf %87, %88 : vector<1x8x1xf32>
    %cst_44 = arith.constant 9.99999974E-6 : f32
    %90 = vector.broadcast %cst_44 : f32 to vector<1x8x1xf32>
    %91 = arith.addf %89, %90 : vector<1x8x1xf32>
    %92 = math.rsqrt %91 : vector<1x8x1xf32>
    %93 = vector.broadcast %92 : vector<1x8x1xf32> to vector<1x8x32xf32>
    %94 = arith.mulf %84, %93 : vector<1x8x32xf32>
    %95 = vector.shape_cast %76 : vector<1x32xf32> to vector<1x1x32xf32>
    %96 = vector.broadcast %95 : vector<1x1x32xf32> to vector<1x8x32xf32>
    %97 = arith.mulf %94, %96 : vector<1x8x32xf32>
    %98 = vector.shape_cast %78 : vector<1x32xf32> to vector<1x1x32xf32>
    %99 = vector.broadcast %98 : vector<1x1x32xf32> to vector<1x8x32xf32>
    %100 = arith.addf %97, %99 : vector<1x8x32xf32>
    %c0_45 = arith.constant 0 : index
    %c0_46 = arith.constant 0 : index
    %c0_47 = arith.constant 0 : index
    %101 = vector.load %arg7[%c0_45, %c0_46, %c0_47] : memref<1x32x32xbf16, #tpu.memory_space<vmem>>, vector<1x32x32xbf16>
    %102 = vector.shape_cast %101 : vector<1x32x32xbf16> to vector<32x32xbf16>
    %c0_48 = arith.constant 0 : index
    %c0_49 = arith.constant 0 : index
    %c0_50 = arith.constant 0 : index
    %103 = vector.load %arg8[%c0_48, %c0_49, %c0_50] : memref<1x32x32xbf16, #tpu.memory_space<vmem>>, vector<1x32x32xbf16>
    %104 = vector.shape_cast %103 : vector<1x32x32xbf16> to vector<32x32xbf16>
    %c0_51 = arith.constant 0 : index
    %c0_52 = arith.constant 0 : index
    %c0_53 = arith.constant 0 : index
    %105 = vector.load %arg9[%c0_51, %c0_52, %c0_53] : memref<1x32x32xbf16, #tpu.memory_space<vmem>>, vector<1x32x32xbf16>
    %106 = vector.shape_cast %105 : vector<1x32x32xbf16> to vector<32x32xbf16>
    %c0_54 = arith.constant 0 : index
    %c0_55 = arith.constant 0 : index
    %c0_56 = arith.constant 0 : index
    %107 = vector.load %arg10[%c0_54, %c0_55, %c0_56] : memref<1x32x32xbf16, #tpu.memory_space<vmem>>, vector<1x32x32xbf16>
    %108 = vector.shape_cast %107 : vector<1x32x32xbf16> to vector<32x32xbf16>
    %c0_57 = arith.constant 0 : index
    %c1 = arith.constant 1 : index
    %c0_58 = arith.constant 0 : index
    %109 = vector.load %arg11[%c0_57, %c1, %c0_58] : memref<1x9x32xf32, #tpu.memory_space<vmem>>, vector<1x1x32xf32>
    %110 = vector.shape_cast %109 : vector<1x1x32xf32> to vector<1x32xf32>
    %111 = vector.shape_cast %73 : vector<1x8x32xf32> to vector<8x32xf32>
    %112 = arith.truncf %111 : vector<8x32xf32> to vector<8x32xbf16>
    %113 = vector.shape_cast %4 : vector<1x8x32xbf16> to vector<8x32xbf16>
    %cst_59 = arith.constant dense<0.000000e+00> : vector<8x32xf32>
    %114 = tpu.matmul %112, %102, %cst_59 {dimension_numbers = #tpu.dot_dimension_numbers<[1], [0], [0], [1], [0, 0, 1, 1], [], []>} : vector<8x32xbf16>, vector<32x32xbf16>, vector<8x32xf32> -> vector<8x32xf32>
    %cst_60 = arith.constant dense<0.000000e+00> : vector<8x32xf32>
    %115 = tpu.matmul %113, %104, %cst_60 {dimension_numbers = #tpu.dot_dimension_numbers<[1], [0], [0], [1], [0, 0, 1, 1], [], []>} : vector<8x32xbf16>, vector<32x32xbf16>, vector<8x32xf32> -> vector<8x32xf32>
    %cst_61 = arith.constant dense<0.000000e+00> : vector<8x32xf32>
    %116 = tpu.matmul %113, %106, %cst_61 {dimension_numbers = #tpu.dot_dimension_numbers<[1], [0], [0], [1], [0, 0, 1, 1], [], []>} : vector<8x32xbf16>, vector<32x32xbf16>, vector<8x32xf32> -> vector<8x32xf32>
    %117 = arith.truncf %114 : vector<8x32xf32> to vector<8x32xbf16>
    %118 = vector.shape_cast %117 : vector<8x32xbf16> to vector<1x8x32xbf16>
    %119 = arith.truncf %115 : vector<8x32xf32> to vector<8x32xbf16>
    %120 = vector.shape_cast %119 : vector<8x32xbf16> to vector<1x8x32xbf16>
    %121 = arith.truncf %116 : vector<8x32xf32> to vector<8x32xbf16>
    %122 = vector.shape_cast %121 : vector<8x32xbf16> to vector<1x8x32xbf16>
    %123 = vector.extract_strided_slice %118 {offsets = [0, 0, 0], sizes = [1, 8, 8], strides = [1, 1, 1]} : vector<1x8x32xbf16> to vector<1x8x8xbf16>
    %124 = vector.extract_strided_slice %120 {offsets = [0, 0, 0], sizes = [1, 8, 8], strides = [1, 1, 1]} : vector<1x8x32xbf16> to vector<1x8x8xbf16>
    "tpu.trace_start"() <{level = 10 : i32, message = "bqc,bkc->bqk"}> : () -> ()
    %cst_62 = arith.constant dense<0.000000e+00> : vector<1x8x8xf32>
    %125 = tpu.matmul %123, %124, %cst_62 {dimension_numbers = #tpu.dot_dimension_numbers<[2], [2], [1], [1], [0, 0, 0, 1, 1, 1], [0], [0]>} : vector<1x8x8xbf16>, vector<1x8x8xbf16>, vector<1x8x8xf32> -> vector<1x8x8xf32>
    "tpu.trace_stop"() : () -> ()
    %126 = vector.extract_strided_slice %118 {offsets = [0, 0, 8], sizes = [1, 8, 8], strides = [1, 1, 1]} : vector<1x8x32xbf16> to vector<1x8x8xbf16>
    %127 = vector.extract_strided_slice %120 {offsets = [0, 0, 8], sizes = [1, 8, 8], strides = [1, 1, 1]} : vector<1x8x32xbf16> to vector<1x8x8xbf16>
    "tpu.trace_start"() <{level = 10 : i32, message = "bqc,bkc->bqk"}> : () -> ()
    %cst_63 = arith.constant dense<0.000000e+00> : vector<1x8x8xf32>
    %128 = tpu.matmul %126, %127, %cst_63 {dimension_numbers = #tpu.dot_dimension_numbers<[2], [2], [1], [1], [0, 0, 0, 1, 1, 1], [0], [0]>} : vector<1x8x8xbf16>, vector<1x8x8xbf16>, vector<1x8x8xf32> -> vector<1x8x8xf32>
    "tpu.trace_stop"() : () -> ()
    %129 = vector.extract_strided_slice %118 {offsets = [0, 0, 16], sizes = [1, 8, 8], strides = [1, 1, 1]} : vector<1x8x32xbf16> to vector<1x8x8xbf16>
    %130 = vector.extract_strided_slice %120 {offsets = [0, 0, 16], sizes = [1, 8, 8], strides = [1, 1, 1]} : vector<1x8x32xbf16> to vector<1x8x8xbf16>
    "tpu.trace_start"() <{level = 10 : i32, message = "bqc,bkc->bqk"}> : () -> ()
    %cst_64 = arith.constant dense<0.000000e+00> : vector<1x8x8xf32>
    %131 = tpu.matmul %129, %130, %cst_64 {dimension_numbers = #tpu.dot_dimension_numbers<[2], [2], [1], [1], [0, 0, 0, 1, 1, 1], [0], [0]>} : vector<1x8x8xbf16>, vector<1x8x8xbf16>, vector<1x8x8xf32> -> vector<1x8x8xf32>
    "tpu.trace_stop"() : () -> ()
    %132 = vector.extract_strided_slice %118 {offsets = [0, 0, 24], sizes = [1, 8, 8], strides = [1, 1, 1]} : vector<1x8x32xbf16> to vector<1x8x8xbf16>
    %133 = vector.extract_strided_slice %120 {offsets = [0, 0, 24], sizes = [1, 8, 8], strides = [1, 1, 1]} : vector<1x8x32xbf16> to vector<1x8x8xbf16>
    "tpu.trace_start"() <{level = 10 : i32, message = "bqc,bkc->bqk"}> : () -> ()
    %cst_65 = arith.constant dense<0.000000e+00> : vector<1x8x8xf32>
    %134 = tpu.matmul %132, %133, %cst_65 {dimension_numbers = #tpu.dot_dimension_numbers<[2], [2], [1], [1], [0, 0, 0, 1, 1, 1], [0], [0]>} : vector<1x8x8xbf16>, vector<1x8x8xbf16>, vector<1x8x8xf32> -> vector<1x8x8xf32>
    "tpu.trace_stop"() : () -> ()
    %135 = tpu.concatenate %125, %128, %131, %134 in 0 : vector<1x8x8xf32>, vector<1x8x8xf32>, vector<1x8x8xf32>, vector<1x8x8xf32> -> vector<4x8x8xf32>
    %cst_66 = arith.constant dense<0xFF800000> : vector<4x8xf32>
    %136 = vector.multi_reduction <maximumf>, %135, %cst_66 [2] : vector<4x8x8xf32> to vector<4x8xf32>
    %137 = vector.shape_cast %136 : vector<4x8xf32> to vector<4x8x1xf32>
    %138 = vector.broadcast %137 : vector<4x8x1xf32> to vector<4x8x8xf32>
    %139 = arith.subf %135, %138 : vector<4x8x8xf32>
    %140 = math.exp %139 : vector<4x8x8xf32>
    %cst_67 = arith.constant dense<0.000000e+00> : vector<4x8xf32>
    %141 = vector.multi_reduction <add>, %140, %cst_67 [2] : vector<4x8x8xf32> to vector<4x8xf32>
    %142 = vector.shape_cast %141 : vector<4x8xf32> to vector<4x8x1xf32>
    %143 = vector.broadcast %142 : vector<4x8x1xf32> to vector<4x8x8xf32>
    %144 = arith.divf %140, %143 : vector<4x8x8xf32>
    %145 = arith.truncf %144 : vector<4x8x8xf32> to vector<4x8x8xbf16>
    %146 = vector.extract_strided_slice %145 {offsets = [0, 0, 0], sizes = [1, 8, 8], strides = [1, 1, 1]} : vector<4x8x8xbf16> to vector<1x8x8xbf16>
    %147 = vector.extract_strided_slice %122 {offsets = [0, 0, 0], sizes = [1, 8, 8], strides = [1, 1, 1]} : vector<1x8x32xbf16> to vector<1x8x8xbf16>
    "tpu.trace_start"() <{level = 10 : i32, message = "bqk,bkc->bqc"}> : () -> ()
    %cst_68 = arith.constant dense<0.000000e+00> : vector<1x8x8xf32>
    %148 = tpu.matmul %146, %147, %cst_68 {dimension_numbers = #tpu.dot_dimension_numbers<[2], [1], [1], [2], [0, 0, 0, 1, 1, 2], [0], [0]>} : vector<1x8x8xbf16>, vector<1x8x8xbf16>, vector<1x8x8xf32> -> vector<1x8x8xf32>
    "tpu.trace_stop"() : () -> ()
    %149 = vector.extract_strided_slice %145 {offsets = [1, 0, 0], sizes = [1, 8, 8], strides = [1, 1, 1]} : vector<4x8x8xbf16> to vector<1x8x8xbf16>
    %150 = vector.extract_strided_slice %122 {offsets = [0, 0, 8], sizes = [1, 8, 8], strides = [1, 1, 1]} : vector<1x8x32xbf16> to vector<1x8x8xbf16>
    "tpu.trace_start"() <{level = 10 : i32, message = "bqk,bkc->bqc"}> : () -> ()
    %cst_69 = arith.constant dense<0.000000e+00> : vector<1x8x8xf32>
    %151 = tpu.matmul %149, %150, %cst_69 {dimension_numbers = #tpu.dot_dimension_numbers<[2], [1], [1], [2], [0, 0, 0, 1, 1, 2], [0], [0]>} : vector<1x8x8xbf16>, vector<1x8x8xbf16>, vector<1x8x8xf32> -> vector<1x8x8xf32>
    "tpu.trace_stop"() : () -> ()
    %152 = vector.extract_strided_slice %145 {offsets = [2, 0, 0], sizes = [1, 8, 8], strides = [1, 1, 1]} : vector<4x8x8xbf16> to vector<1x8x8xbf16>
    %153 = vector.extract_strided_slice %122 {offsets = [0, 0, 16], sizes = [1, 8, 8], strides = [1, 1, 1]} : vector<1x8x32xbf16> to vector<1x8x8xbf16>
    "tpu.trace_start"() <{level = 10 : i32, message = "bqk,bkc->bqc"}> : () -> ()
    %cst_70 = arith.constant dense<0.000000e+00> : vector<1x8x8xf32>
    %154 = tpu.matmul %152, %153, %cst_70 {dimension_numbers = #tpu.dot_dimension_numbers<[2], [1], [1], [2], [0, 0, 0, 1, 1, 2], [0], [0]>} : vector<1x8x8xbf16>, vector<1x8x8xbf16>, vector<1x8x8xf32> -> vector<1x8x8xf32>
    "tpu.trace_stop"() : () -> ()
    %155 = vector.extract_strided_slice %145 {offsets = [3, 0, 0], sizes = [1, 8, 8], strides = [1, 1, 1]} : vector<4x8x8xbf16> to vector<1x8x8xbf16>
    %156 = vector.extract_strided_slice %122 {offsets = [0, 0, 24], sizes = [1, 8, 8], strides = [1, 1, 1]} : vector<1x8x32xbf16> to vector<1x8x8xbf16>
    "tpu.trace_start"() <{level = 10 : i32, message = "bqk,bkc->bqc"}> : () -> ()
    %cst_71 = arith.constant dense<0.000000e+00> : vector<1x8x8xf32>
    %157 = tpu.matmul %155, %156, %cst_71 {dimension_numbers = #tpu.dot_dimension_numbers<[2], [1], [1], [2], [0, 0, 0, 1, 1, 2], [0], [0]>} : vector<1x8x8xbf16>, vector<1x8x8xbf16>, vector<1x8x8xf32> -> vector<1x8x8xf32>
    "tpu.trace_stop"() : () -> ()
    %158 = tpu.concatenate %148, %151, %154, %157 in 2 : vector<1x8x8xf32>, vector<1x8x8xf32>, vector<1x8x8xf32>, vector<1x8x8xf32> -> vector<1x8x32xf32>
    %159 = vector.shape_cast %158 : vector<1x8x32xf32> to vector<8x32xf32>
    %160 = arith.truncf %159 : vector<8x32xf32> to vector<8x32xbf16>
    %cst_72 = arith.constant dense<0.000000e+00> : vector<8x32xf32>
    %161 = tpu.matmul %160, %108, %cst_72 {dimension_numbers = #tpu.dot_dimension_numbers<[1], [0], [0], [1], [0, 0, 1, 1], [], []>} : vector<8x32xbf16>, vector<32x32xbf16>, vector<8x32xf32> -> vector<8x32xf32>
    %162 = vector.broadcast %110 : vector<1x32xf32> to vector<8x32xf32>
    %163 = arith.addf %161, %162 : vector<8x32xf32>
    %164 = vector.shape_cast %163 : vector<8x32xf32> to vector<1x8x32xf32>
    %165 = arith.addf %164, %100 : vector<1x8x32xf32>
    %c0_73 = arith.constant 0 : index
    %c4 = arith.constant 4 : index
    %c0_74 = arith.constant 0 : index
    %166 = vector.load %arg11[%c0_73, %c4, %c0_74] : memref<1x9x32xf32, #tpu.memory_space<vmem>>, vector<1x1x32xf32>
    %167 = vector.shape_cast %166 : vector<1x1x32xf32> to vector<1x32xf32>
    %c0_75 = arith.constant 0 : index
    %c5 = arith.constant 5 : index
    %c0_76 = arith.constant 0 : index
    %168 = vector.load %arg11[%c0_75, %c5, %c0_76] : memref<1x9x32xf32, #tpu.memory_space<vmem>>, vector<1x1x32xf32>
    %169 = vector.shape_cast %168 : vector<1x1x32xf32> to vector<1x32xf32>
    %cst_77 = arith.constant dense<0.000000e+00> : vector<1x8xf32>
    %170 = vector.multi_reduction <add>, %165, %cst_77 [2] : vector<1x8x32xf32> to vector<1x8xf32>
    %171 = vector.shape_cast %170 : vector<1x8xf32> to vector<1x8x1xf32>
    %cst_78 = arith.constant 3.200000e+01 : f32
    %172 = vector.broadcast %cst_78 : f32 to vector<1x8x1xf32>
    %173 = arith.divf %171, %172 : vector<1x8x1xf32>
    %174 = vector.broadcast %173 : vector<1x8x1xf32> to vector<1x8x32xf32>
    %175 = arith.subf %165, %174 : vector<1x8x32xf32>
    %176 = arith.mulf %175, %175 : vector<1x8x32xf32>
    %cst_79 = arith.constant dense<0.000000e+00> : vector<1x8xf32>
    %177 = vector.multi_reduction <add>, %176, %cst_79 [2] : vector<1x8x32xf32> to vector<1x8xf32>
    %178 = vector.shape_cast %177 : vector<1x8xf32> to vector<1x8x1xf32>
    %cst_80 = arith.constant 3.200000e+01 : f32
    %179 = vector.broadcast %cst_80 : f32 to vector<1x8x1xf32>
    %180 = arith.divf %178, %179 : vector<1x8x1xf32>
    %cst_81 = arith.constant 9.99999974E-6 : f32
    %181 = vector.broadcast %cst_81 : f32 to vector<1x8x1xf32>
    %182 = arith.addf %180, %181 : vector<1x8x1xf32>
    %183 = math.rsqrt %182 : vector<1x8x1xf32>
    %184 = vector.broadcast %183 : vector<1x8x1xf32> to vector<1x8x32xf32>
    %185 = arith.mulf %175, %184 : vector<1x8x32xf32>
    %186 = vector.shape_cast %167 : vector<1x32xf32> to vector<1x1x32xf32>
    %187 = vector.broadcast %186 : vector<1x1x32xf32> to vector<1x8x32xf32>
    %188 = arith.mulf %185, %187 : vector<1x8x32xf32>
    %189 = vector.shape_cast %169 : vector<1x32xf32> to vector<1x1x32xf32>
    %190 = vector.broadcast %189 : vector<1x1x32xf32> to vector<1x8x32xf32>
    %191 = arith.addf %188, %190 : vector<1x8x32xf32>
    %192 = vector.shape_cast %191 : vector<1x8x32xf32> to vector<8x32xf32>
    %193 = arith.truncf %192 : vector<8x32xf32> to vector<8x32xbf16>
    %c0_82 = arith.constant 0 : index
    %c0_83 = arith.constant 0 : index
    %c0_84 = arith.constant 0 : index
    %194 = vector.load %arg12[%c0_82, %c0_83, %c0_84] : memref<1x32x128xbf16, #tpu.memory_space<vmem>>, vector<1x32x128xbf16>
    %195 = vector.shape_cast %194 : vector<1x32x128xbf16> to vector<32x128xbf16>
    %cst_85 = arith.constant dense<0.000000e+00> : vector<8x128xf32>
    %196 = tpu.matmul %193, %195, %cst_85 {dimension_numbers = #tpu.dot_dimension_numbers<[1], [0], [0], [1], [0, 0, 1, 1], [], []>} : vector<8x32xbf16>, vector<32x128xbf16>, vector<8x128xf32> -> vector<8x128xf32>
    %c0_86 = arith.constant 0 : index
    %c0_87 = arith.constant 0 : index
    %c0_88 = arith.constant 0 : index
    %197 = vector.load %arg13[%c0_86, %c0_87, %c0_88] : memref<1x1x128xf32, #tpu.memory_space<vmem>>, vector<1x1x128xf32>
    %198 = vector.shape_cast %197 : vector<1x1x128xf32> to vector<1x128xf32>
    %199 = vector.broadcast %198 : vector<1x128xf32> to vector<8x128xf32>
    %200 = arith.addf %196, %199 : vector<8x128xf32>
    %cst_89 = arith.constant 0.000000e+00 : f32
    %201 = vector.broadcast %cst_89 : f32 to vector<8x128xf32>
    %202 = arith.maximumf %200, %201 : vector<8x128xf32>
    %203 = arith.truncf %202 : vector<8x128xf32> to vector<8x128xbf16>
    %c0_90 = arith.constant 0 : index
    %c0_91 = arith.constant 0 : index
    %c0_92 = arith.constant 0 : index
    %204 = vector.load %arg14[%c0_90, %c0_91, %c0_92] : memref<1x128x32xbf16, #tpu.memory_space<vmem>>, vector<1x128x32xbf16>
    %205 = vector.shape_cast %204 : vector<1x128x32xbf16> to vector<128x32xbf16>
    %cst_93 = arith.constant dense<0.000000e+00> : vector<8x32xf32>
    %206 = tpu.matmul %203, %205, %cst_93 {dimension_numbers = #tpu.dot_dimension_numbers<[1], [0], [0], [1], [0, 0, 1, 1], [], []>} : vector<8x128xbf16>, vector<128x32xbf16>, vector<8x32xf32> -> vector<8x32xf32>
    %c0_94 = arith.constant 0 : index
    %c8 = arith.constant 8 : index
    %c0_95 = arith.constant 0 : index
    %207 = vector.load %arg11[%c0_94, %c8, %c0_95] : memref<1x9x32xf32, #tpu.memory_space<vmem>>, vector<1x1x32xf32>
    %208 = vector.shape_cast %207 : vector<1x1x32xf32> to vector<1x32xf32>
    %209 = vector.broadcast %208 : vector<1x32xf32> to vector<8x32xf32>
    %210 = arith.addf %206, %209 : vector<8x32xf32>
    %211 = vector.shape_cast %210 : vector<8x32xf32> to vector<1x8x32xf32>
    %212 = arith.addf %211, %191 : vector<1x8x32xf32>
    %c0_96 = arith.constant 0 : index
    %c6 = arith.constant 6 : index
    %c0_97 = arith.constant 0 : index
    %213 = vector.load %arg11[%c0_96, %c6, %c0_97] : memref<1x9x32xf32, #tpu.memory_space<vmem>>, vector<1x1x32xf32>
    %214 = vector.shape_cast %213 : vector<1x1x32xf32> to vector<1x32xf32>
    %c0_98 = arith.constant 0 : index
    %c7 = arith.constant 7 : index
    %c0_99 = arith.constant 0 : index
    %215 = vector.load %arg11[%c0_98, %c7, %c0_99] : memref<1x9x32xf32, #tpu.memory_space<vmem>>, vector<1x1x32xf32>
    %216 = vector.shape_cast %215 : vector<1x1x32xf32> to vector<1x32xf32>
    %cst_100 = arith.constant dense<0.000000e+00> : vector<1x8xf32>
    %217 = vector.multi_reduction <add>, %212, %cst_100 [2] : vector<1x8x32xf32> to vector<1x8xf32>
    %218 = vector.shape_cast %217 : vector<1x8xf32> to vector<1x8x1xf32>
    %cst_101 = arith.constant 3.200000e+01 : f32
    %219 = vector.broadcast %cst_101 : f32 to vector<1x8x1xf32>
    %220 = arith.divf %218, %219 : vector<1x8x1xf32>
    %221 = vector.broadcast %220 : vector<1x8x1xf32> to vector<1x8x32xf32>
    %222 = arith.subf %212, %221 : vector<1x8x32xf32>
    %223 = arith.mulf %222, %222 : vector<1x8x32xf32>
    %cst_102 = arith.constant dense<0.000000e+00> : vector<1x8xf32>
    %224 = vector.multi_reduction <add>, %223, %cst_102 [2] : vector<1x8x32xf32> to vector<1x8xf32>
    %225 = vector.shape_cast %224 : vector<1x8xf32> to vector<1x8x1xf32>
    %cst_103 = arith.constant 3.200000e+01 : f32
    %226 = vector.broadcast %cst_103 : f32 to vector<1x8x1xf32>
    %227 = arith.divf %225, %226 : vector<1x8x1xf32>
    %cst_104 = arith.constant 9.99999974E-6 : f32
    %228 = vector.broadcast %cst_104 : f32 to vector<1x8x1xf32>
    %229 = arith.addf %227, %228 : vector<1x8x1xf32>
    %230 = math.rsqrt %229 : vector<1x8x1xf32>
    %231 = vector.broadcast %230 : vector<1x8x1xf32> to vector<1x8x32xf32>
    %232 = arith.mulf %222, %231 : vector<1x8x32xf32>
    %233 = vector.shape_cast %214 : vector<1x32xf32> to vector<1x1x32xf32>
    %234 = vector.broadcast %233 : vector<1x1x32xf32> to vector<1x8x32xf32>
    %235 = arith.mulf %232, %234 : vector<1x8x32xf32>
    %236 = vector.shape_cast %216 : vector<1x32xf32> to vector<1x1x32xf32>
    %237 = vector.broadcast %236 : vector<1x1x32xf32> to vector<1x8x32xf32>
    %238 = arith.addf %235, %237 : vector<1x8x32xf32>
    %c0_105 = arith.constant 0 : index
    %c0_106 = arith.constant 0 : index
    %c0_107 = arith.constant 0 : index
    %239 = vector.load %arg16[%c0_105, %c0_106, %c0_107] : memref<1x8x32xf32, #tpu.memory_space<vmem>>, vector<1x8x32xf32>
    tpu.vector_store %arg16[%c0_105, %c0_106, %c0_107], %238 {strides = array<i32>} : memref<1x8x32xf32, #tpu.memory_space<vmem>>, vector<1x8x32xf32>,
    %c1_i32 = arith.constant 1 : i32
    %240 = arith.cmpi eq, %arg1, %c1_i32 : i32
    %241 = arith.extui %240 : i1 to i32
    %c0_i32_108 = arith.constant 0 : i32
    %242 = arith.cmpi ne, %241, %c0_i32_108 : i32
    scf.if %242 {
      %243 = arith.truncf %238 : vector<1x8x32xf32> to vector<1x8x32xbf16>
      %c0_109 = arith.constant 0 : index
      %c0_110 = arith.constant 0 : index
      %c0_111 = arith.constant 0 : index
      %244 = vector.load %arg15[%c0_109, %c0_110, %c0_111] : memref<1x8x32xbf16, #tpu.memory_space<vmem>>, vector<1x8x32xbf16>
      tpu.vector_store %arg15[%c0_109, %c0_110, %c0_111], %243 {strides = array<i32>} : memref<1x8x32xbf16, #tpu.memory_space<vmem>>, vector<1x8x32xbf16>,
    } else {
    }
    return
  }
  func.func @transform_0(%arg0: i32, %arg1: i32) -> (i32, i32, i32) {
    %c0_i32 = arith.constant 0 : i32
    %c0_i32_0 = arith.constant 0 : i32
    %c0_i32_1 = arith.constant 0 : i32
    return %arg0, %c0_i32, %c0_i32_0 : i32, i32, i32
  }
  func.func @transform_1(%arg0: i32, %arg1: i32) -> (i32, i32, i32) {
    %c0_i32 = arith.constant 0 : i32
    %c0_i32_0 = arith.constant 0 : i32
    %c0_i32_1 = arith.constant 0 : i32
    return %arg1, %c0_i32, %c0_i32_0 : i32, i32, i32
  }
  func.func @transform_2(%arg0: i32, %arg1: i32) -> (i32, i32, i32) {
    %c0_i32 = arith.constant 0 : i32
    %c0_i32_0 = arith.constant 0 : i32
    %c0_i32_1 = arith.constant 0 : i32
    return %arg1, %c0_i32, %c0_i32_0 : i32, i32, i32
  }
  func.func @transform_3(%arg0: i32, %arg1: i32) -> (i32, i32, i32) {
    %c0_i32 = arith.constant 0 : i32
    %c0_i32_0 = arith.constant 0 : i32
    %c0_i32_1 = arith.constant 0 : i32
    return %arg1, %c0_i32, %c0_i32_0 : i32, i32, i32
  }
  func.func @transform_4(%arg0: i32, %arg1: i32) -> (i32, i32, i32) {
    %c0_i32 = arith.constant 0 : i32
    %c0_i32_0 = arith.constant 0 : i32
    %c0_i32_1 = arith.constant 0 : i32
    return %arg1, %c0_i32, %c0_i32_0 : i32, i32, i32
  }
  func.func @transform_5(%arg0: i32, %arg1: i32) -> (i32, i32, i32) {
    %c0_i32 = arith.constant 0 : i32
    %c0_i32_0 = arith.constant 0 : i32
    %c0_i32_1 = arith.constant 0 : i32
    return %arg1, %c0_i32, %c0_i32_0 : i32, i32, i32
  }
  func.func @transform_6(%arg0: i32, %arg1: i32) -> (i32, i32, i32) {
    %c0_i32 = arith.constant 0 : i32
    %c0_i32_0 = arith.constant 0 : i32
    %c0_i32_1 = arith.constant 0 : i32
    return %arg1, %c0_i32, %c0_i32_0 : i32, i32, i32
  }
  func.func @transform_7(%arg0: i32, %arg1: i32) -> (i32, i32, i32) {
    %c0_i32 = arith.constant 0 : i32
    %c0_i32_0 = arith.constant 0 : i32
    %c0_i32_1 = arith.constant 0 : i32
    return %arg1, %c0_i32, %c0_i32_0 : i32, i32, i32
  }
  func.func @transform_8(%arg0: i32, %arg1: i32) -> (i32, i32, i32) {
    %c0_i32 = arith.constant 0 : i32
    %c0_i32_0 = arith.constant 0 : i32
    %c0_i32_1 = arith.constant 0 : i32
    return %arg1, %c0_i32, %c0_i32_0 : i32, i32, i32
  }
  func.func @transform_9(%arg0: i32, %arg1: i32) -> (i32, i32, i32) {
    %c0_i32 = arith.constant 0 : i32
    %c0_i32_0 = arith.constant 0 : i32
    %c0_i32_1 = arith.constant 0 : i32
    return %arg1, %c0_i32, %c0_i32_0 : i32, i32, i32
  }
  func.func @transform_10(%arg0: i32, %arg1: i32) -> (i32, i32, i32) {
    %c0_i32 = arith.constant 0 : i32
    %c0_i32_0 = arith.constant 0 : i32
    %c0_i32_1 = arith.constant 0 : i32
    return %arg1, %c0_i32, %c0_i32_0 : i32, i32, i32
  }
  func.func @transform_11(%arg0: i32, %arg1: i32) -> (i32, i32, i32) {
    %c0_i32 = arith.constant 0 : i32
    %c0_i32_0 = arith.constant 0 : i32
    %c0_i32_1 = arith.constant 0 : i32
    return %arg1, %c0_i32, %c0_i32_0 : i32, i32, i32
  }
  func.func @transform_12(%arg0: i32, %arg1: i32) -> (i32, i32, i32) {
    %c0_i32 = arith.constant 0 : i32
    %c0_i32_0 = arith.constant 0 : i32
    %c0_i32_1 = arith.constant 0 : i32
    return %arg1, %c0_i32, %c0_i32_0 : i32, i32, i32
  }
  func.func @transform_13(%arg0: i32, %arg1: i32) -> (i32, i32, i32) {
    %c0_i32 = arith.constant 0 : i32
    %c0_i32_0 = arith.constant 0 : i32
    %c0_i32_1 = arith.constant 0 : i32
    return %arg0, %c0_i32, %c0_i32_0 : i32, i32, i32
  }
}

</mosaic_0001>

<llo_original>
// kernel: tpu_custom_call.1
$region0: #{tpu_custom_call.1}
  #allocation0 [shape = 'u32[]', space=smem, size = 0x4, offset = 0x4, fixed_abs, tag = 'smem constant byte address 0x4 - core index']
  #allocation1 [shape = 'u32[144,128]{1,0:T(1,128)}', space=vmem, size = 0x12000, scoped, tag = 'internal scratch']
  #allocation2 [shape = 'f32[1,8,32]{2,1,0:T(8,128)}', space=vmem, size = 0x1000, scoped, tag = 'scratch operand']
  #allocation3 [shape = 'f32[8,8]{1,0:T(8,128)}', space=vmem, size = 0x1000, scoped, tag = 'scratch operand']
  %s0 = inlined_call_operand.hbm [shape: bf16[2,8,32], index: 0, kind: input, shape index: {}]
  %s1 = inlined_call_operand.vmem [shape: bf16[2,32,32], index: 1, kind: input, shape index: {}]
  %s2 = inlined_call_operand.vmem [shape: bf16[2,32,32], index: 2, kind: input, shape index: {}]
  %s3 = inlined_call_operand.vmem [shape: bf16[2,32,32], index: 3, kind: input, shape index: {}]
  %s4 = inlined_call_operand.vmem [shape: bf16[2,32,32], index: 4, kind: input, shape index: {}]
  %s5 = inlined_call_operand.vmem [shape: bf16[2,32,32], index: 5, kind: input, shape index: {}]
  %s6 = inlined_call_operand.vmem [shape: bf16[2,32,32], index: 6, kind: input, shape index: {}]
  %s7 = inlined_call_operand.hbm [shape: bf16[2,32,32], index: 7, kind: input, shape index: {}]
  %s8 = inlined_call_operand.hbm [shape: bf16[2,32,32], index: 8, kind: input, shape index: {}]
  %s9 = inlined_call_operand.vmem [shape: f32[2,9,32], index: 9, kind: input, shape index: {}]
  %s10 = inlined_call_operand.hbm [shape: bf16[2,32,128], index: 10, kind: input, shape index: {}]
  %s11 = inlined_call_operand.vmem [shape: f32[2,1,128], index: 11, kind: input, shape index: {}]
  %s12 = inlined_call_operand.vmem [shape: bf16[2,128,32], index: 12, kind: input, shape index: {}]
  %s13 = inlined_call_operand.hbm [shape: bf16[2,8,32], index: 13, kind: output, shape index: {}]
  %s14 = sld [smem:[#allocation0]]
  $region109: #{tpu_custom_call.1} parent=0
    _
  %s16 = ssub.s32 1, %s14
  %s17 = scalar_select 0, %s16, %s14
  $region1: #{tpu_custom_call.1} parent=0
    #allocation4 [shape = 'u8[4096]{0}', space=vmem, size = 0x1000, scoped, tag = 'input window, operand 0']
    #allocation5 [shape = 's32[2]{0}', space=sflag, size = 0x8, scoped, tag = 'scoped memory for tpu_custom_call.1']
    #allocation6 [shape = 's32[2]{0}', space=sflag, size = 0x8, scoped, tag = 'scoped memory for tpu_custom_call.1']
    #allocation7 [shape = 'u8[16384]{0}', space=vmem, size = 0x4000, scoped, tag = 'input window, operand 7']
    #allocation8 [shape = 's32[2]{0}', space=sflag, size = 0x8, scoped, tag = 'scoped memory for tpu_custom_call.1']
    #allocation9 [shape = 'u8[16384]{0}', space=vmem, size = 0x4000, scoped, tag = 'input window, operand 8']
    #allocation10 [shape = 'u8[16384]{0}', space=vmem, size = 0x4000, scoped, tag = 'input window, operand 10']
    #allocation11 [shape = 's32[2]{0}', space=sflag, size = 0x8, scoped, tag = 'scoped memory for tpu_custom_call.1']
    #allocation12 [shape = 'u8[4096]{0}', space=vmem, size = 0x1000, scoped, tag = 'output window, operand 0']
    %18 = vsyncpa [#allocation5], 0
    %s19 = scalar_lea.sflag [#allocation5], 1
    %20 = vsyncpa %s19, 0
    %21 = vsyncpa [#allocation8], 0
    %s22 = scalar_lea.sflag [#allocation8], 1
    %23 = vsyncpa %s22, 0
    %24 = vsyncpa [#allocation11], 0
    %s25 = scalar_lea.sflag [#allocation11], 1
    %26 = vsyncpa %s25, 0
    %27 = vsyncpa [#allocation6], 0
    %s28 = scalar_lea.sflag [#allocation6], 1
    %29 = vsyncpa %s28, 0
    loop: start=0, step=1, limit=6
    $region2: #{tpu_custom_call.1} parent=1 // loop_pre_header
      _
    $region3: #{tpu_custom_call.1} parent=1 // loop_header
      %s31 = sphi 0, %s35
      %p32 = scmp.ge.s32.totalorder %s31, 6
      %s38 = sphi 0, %s50
      %s39 = sphi 0, %s46
      %s40 = sphi 0, %s38
      %s41 = sphi 0, %s39
      %s42 = sphi 0, %s40
      %s43 = sphi 0, %s41
      %s53 = sphi 0, %s55
      %s56 = sphi 0, %s53
      %s57 = sphi 0, %s56
      %s73 = sphi 0, %s57
      %s79 = sphi 0, %s81
      %s82 = sphi 0, %s79
      %s83 = sphi 0, %s82
      %s99 = sphi 0, %s83
      %s105 = sphi 0, %s107
      %s108 = sphi 0, %s105
      %s109 = sphi 0, %s108
      %s125 = sphi 0, %s109
      %s131 = sphi 0, %s133
      %s134 = sphi 0, %s131
      %s135 = sphi 0, %s134
      %s151 = sphi 0, %s135
      %s157 = sphi 0, %s159
      %s160 = sphi 0, %s157
      %s161 = sphi 0, %s160
      %s177 = sphi 0, %s161
      %s183 = sphi 0, %s185
      %s186 = sphi 0, %s183
      %s187 = sphi 0, %s186
      %s203 = sphi 0, %s187
      %s209 = sphi 0, %s211
      %s212 = sphi 0, %s209
      %s213 = sphi 0, %s212
      %s229 = sphi 0, %s213
      %s235 = sphi 0, %s237
      %s238 = sphi 0, %s235
      %s239 = sphi 0, %s238
      %s255 = sphi 0, %s239
      %s261 = sphi 0, %s263
      %s264 = sphi 0, %s261
      %s265 = sphi 0, %s264
      %s281 = sphi 0, %s265
      %s287 = sphi 0, %s289
      %s290 = sphi 0, %s287
      %s291 = sphi 0, %s290
      %s307 = sphi 0, %s291
      %s313 = sphi 0, %s315
      %s316 = sphi 0, %s313
      %s317 = sphi 0, %s316
      %s333 = sphi 0, %s317
      %s339 = sphi 0, %s341
      %s342 = sphi 0, %s339
      %s343 = sphi 0, %s342
      %s359 = sphi 0, %s343
      %s365 = sphi 0, %s367
      %s368 = sphi 0, %s365
      %s369 = sphi 0, %s368
      %s385 = sphi 0, %s369
      %s391 = sphi 0, %s393
      %s394 = sphi 0, %s391
      %s395 = sphi 0, %s394
      %s411 = sphi 0, %s395
    $region4: #{tpu_custom_call.1} parent=1 // loop_header_branch
      %34 = sbr.rel (%p32) target = $region8
    $region5: #{tpu_custom_call.1} parent=1 // loop_body
      %s36 = ssub.s32 %s31, 1
      %s37 = ssub.s32 %s31, 2
      %s44 = sadd.s32 1, %s39
      %p45 = scmp.ge.s32.totalorder %s44, 2
      %s46 = scalar_select %p45, 0, %s44
      %s47 = sadd.s32 1, %s38
      %s48 = scalar_select %p45, %s47, %s38
      %p49 = scmp.ge.s32.totalorder %s48, 2
      %s50 = scalar_select %p49, 0, %s48
      %s51 = ssub.s32 %s38, %s50
      %p52 = scmp.eq.s32.totalorder %s51, 0
      %s54 = sadd.s32 %s53, 1
      %s55 = scalar_select %p52, %s53, %s54
      %p58 = pneg %p52
      %p59 = scmp.eq.s32.totalorder %s31, 3
      %p60 = por %p58, %p59
      %p61 = scmp.ne.s32.totalorder %s53, %s56
      %p62 = scmp.eq.s32.totalorder %s31, 0
      %p63 = por %p61, %p62
      %p64 = scmp.ne.s32.totalorder %s53, %s56
      %p65 = scmp.eq.s32.totalorder %s36, 3
      %p66 = por %p64, %p65
      %p67 = scmp.ne.s32.totalorder %s56, %s57
      %p68 = scmp.eq.s32.totalorder %s36, 0
      %p69 = por %p67, %p68
      %p70 = scmp.ne.s32.totalorder %s56, %s57
      %p71 = scmp.eq.s32.totalorder %s37, 3
      %p72 = por %p70, %p71
      %p74 = scmp.ne.s32.totalorder %s57, %s73
      %p75 = scmp.eq.s32.totalorder %s37, 0
      %p76 = por %p74, %p75
      %s77 = ssub.s32 %s39, %s46
      %p78 = scmp.eq.s32.totalorder %s77, 0
      %s80 = sadd.s32 %s79, 1
      %s81 = scalar_select %p78, %s79, %s80
      %p84 = pneg %p78
      %p85 = scmp.eq.s32.totalorder %s31, 3
      %p86 = por %p84, %p85
      %p87 = scmp.ne.s32.totalorder %s79, %s82
      %p88 = scmp.eq.s32.totalorder %s31, 0
      %p89 = por %p87, %p88
      %p90 = scmp.ne.s32.totalorder %s79, %s82
      %p91 = scmp.eq.s32.totalorder %s36, 3
      %p92 = por %p90, %p91
      %p93 = scmp.ne.s32.totalorder %s82, %s83
      %p94 = scmp.eq.s32.totalorder %s36, 0
      %p95 = por %p93, %p94
      %p96 = scmp.ne.s32.totalorder %s82, %s83
      %p97 = scmp.eq.s32.totalorder %s37, 3
      %p98 = por %p96, %p97
      %p100 = scmp.ne.s32.totalorder %s83, %s99
      %p101 = scmp.eq.s32.totalorder %s37, 0
      %p102 = por %p100, %p101
      %s103 = ssub.s32 %s39, %s46
      %p104 = scmp.eq.s32.totalorder %s103, 0
      %s106 = sadd.s32 %s105, 1
      %s107 = scalar_select %p104, %s105, %s106
      %p110 = pneg %p104
      %p111 = scmp.eq.s32.totalorder %s31, 3
      %p112 = por %p110, %p111
      %p113 = scmp.ne.s32.totalorder %s105, %s108
      %p114 = scmp.eq.s32.totalorder %s31, 0
      %p115 = por %p113, %p114
      %p116 = scmp.ne.s32.totalorder %s105, %s108
      %p117 = scmp.eq.s32.totalorder %s36, 3
      %p118 = por %p116, %p117
      %p119 = scmp.ne.s32.totalorder %s108, %s109
      %p120 = scmp.eq.s32.totalorder %s36, 0
      %p121 = por %p119, %p120
      %p122 = scmp.ne.s32.totalorder %s108, %s109
      %p123 = scmp.eq.s32.totalorder %s37, 3
      %p124 = por %p122, %p123
      %p126 = scmp.ne.s32.totalorder %s109, %s125
      %p127 = scmp.eq.s32.totalorder %s37, 0
      %p128 = por %p126, %p127
      %s129 = ssub.s32 %s39, %s46
      %p130 = scmp.eq.s32.totalorder %s129, 0
      %s132 = sadd.s32 %s131, 1
      %s133 = scalar_select %p130, %s131, %s132
      %p136 = pneg %p130
      %p137 = scmp.eq.s32.totalorder %s31, 3
      %p138 = por %p136, %p137
      %p139 = scmp.ne.s32.totalorder %s131, %s134
      %p140 = scmp.eq.s32.totalorder %s31, 0
      %p141 = por %p139, %p140
      %p142 = scmp.ne.s32.totalorder %s131, %s134
      %p143 = scmp.eq.s32.totalorder %s36, 3
      %p144 = por %p142, %p143
      %p145 = scmp.ne.s32.totalorder %s134, %s135
      %p146 = scmp.eq.s32.totalorder %s36, 0
      %p147 = por %p145, %p146
      %p148 = scmp.ne.s32.totalorder %s134, %s135
      %p149 = scmp.eq.s32.totalorder %s37, 3
      %p150 = por %p148, %p149
      %p152 = scmp.ne.s32.totalorder %s135, %s151
      %p153 = scmp.eq.s32.totalorder %s37, 0
      %p154 = por %p152, %p153
      %s155 = ssub.s32 %s39, %s46
      %p156 = scmp.eq.s32.totalorder %s155, 0
      %s158 = sadd.s32 %s157, 1
      %s159 = scalar_select %p156, %s157, %s158
      %p162 = pneg %p156
      %p163 = scmp.eq.s32.totalorder %s31, 3
      %p164 = por %p162, %p163
      %p165 = scmp.ne.s32.totalorder %s157, %s160
      %p166 = scmp.eq.s32.totalorder %s31, 0
      %p167 = por %p165, %p166
      %p168 = scmp.ne.s32.totalorder %s157, %s160
      %p169 = scmp.eq.s32.totalorder %s36, 3
      %p170 = por %p168, %p169
      %p171 = scmp.ne.s32.totalorder %s160, %s161
      %p172 = scmp.eq.s32.totalorder %s36, 0
      %p173 = por %p171, %p172
      %p174 = scmp.ne.s32.totalorder %s160, %s161
      %p175 = scmp.eq.s32.totalorder %s37, 3
      %p176 = por %p174, %p175
      %p178 = scmp.ne.s32.totalorder %s161, %s177
      %p179 = scmp.eq.s32.totalorder %s37, 0
      %p180 = por %p178, %p179
      %s181 = ssub.s32 %s39, %s46
      %p182 = scmp.eq.s32.totalorder %s181, 0
      %s184 = sadd.s32 %s183, 1
      %s185 = scalar_select %p182, %s183, %s184
      %p188 = pneg %p182
      %p189 = scmp.eq.s32.totalorder %s31, 3
      %p190 = por %p188, %p189
      %p191 = scmp.ne.s32.totalorder %s183, %s186
      %p192 = scmp.eq.s32.totalorder %s31, 0
      %p193 = por %p191, %p192
      %p194 = scmp.ne.s32.totalorder %s183, %s186
      %p195 = scmp.eq.s32.totalorder %s36, 3
      %p196 = por %p194, %p195
      %p197 = scmp.ne.s32.totalorder %s186, %s187
      %p198 = scmp.eq.s32.totalorder %s36, 0
      %p199 = por %p197, %p198
      %p200 = scmp.ne.s32.totalorder %s186, %s187
      %p201 = scmp.eq.s32.totalorder %s37, 3
      %p202 = por %p200, %p201
      %p204 = scmp.ne.s32.totalorder %s187, %s203
      %p205 = scmp.eq.s32.totalorder %s37, 0
      %p206 = por %p204, %p205
      %s207 = ssub.s32 %s39, %s46
      %p208 = scmp.eq.s32.totalorder %s207, 0
      %s210 = sadd.s32 %s209, 1
      %s211 = scalar_select %p208, %s209, %s210
      %p214 = pneg %p208
      %p215 = scmp.eq.s32.totalorder %s31, 3
      %p216 = por %p214, %p215
      %p217 = scmp.ne.s32.totalorder %s209, %s212
      %p218 = scmp.eq.s32.totalorder %s31, 0
      %p219 = por %p217, %p218
      %p220 = scmp.ne.s32.totalorder %s209, %s212
      %p221 = scmp.eq.s32.totalorder %s36, 3
      %p222 = por %p220, %p221
      %p223 = scmp.ne.s32.totalorder %s212, %s213
      %p224 = scmp.eq.s32.totalorder %s36, 0
      %p225 = por %p223, %p224
      %p226 = scmp.ne.s32.totalorder %s212, %s213
      %p227 = scmp.eq.s32.totalorder %s37, 3
      %p228 = por %p226, %p227
      %p230 = scmp.ne.s32.totalorder %s213, %s229
      %p231 = scmp.eq.s32.totalorder %s37, 0
      %p232 = por %p230, %p231
      %s233 = ssub.s32 %s39, %s46
      %p234 = scmp.eq.s32.totalorder %s233, 0
      %s236 = sadd.s32 %s235, 1
      %s237 = scalar_select %p234, %s235, %s236
      %p240 = pneg %p234
      %p241 = scmp.eq.s32.totalorder %s31, 3
      %p242 = por %p240, %p241
      %p243 = scmp.ne.s32.totalorder %s235, %s238
      %p244 = scmp.eq.s32.totalorder %s31, 0
      %p245 = por %p243, %p244
      %p246 = scmp.ne.s32.totalorder %s235, %s238
      %p247 = scmp.eq.s32.totalorder %s36, 3
      %p248 = por %p246, %p247
      %p249 = scmp.ne.s32.totalorder %s238, %s239
      %p250 = scmp.eq.s32.totalorder %s36, 0
      %p251 = por %p249, %p250
      %p252 = scmp.ne.s32.totalorder %s238, %s239
      %p253 = scmp.eq.s32.totalorder %s37, 3
      %p254 = por %p252, %p253
      %p256 = scmp.ne.s32.totalorder %s239, %s255
      %p257 = scmp.eq.s32.totalorder %s37, 0
      %p258 = por %p256, %p257
      %s259 = ssub.s32 %s39, %s46
      %p260 = scmp.eq.s32.totalorder %s259, 0
      %s262 = sadd.s32 %s261, 1
      %s263 = scalar_select %p260, %s261, %s262
      %p266 = pneg %p260
      %p267 = scmp.eq.s32.totalorder %s31, 3
      %p268 = por %p266, %p267
      %p269 = scmp.ne.s32.totalorder %s261, %s264
      %p270 = scmp.eq.s32.totalorder %s31, 0
      %p271 = por %p269, %p270
      %p272 = scmp.ne.s32.totalorder %s261, %s264
      %p273 = scmp.eq.s32.totalorder %s36, 3
      %p274 = por %p272, %p273
      %p275 = scmp.ne.s32.totalorder %s264, %s265
      %p276 = scmp.eq.s32.totalorder %s36, 0
      %p277 = por %p275, %p276
      %p278 = scmp.ne.s32.totalorder %s264, %s265
      %p279 = scmp.eq.s32.totalorder %s37, 3
      %p280 = por %p278, %p279
      %p282 = scmp.ne.s32.totalorder %s265, %s281
      %p283 = scmp.eq.s32.totalorder %s37, 0
      %p284 = por %p282, %p283
      %s285 = ssub.s32 %s39, %s46
      %p286 = scmp.eq.s32.totalorder %s285, 0
      %s288 = sadd.s32 %s287, 1
      %s289 = scalar_select %p286, %s287, %s288
      %p292 = pneg %p286
      %p293 = scmp.eq.s32.totalorder %s31, 3
      %p294 = por %p292, %p293
      %p295 = scmp.ne.s32.totalorder %s287, %s290
      %p296 = scmp.eq.s32.totalorder %s31, 0
      %p297 = por %p295, %p296
      %p298 = scmp.ne.s32.totalorder %s287, %s290
      %p299 = scmp.eq.s32.totalorder %s36, 3
      %p300 = por %p298, %p299
      %p301 = scmp.ne.s32.totalorder %s290, %s291
      %p302 = scmp.eq.s32.totalorder %s36, 0
      %p303 = por %p301, %p302
      %p304 = scmp.ne.s32.totalorder %s290, %s291
      %p305 = scmp.eq.s32.totalorder %s37, 3
      %p306 = por %p304, %p305
      %p308 = scmp.ne.s32.totalorder %s291, %s307
      %p309 = scmp.eq.s32.totalorder %s37, 0
      %p310 = por %p308, %p309
      %s311 = ssub.s32 %s39, %s46
      %p312 = scmp.eq.s32.totalorder %s311, 0
      %s314 = sadd.s32 %s313, 1
      %s315 = scalar_select %p312, %s313, %s314
      %p318 = pneg %p312
      %p319 = scmp.eq.s32.totalorder %s31, 3
      %p320 = por %p318, %p319
      %p321 = scmp.ne.s32.totalorder %s313, %s316
      %p322 = scmp.eq.s32.totalorder %s31, 0
      %p323 = por %p321, %p322
      %p324 = scmp.ne.s32.totalorder %s313, %s316
      %p325 = scmp.eq.s32.totalorder %s36, 3
      %p326 = por %p324, %p325
      %p327 = scmp.ne.s32.totalorder %s316, %s317
      %p328 = scmp.eq.s32.totalorder %s36, 0
      %p329 = por %p327, %p328
      %p330 = scmp.ne.s32.totalorder %s316, %s317
      %p331 = scmp.eq.s32.totalorder %s37, 3
      %p332 = por %p330, %p331
      %p334 = scmp.ne.s32.totalorder %s317, %s333
      %p335 = scmp.eq.s32.totalorder %s37, 0
      %p336 = por %p334, %p335
      %s337 = ssub.s32 %s39, %s46
      %p338 = scmp.eq.s32.totalorder %s337, 0
      %s340 = sadd.s32 %s339, 1
      %s341 = scalar_select %p338, %s339, %s340
      %p344 = pneg %p338
      %p345 = scmp.eq.s32.totalorder %s31, 3
      %p346 = por %p344, %p345
      %p347 = scmp.ne.s32.totalorder %s339, %s342
      %p348 = scmp.eq.s32.totalorder %s31, 0
      %p349 = por %p347, %p348
      %p350 = scmp.ne.s32.totalorder %s339, %s342
      %p351 = scmp.eq.s32.totalorder %s36, 3
      %p352 = por %p350, %p351
      %p353 = scmp.ne.s32.totalorder %s342, %s343
      %p354 = scmp.eq.s32.totalorder %s36, 0
      %p355 = por %p353, %p354
      %p356 = scmp.ne.s32.totalorder %s342, %s343
      %p357 = scmp.eq.s32.totalorder %s37, 3
      %p358 = por %p356, %p357
      %p360 = scmp.ne.s32.totalorder %s343, %s359
      %p361 = scmp.eq.s32.totalorder %s37, 0
      %p362 = por %p360, %p361
      %s363 = ssub.s32 %s39, %s46
      %p364 = scmp.eq.s32.totalorder %s363, 0
      %s366 = sadd.s32 %s365, 1
      %s367 = scalar_select %p364, %s365, %s366
      %p370 = pneg %p364
      %p371 = scmp.eq.s32.totalorder %s31, 3
      %p372 = por %p370, %p371
      %p373 = scmp.ne.s32.totalorder %s365, %s368
      %p374 = scmp.eq.s32.totalorder %s31, 0
      %p375 = por %p373, %p374
      %p376 = scmp.ne.s32.totalorder %s365, %s368
      %p377 = scmp.eq.s32.totalorder %s36, 3
      %p378 = por %p376, %p377
      %p379 = scmp.ne.s32.totalorder %s368, %s369
      %p380 = scmp.eq.s32.totalorder %s36, 0
      %p381 = por %p379, %p380
      %p382 = scmp.ne.s32.totalorder %s368, %s369
      %p383 = scmp.eq.s32.totalorder %s37, 3
      %p384 = por %p382, %p383
      %p386 = scmp.ne.s32.totalorder %s369, %s385
      %p387 = scmp.eq.s32.totalorder %s37, 0
      %p388 = por %p386, %p387
      %s389 = ssub.s32 %s38, %s50
      %p390 = scmp.eq.s32.totalorder %s389, 0
      %s392 = sadd.s32 %s391, 1
      %s393 = scalar_select %p390, %s391, %s392
      %p396 = pneg %p390
      %p397 = scmp.eq.s32.totalorder %s31, 3
      %p398 = por %p396, %p397
      %p399 = scmp.ne.s32.totalorder %s391, %s394
      %p400 = scmp.eq.s32.totalorder %s31, 0
      %p401 = por %p399, %p400
      %p402 = scmp.ne.s32.totalorder %s391, %s394
      %p403 = scmp.eq.s32.totalorder %s36, 3
      %p404 = por %p402, %p403
      %p405 = scmp.ne.s32.totalorder %s394, %s395
      %p406 = scmp.eq.s32.totalorder %s36, 0
      %p407 = por %p405, %p406
      %p408 = scmp.ne.s32.totalorder %s394, %s395
      %p409 = scmp.eq.s32.totalorder %s37, 3
      %p410 = por %p408, %p409
      %p412 = scmp.ne.s32.totalorder %s395, %s411
      %p413 = scmp.eq.s32.totalorder %s37, 0
      %p414 = por %p412, %p413
      %p415 = scmp.le.s32.totalorder 1, %s31
      %p416 = scmp.lt.s32.totalorder %s31, 5
      %p417 = pnand %p415, %p416
      %p418 = pneg %p417
      // Predicated region
      $region9: #{tpu_custom_call.1} parent=5 // pred_check
        _
      $region10: #{tpu_custom_call.1} parent=5 // pred_check_branch
        %420 = sbr.rel (%p417) target = $region12
      $region11: #{tpu_custom_call.1} parent=5 // pred_region
        %s421 = ssub.s32 %s31, 1
      $region12: #{tpu_custom_call.1} parent=5 // pred_fallthru
        _
      %p422 = scmp.lt.s32.totalorder %s31, 4
      // Predicated region
      $region13: #{tpu_custom_call.1} parent=5 // pred_check
        %p423 = pneg %p422
      $region14: #{tpu_custom_call.1} parent=5 // pred_check_branch
        %425 = sbr.rel (%p423) target = $region16
      $region15: #{tpu_custom_call.1} parent=5 // pred_region
        // Predicated region
        $region17: #{tpu_custom_call.1} parent=15 // pred_check
          %p426 = pneg %p63
        $region18: #{tpu_custom_call.1} parent=15 // pred_check_branch
          %428 = sbr.rel (%p426) target = $region20
        $region19: #{tpu_custom_call.1} parent=15 // pred_region
          %s429 = sand.u32 %s53, 1
          %s430 = scalar_lea.sflag [#allocation5], %s429
          %s431 = sand.u32 %s53, 1
          %s432 = smul.addr %s431, 4
          %s433 = scalar_lea.vmem [#allocation4], %s432
          %s435 = ssub.s32 64, 64
          %436 = vsyncadd %s430, %s435
          %s437 = smul.addr %s38, 64
          %s438 = scalar_lea.hbm %s0, %s437
          %s440 = sshll.u32 %s433, 4
          %s441 = int_to_ptr.vmem [resolvable:$true] %s440
          %443 = dma.hbm_to_vmem [thread:$0]  %s438, 64, %s441, %s430
        $region20: #{tpu_custom_call.1} parent=15 // pred_fallthru
          _
        // Predicated region
        $region21: #{tpu_custom_call.1} parent=15 // pred_check
          %p444 = pneg %p89
        $region22: #{tpu_custom_call.1} parent=15 // pred_check_branch
          %446 = sbr.rel (%p444) target = $region24
        $region23: #{tpu_custom_call.1} parent=15 // pred_region
          %p447 = scmp.lt.s32.totalorder %s39, 1
          %s448 = scalar_select %p447, %s39, 1
          %s449 = smul.addr %s448, 4
          %s450 = smul.addr %s449, 4
          %s451 = scalar_lea.vmem %s1, %s450
        $region24: #{tpu_custom_call.1} parent=15 // pred_fallthru
          _
        // Predicated region
        $region25: #{tpu_custom_call.1} parent=15 // pred_check
          %p452 = pneg %p115
        $region26: #{tpu_custom_call.1} parent=15 // pred_check_branch
          %454 = sbr.rel (%p452) target = $region28
        $region27: #{tpu_custom_call.1} parent=15 // pred_region
          %p455 = scmp.lt.s32.totalorder %s39, 1
          %s456 = scalar_select %p455, %s39, 1
          %s457 = smul.addr %s456, 4
          %s458 = smul.addr %s457, 4
          %s459 = scalar_lea.vmem %s2, %s458
        $region28: #{tpu_custom_call.1} parent=15 // pred_fallthru
          _
        // Predicated region
        $region29: #{tpu_custom_call.1} parent=15 // pred_check
          %p460 = pneg %p141
        $region30: #{tpu_custom_call.1} parent=15 // pred_check_branch
          %462 = sbr.rel (%p460) target = $region32
        $region31: #{tpu_custom_call.1} parent=15 // pred_region
          %p463 = scmp.lt.s32.totalorder %s39, 1
          %s464 = scalar_select %p463, %s39, 1
          %s465 = smul.addr %s464, 4
          %s466 = smul.addr %s465, 4
          %s467 = scalar_lea.vmem %s3, %s466
        $region32: #{tpu_custom_call.1} parent=15 // pred_fallthru
          _
        // Predicated region
        $region33: #{tpu_custom_call.1} parent=15 // pred_check
          %p468 = pneg %p167
        $region34: #{tpu_custom_call.1} parent=15 // pred_check_branch
          %470 = sbr.rel (%p468) target = $region36
        $region35: #{tpu_custom_call.1} parent=15 // pred_region
          %p471 = scmp.lt.s32.totalorder %s39, 1
          %s472 = scalar_select %p471, %s39, 1
          %s473 = smul.addr %s472, 4
          %s474 = smul.addr %s473, 4
          %s475 = scalar_lea.vmem %s4, %s474
        $region36: #{tpu_custom_call.1} parent=15 // pred_fallthru
          _
        // Predicated region
        $region37: #{tpu_custom_call.1} parent=15 // pred_check
          %p476 = pneg %p193
        $region38: #{tpu_custom_call.1} parent=15 // pred_check_branch
          %478 = sbr.rel (%p476) target = $region40
        $region39: #{tpu_custom_call.1} parent=15 // pred_region
          %p479 = scmp.lt.s32.totalorder %s39, 1
          %s480 = scalar_select %p479, %s39, 1
          %s481 = smul.addr %s480, 4
          %s482 = smul.addr %s481, 4
          %s483 = scalar_lea.vmem %s5, %s482
        $region40: #{tpu_custom_call.1} parent=15 // pred_fallthru
          _
        // Predicated region
        $region41: #{tpu_custom_call.1} parent=15 // pred_check
          %p484 = pneg %p219
        $region42: #{tpu_custom_call.1} parent=15 // pred_check_branch
          %486 = sbr.rel (%p484) target = $region44
        $region43: #{tpu_custom_call.1} parent=15 // pred_region
          %p487 = scmp.lt.s32.totalorder %s39, 1
          %s488 = scalar_select %p487, %s39, 1
          %s489 = smul.addr %s488, 4
          %s490 = smul.addr %s489, 4
          %s491 = scalar_lea.vmem %s6, %s490
        $region44: #{tpu_custom_call.1} parent=15 // pred_fallthru
          _
        // Predicated region
        $region45: #{tpu_custom_call.1} parent=15 // pred_check
          %p492 = pneg %p245
        $region46: #{tpu_custom_call.1} parent=15 // pred_check_branch
          %494 = sbr.rel (%p492) target = $region48
        $region47: #{tpu_custom_call.1} parent=15 // pred_region
          %s495 = sand.u32 %s31, 1
          %s496 = scalar_lea.sflag [#allocation8], %s495
          %s497 = sand.u32 %s235, 1
          %s498 = smul.addr %s497, 16
          %s499 = scalar_lea.vmem [#allocation7], %s498
          %s501 = ssub.s32 256, 256
          %502 = vsyncadd %s496, %s501
          %s503 = smul.addr %s39, 4
          %s504 = smul.addr %s503, 64
          %s505 = scalar_lea.hbm %s7, %s504
          %s506 = sshll.u32 %s499, 4
          %s507 = int_to_ptr.vmem [resolvable:$true] %s506
          %512 = dma.hbm_to_vmem [thread:$0]  %s505, 256, %s507, %s496, 64, 64, 4
        $region48: #{tpu_custom_call.1} parent=15 // pred_fallthru
          _
        // Predicated region
        $region49: #{tpu_custom_call.1} parent=15 // pred_check
          %p513 = pneg %p271
        $region50: #{tpu_custom_call.1} parent=15 // pred_check_branch
          %515 = sbr.rel (%p513) target = $region52
        $region51: #{tpu_custom_call.1} parent=15 // pred_region
          %s516 = sand.u32 %s31, 1
          %s517 = scalar_lea.sflag [#allocation8], %s516
          %s518 = sand.u32 %s261, 1
          %s519 = smul.addr %s518, 16
          %s520 = scalar_lea.vmem [#allocation9], %s519
          %s522 = ssub.s32 256, 256
          %523 = vsyncadd %s517, %s522
          %s524 = smul.addr %s39, 4
          %s525 = smul.addr %s524, 64
          %s526 = scalar_lea.hbm %s8, %s525
          %s527 = sshll.u32 %s520, 4
          %s528 = int_to_ptr.vmem [resolvable:$true] %s527
          %533 = dma.hbm_to_vmem [thread:$0]  %s526, 256, %s528, %s517, 64, 64, 4
        $region52: #{tpu_custom_call.1} parent=15 // pred_fallthru
          _
        // Predicated region
        $region53: #{tpu_custom_call.1} parent=15 // pred_check
          %p534 = pneg %p297
        $region54: #{tpu_custom_call.1} parent=15 // pred_check_branch
          %536 = sbr.rel (%p534) target = $region56
        $region55: #{tpu_custom_call.1} parent=15 // pred_region
          %p537 = scmp.lt.s32.totalorder %s39, 1
          %s538 = scalar_select %p537, %s39, 1
          %s539 = smul.addr %s538, 2
          %s540 = smul.addr %s539, 8
          %s541 = scalar_lea.vmem %s9, %s540
        $region56: #{tpu_custom_call.1} parent=15 // pred_fallthru
          _
        // Predicated region
        $region57: #{tpu_custom_call.1} parent=15 // pred_check
          %p542 = pneg %p323
        $region58: #{tpu_custom_call.1} parent=15 // pred_check_branch
          %544 = sbr.rel (%p542) target = $region60
        $region59: #{tpu_custom_call.1} parent=15 // pred_region
          %s545 = sand.u32 %s313, 1
          %s546 = scalar_lea.sflag [#allocation11], %s545
          %s547 = sand.u32 %s313, 1
          %s548 = smul.addr %s547, 16
          %s549 = scalar_lea.vmem [#allocation10], %s548
          %s551 = ssub.s32 256, 256
          %552 = vsyncadd %s546, %s551
          %s553 = smul.addr %s39, 4
          %s554 = smul.addr %s553, 64
          %s555 = scalar_lea.hbm %s10, %s554
          %s556 = sshll.u32 %s549, 4
          %s557 = int_to_ptr.vmem [resolvable:$true] %s556
          %562 = dma.hbm_to_vmem [thread:$0]  %s555, 256, %s557, %s546, 64, 64, 4
        $region60: #{tpu_custom_call.1} parent=15 // pred_fallthru
          _
        // Predicated region
        $region61: #{tpu_custom_call.1} parent=15 // pred_check
          %p563 = pneg %p349
        $region62: #{tpu_custom_call.1} parent=15 // pred_check_branch
          %565 = sbr.rel (%p563) target = $region64
        $region63: #{tpu_custom_call.1} parent=15 // pred_region
          %p566 = scmp.lt.s32.totalorder %s39, 1
          %s567 = scalar_select %p566, %s39, 1
          %s568 = scalar_lea.vmem %s11, %s567
        $region64: #{tpu_custom_call.1} parent=15 // pred_fallthru
          _
        // Predicated region
        $region65: #{tpu_custom_call.1} parent=15 // pred_check
          %p569 = pneg %p375
        $region66: #{tpu_custom_call.1} parent=15 // pred_check_branch
          %571 = sbr.rel (%p569) target = $region68
        $region67: #{tpu_custom_call.1} parent=15 // pred_region
          %p572 = scmp.lt.s32.totalorder %s39, 1
          %s573 = scalar_select %p572, %s39, 1
          %s574 = smul.addr %s573, 16
          %s575 = smul.addr %s574, 4
          %s576 = scalar_lea.vmem %s12, %s575
        $region68: #{tpu_custom_call.1} parent=15 // pred_fallthru
          _
      $region16: #{tpu_custom_call.1} parent=5 // pred_fallthru
        _
      %p577 = scmp.le.s32.totalorder 1, %s31
      %p578 = scmp.lt.s32.totalorder %s31, 5
      %p579 = pnand %p577, %p578
      %p580 = pneg %p579
      // Predicated region
      $region69: #{tpu_custom_call.1} parent=5 // pred_check
        _
      $region70: #{tpu_custom_call.1} parent=5 // pred_check_branch
        %582 = sbr.rel (%p579) target = $region72
      $region71: #{tpu_custom_call.1} parent=5 // pred_region
        %s583 = ssub.s32 %s31, 1
        %s584 = sand.u32 %s56, 1
        %s585 = scalar_lea.sflag [#allocation5], %s584
        %s586 = sand.u32 %s56, 1
        %s587 = smul.addr %s586, 4
        %s588 = scalar_lea.vmem [#allocation4], %s587
        // Predicated region
        $region73: #{tpu_custom_call.1} parent=71 // pred_check
          %p589 = pneg %p69
        $region74: #{tpu_custom_call.1} parent=71 // pred_check_branch
          %591 = sbr.rel (%p589) target = $region76
        $region75: #{tpu_custom_call.1} parent=71 // pred_region
          %592 = dma.done %s585, 64
        $region76: #{tpu_custom_call.1} parent=71 // pred_fallthru
          _
        %s593 = sand.u32 %s36, 1
        %s594 = scalar_lea.sflag [#allocation8], %s593
        %s595 = sand.u32 %s238, 1
        %s596 = smul.addr %s595, 16
        %s597 = scalar_lea.vmem [#allocation7], %s596
        // Predicated region
        $region77: #{tpu_custom_call.1} parent=71 // pred_check
          %p598 = pneg %p251
        $region78: #{tpu_custom_call.1} parent=71 // pred_check_branch
          %600 = sbr.rel (%p598) target = $region80
        $region79: #{tpu_custom_call.1} parent=71 // pred_region
          %601 = dma.done %s594, 256
        $region80: #{tpu_custom_call.1} parent=71 // pred_fallthru
          _
        %s602 = sand.u32 %s36, 1
        %s603 = scalar_lea.sflag [#allocation8], %s602
        %s604 = sand.u32 %s264, 1
        %s605 = smul.addr %s604, 16
        %s606 = scalar_lea.vmem [#allocation9], %s605
        // Predicated region
        $region81: #{tpu_custom_call.1} parent=71 // pred_check
          %p607 = pneg %p277
        $region82: #{tpu_custom_call.1} parent=71 // pred_check_branch
          %609 = sbr.rel (%p607) target = $region84
        $region83: #{tpu_custom_call.1} parent=71 // pred_region
          %610 = dma.done %s603, 256
        $region84: #{tpu_custom_call.1} parent=71 // pred_fallthru
          _
        %s611 = sand.u32 %s316, 1
        %s612 = scalar_lea.sflag [#allocation11], %s611
        %s613 = sand.u32 %s316, 1
        %s614 = smul.addr %s613, 16
        %s615 = scalar_lea.vmem [#allocation10], %s614
        // Predicated region
        $region85: #{tpu_custom_call.1} parent=71 // pred_check
          %p616 = pneg %p329
        $region86: #{tpu_custom_call.1} parent=71 // pred_check_branch
          %618 = sbr.rel (%p616) target = $region88
        $region87: #{tpu_custom_call.1} parent=71 // pred_region
          %619 = dma.done %s612, 256
        $region88: #{tpu_custom_call.1} parent=71 // pred_fallthru
          _
        %s620 = sand.u32 %s56, 1
        %s621 = scalar_lea.sflag [#allocation5], %s620
        %s622 = sand.u32 %s56, 1
        %s623 = smul.addr %s622, 4
        %s624 = scalar_lea.vmem [#allocation4], %s623
        %p625 = pneg %p69
        %p626 = pneg %p66
        %p627 = scmp.lt.s32.totalorder %s41, 1
        %s628 = scalar_select %p627, %s41, 1
        %s629 = smul.addr %s628, 4
        %s630 = smul.addr %s629, 4
        %s631 = scalar_lea.vmem %s1, %s630
        %p632 = pneg %p95
        %p633 = pneg %p92
        %p634 = scmp.lt.s32.totalorder %s41, 1
        %s635 = scalar_select %p634, %s41, 1
        %s636 = smul.addr %s635, 4
        %s637 = smul.addr %s636, 4
        %s638 = scalar_lea.vmem %s2, %s637
        %p639 = pneg %p121
        %p640 = pneg %p118
        %p641 = scmp.lt.s32.totalorder %s41, 1
        %s642 = scalar_select %p641, %s41, 1
        %s643 = smul.addr %s642, 4
        %s644 = smul.addr %s643, 4
        %s645 = scalar_lea.vmem %s3, %s644
        %p646 = pneg %p147
        %p647 = pneg %p144
        %p648 = scmp.lt.s32.totalorder %s41, 1
        %s649 = scalar_select %p648, %s41, 1
        %s650 = smul.addr %s649, 4
        %s651 = smul.addr %s650, 4
        %s652 = scalar_lea.vmem %s4, %s651
        %p653 = pneg %p173
        %p654 = pneg %p170
        %p655 = scmp.lt.s32.totalorder %s41, 1
        %s656 = scalar_select %p655, %s41, 1
        %s657 = smul.addr %s656, 4
        %s658 = smul.addr %s657, 4
        %s659 = scalar_lea.vmem %s5, %s658
        %p660 = pneg %p199
        %p661 = pneg %p196
        %p662 = scmp.lt.s32.totalorder %s41, 1
        %s663 = scalar_select %p662, %s41, 1
        %s664 = smul.addr %s663, 4
        %s665 = smul.addr %s664, 4
        %s666 = scalar_lea.vmem %s6, %s665
        %p667 = pneg %p225
        %p668 = pneg %p222
        %s669 = sand.u32 %s36, 1
        %s670 = scalar_lea.sflag [#allocation8], %s669
        %s671 = sand.u32 %s238, 1
        %s672 = smul.addr %s671, 16
        %s673 = scalar_lea.vmem [#allocation7], %s672
        %p674 = pneg %p251
        %p675 = pneg %p248
        %s676 = sand.u32 %s36, 1
        %s677 = scalar_lea.sflag [#allocation8], %s676
        %s678 = sand.u32 %s264, 1
        %s679 = smul.addr %s678, 16
        %s680 = scalar_lea.vmem [#allocation9], %s679
        %p681 = pneg %p277
        %p682 = pneg %p274
        %p683 = scmp.lt.s32.totalorder %s41, 1
        %s684 = scalar_select %p683, %s41, 1
        %s685 = smul.addr %s684, 2
        %s686 = smul.addr %s685, 8
        %s687 = scalar_lea.vmem %s9, %s686
        %p688 = pneg %p303
        %p689 = pneg %p300
        %s690 = sand.u32 %s316, 1
        %s691 = scalar_lea.sflag [#allocation11], %s690
        %s692 = sand.u32 %s316, 1
        %s693 = smul.addr %s692, 16
        %s694 = scalar_lea.vmem [#allocation10], %s693
        %p695 = pneg %p329
        %p696 = pneg %p326
        %p697 = scmp.lt.s32.totalorder %s41, 1
        %s698 = scalar_select %p697, %s41, 1
        %s699 = scalar_lea.vmem %s11, %s698
        %p700 = pneg %p355
        %p701 = pneg %p352
        %p702 = scmp.lt.s32.totalorder %s41, 1
        %s703 = scalar_select %p702, %s41, 1
        %s704 = smul.addr %s703, 16
        %s705 = smul.addr %s704, 4
        %s706 = scalar_lea.vmem %s12, %s705
        %p707 = pneg %p381
        %p708 = pneg %p378
        %p709 = pneg %p407
        %p710 = pneg %p404
        %s711 = sand.u32 %s394, 1
        %s712 = scalar_lea.sflag [#allocation6], %s711
        %s713 = sand.u32 %s394, 1
        %s714 = smul.addr %s713, 4
        %s715 = scalar_lea.vmem [#allocation12], %s714
        %p716 = scmp.lt.s32.totalorder %s41, 1
        %s717 = scalar_select %p716, %s41, 1
        %s718 = smul.addr %s717, 4
        %s719 = smul.addr %s718, 4
        %s720 = scalar_lea.vmem %s1, %s719
        %p721 = scmp.lt.s32.totalorder %s41, 1
        %s722 = scalar_select %p721, %s41, 1
        %s723 = smul.addr %s722, 4
        %s724 = smul.addr %s723, 4
        %s725 = scalar_lea.vmem %s2, %s724
        %p726 = scmp.lt.s32.totalorder %s41, 1
        %s727 = scalar_select %p726, %s41, 1
        %s728 = smul.addr %s727, 4
        %s729 = smul.addr %s728, 4
        %s730 = scalar_lea.vmem %s3, %s729
        %p731 = scmp.lt.s32.totalorder %s41, 1
        %s732 = scalar_select %p731, %s41, 1
        %s733 = smul.addr %s732, 4
        %s734 = smul.addr %s733, 4
        %s735 = scalar_lea.vmem %s4, %s734
        %p736 = scmp.lt.s32.totalorder %s41, 1
        %s737 = scalar_select %p736, %s41, 1
        %s738 = smul.addr %s737, 4
        %s739 = smul.addr %s738, 4
        %s740 = scalar_lea.vmem %s5, %s739
        %p741 = scmp.lt.s32.totalorder %s41, 1
        %s742 = scalar_select %p741, %s41, 1
        %s743 = smul.addr %s742, 4
        %s744 = smul.addr %s743, 4
        %s745 = scalar_lea.vmem %s6, %s744
        %p746 = scmp.lt.s32.totalorder %s41, 1
        %s747 = scalar_select %p746, %s41, 1
        %s748 = smul.addr %s747, 2
        %s749 = smul.addr %s748, 8
        %s750 = scalar_lea.vmem %s9, %s749
        %p751 = scmp.lt.s32.totalorder %s41, 1
        %s752 = scalar_select %p751, %s41, 1
        %s753 = scalar_lea.vmem %s11, %s752
        %p754 = scmp.lt.s32.totalorder %s41, 1
        %s755 = scalar_select %p754, %s41, 1
        %s756 = smul.addr %s755, 16
        %s757 = smul.addr %s756, 4
        %s758 = scalar_lea.vmem %s12, %s757
        %p760 = scmp.eq.s32.totalorder %s41, 0
        // Predicated region
        $region89: #{tpu_custom_call.1} parent=71 // pred_check
          %p761 = pneg %p760
        $region90: #{tpu_custom_call.1} parent=71 // pred_check_branch
          %763 = sbr.rel (%p761) target = $region92
        $region91: #{tpu_custom_call.1} parent=71 // pred_region
          %v764 = vld [vmem:[%s588] sm:$0xf]
          %v765 = vunpack.c.l.bf16 %v764
          %vm766 = vcmask 261120
          %767 = vst.msk [vmem:[#allocation2] sm:$0xff] %vm766, %v765
          %v768 = vlaneseq
          %v769 = vshrl.u32 %v768, 7
          %v770 = vlaneseq
          %v771 = vand.u32 %v770, 127
          %vm772 = vcmp.gt.s32.totalorder %v771, %v769
          %v773 = vsel %vm772, -1e+30, 0.0
          %vm774 = vcmask 64512
          %775 = vst.msk [vmem:[#allocation3] sm:$0xff] %vm774, %v773
        $region92: #{tpu_custom_call.1} parent=71 // pred_fallthru
          _
        %v776 = vld [vmem:[#allocation2] sm:$0xff]
        %v777 = vld [vmem:[%s588] sm:$0xf]
        %v778 = vld [vmem:[#allocation3] sm:$0xff]
        %v779 = vld [vmem:[%s720] sm:$0xf]
        %v780 = vld [vmem:[%s720 + $0x4] sm:$0xf]
        %v781 = vld [vmem:[%s720 + $0x8] sm:$0xf]
        %v782 = vld [vmem:[%s720 + $0xc] sm:$0xf]
        %v783 = vld [vmem:[%s725] sm:$0xf]
        %v784 = vld [vmem:[%s725 + $0x4] sm:$0xf]
        %v785 = vld [vmem:[%s725 + $0x8] sm:$0xf]
        %v786 = vld [vmem:[%s725 + $0xc] sm:$0xf]
        %v787 = vld [vmem:[%s730] sm:$0xf]
        %v788 = vld [vmem:[%s730 + $0x4] sm:$0xf]
        %v789 = vld [vmem:[%s730 + $0x8] sm:$0xf]
        %v790 = vld [vmem:[%s730 + $0xc] sm:$0xf]
        %v791 = vld [vmem:[%s735] sm:$0xf]
        %v792 = vld [vmem:[%s735 + $0x4] sm:$0xf]
        %v793 = vld [vmem:[%s735 + $0x8] sm:$0xf]
        %v794 = vld [vmem:[%s735 + $0xc] sm:$0xf]
        %v795 = vld [vmem:[%s750] sm:$0x1]
        %v796 = vpack.c.bf16 %v776, %v776
        %v801 = vunpack.c.l.b16 %v779
        %v802 = vunpack.c.l.b16 %v780
        %v803 = vunpack.c.l.b16 %v781
        %v804 = vunpack.c.l.b16 %v782
        %v805 = vpack.c.b16 %v802, %v801
        %v806 = vpack.c.b16 %v804, %v803
        %vm809 = vcmask 261120
        %v811 = vsel %vm809, %v796, 0
        %813 = vmatprep.subr.bf16.mxu0 0
        %814 = vmatpush1.bf16.msra.mxu0 0
        %815 = vmatprep.subr.bf16.mxu0 0
        %816 = vmatpush1.bf16.msra.mxu0 0
        %817 = vmatprep.subr.bf16.mxu0 0
        %818 = vmatpush1.bf16.msra.mxu0 0
        %819 = vmatprep.subr.bf16.mxu0 0
        %820 = vmatpush1.bf16.msra.mxu0 0
        %821 = vmatprep.subr.bf16.mxu0 0
        %822 = vmatpush1.bf16.msra.mxu0 0
        %823 = vmatprep.subr.bf16.mxu0 0
        %824 = vmatpush1.bf16.msra.mxu0 0
        %825 = vmatprep.subr.bf16.mxu0 0
        %826 = vmatpush1.bf16.msra.mxu0 %v806
        %827 = vmatprep.subr.bf16.mxu0 0
        %828 = vmatpush1.bf16.msra.mxu0 %v805
        %829 = vmatprep.subr.bf16.mxu0 0
        %830 = vmatpush2.bf16.msra.mxu0 0
        %831 = vmatprep.subr.bf16.mxu0 0
        %832 = vmatpush2.bf16.msra.mxu0 0
        %833 = vmatprep.subr.bf16.mxu0 0
        %834 = vmatpush2.bf16.msra.mxu0 0
        %835 = vmatprep.subr.bf16.mxu0 0
        %836 = vmatpush2.bf16.msra.mxu0 0
        %837 = vmatprep.subr.bf16.mxu0 0
        %838 = vmatpush2.bf16.msra.mxu0 0
        %839 = vmatprep.subr.bf16.mxu0 0
        %840 = vmatpush2.bf16.msra.mxu0 0
        %841 = vmatprep.subr.bf16.mxu0 0
        %842 = vmatpush2.bf16.msra.mxu0 0
        %843 = vmatprep.subr.bf16.mxu0 0
        %844 = vmatpush2.bf16.msra.mxu0 0
        %845 = vmatprep.mubr.bf16.mxu0 0
        %846 = vmatmul.mubr.bf16.gmra.mxu0 %v811
        %v847 = vpop.f32.mrf.mxu0
        %v848 = vadd.f32 0.0, %v847
        %v849 = vpop.f32.mrf.mxu0
        %v850 = vpop.f32.mrf.mxu0
        %v851 = vpop.f32.mrf.mxu0
        %852 = vdwg.mxu0
        %v857 = vunpack.c.l.b16 %v783
        %v858 = vunpack.c.l.b16 %v784
        %v859 = vunpack.c.l.b16 %v785
        %v860 = vunpack.c.l.b16 %v786
        %v861 = vpack.c.b16 %v858, %v857
        %v862 = vpack.c.b16 %v860, %v859
        %865 = vmatprep.subr.bf16.mxu0 0
        %866 = vmatpush1.bf16.msra.mxu0 0
        %867 = vmatprep.subr.bf16.mxu0 0
        %868 = vmatpush1.bf16.msra.mxu0 0
        %869 = vmatprep.subr.bf16.mxu0 0
        %870 = vmatpush1.bf16.msra.mxu0 0
        %871 = vmatprep.subr.bf16.mxu0 0
        %872 = vmatpush1.bf16.msra.mxu0 0
        %873 = vmatprep.subr.bf16.mxu0 0
        %874 = vmatpush1.bf16.msra.mxu0 0
        %875 = vmatprep.subr.bf16.mxu0 0
        %876 = vmatpush1.bf16.msra.mxu0 0
        %877 = vmatprep.subr.bf16.mxu0 0
        %878 = vmatpush1.bf16.msra.mxu0 %v862
        %879 = vmatprep.subr.bf16.mxu0 0
        %880 = vmatpush1.bf16.msra.mxu0 %v861
        %881 = vmatprep.subr.bf16.mxu0 0
        %882 = vmatpush2.bf16.msra.mxu0 0
        %883 = vmatprep.subr.bf16.mxu0 0
        %884 = vmatpush2.bf16.msra.mxu0 0
        %885 = vmatprep.subr.bf16.mxu0 0
        %886 = vmatpush2.bf16.msra.mxu0 0
        %887 = vmatprep.subr.bf16.mxu0 0
        %888 = vmatpush2.bf16.msra.mxu0 0
        %889 = vmatprep.subr.bf16.mxu0 0
        %890 = vmatpush2.bf16.msra.mxu0 0
        %891 = vmatprep.subr.bf16.mxu0 0
        %892 = vmatpush2.bf16.msra.mxu0 0
        %893 = vmatprep.subr.bf16.mxu0 0
        %894 = vmatpush2.bf16.msra.mxu0 0
        %895 = vmatprep.subr.bf16.mxu0 0
        %896 = vmatpush2.bf16.msra.mxu0 0
        %897 = vmatprep.mubr.bf16.mxu0 0
        %898 = vmatmul.mubr.bf16.gmra.mxu0 %v811
        %v899 = vpop.f32.mrf.mxu0
        %v900 = vadd.f32 0.0, %v899
        %v901 = vpop.f32.mrf.mxu0
        %v902 = vpop.f32.mrf.mxu0
        %v903 = vpop.f32.mrf.mxu0
        %904 = vdwg.mxu0
        %v909 = vunpack.c.l.b16 %v787
        %v910 = vunpack.c.l.b16 %v788
        %v911 = vunpack.c.l.b16 %v789
        %v912 = vunpack.c.l.b16 %v790
        %v913 = vpack.c.b16 %v910, %v909
        %v914 = vpack.c.b16 %v912, %v911
        %917 = vmatprep.subr.bf16.mxu0 0
        %918 = vmatpush1.bf16.msra.mxu0 0
        %919 = vmatprep.subr.bf16.mxu0 0
        %920 = vmatpush1.bf16.msra.mxu0 0
        %921 = vmatprep.subr.bf16.mxu0 0
        %922 = vmatpush1.bf16.msra.mxu0 0
        %923 = vmatprep.subr.bf16.mxu0 0
        %924 = vmatpush1.bf16.msra.mxu0 0
        %925 = vmatprep.subr.bf16.mxu0 0
        %926 = vmatpush1.bf16.msra.mxu0 0
        %927 = vmatprep.subr.bf16.mxu0 0
        %928 = vmatpush1.bf16.msra.mxu0 0
        %929 = vmatprep.subr.bf16.mxu0 0
        %930 = vmatpush1.bf16.msra.mxu0 %v914
        %931 = vmatprep.subr.bf16.mxu0 0
        %932 = vmatpush1.bf16.msra.mxu0 %v913
        %933 = vmatprep.subr.bf16.mxu0 0
        %934 = vmatpush2.bf16.msra.mxu0 0
        %935 = vmatprep.subr.bf16.mxu0 0
        %936 = vmatpush2.bf16.msra.mxu0 0
        %937 = vmatprep.subr.bf16.mxu0 0
        %938 = vmatpush2.bf16.msra.mxu0 0
        %939 = vmatprep.subr.bf16.mxu0 0
        %940 = vmatpush2.bf16.msra.mxu0 0
        %941 = vmatprep.subr.bf16.mxu0 0
        %942 = vmatpush2.bf16.msra.mxu0 0
        %943 = vmatprep.subr.bf16.mxu0 0
        %944 = vmatpush2.bf16.msra.mxu0 0
        %945 = vmatprep.subr.bf16.mxu0 0
        %946 = vmatpush2.bf16.msra.mxu0 0
        %947 = vmatprep.subr.bf16.mxu0 0
        %948 = vmatpush2.bf16.msra.mxu0 0
        %949 = vmatprep.mubr.bf16.mxu0 0
        %950 = vmatmul.mubr.bf16.gmra.mxu0 %v811
        %v951 = vpop.f32.mrf.mxu0
        %v952 = vadd.f32 0.0, %v951
        %v953 = vpop.f32.mrf.mxu0
        %v954 = vpop.f32.mrf.mxu0
        %v955 = vpop.f32.mrf.mxu0
        %956 = vdwg.mxu0
        %v957 = vpack.c.bf16 %v848, %v848
        %v958 = vpack.c.bf16 %v900, %v900
        %v959 = vpack.c.bf16 %v952, %v952
        %vm960 = vcmask 64512
        %v962 = vsel %vm960, %v957, 0
        %v965 = vsel %vm960, %v958, 0
        %967 = vmatprep.subr.bf16.mxu0 0
        %968 = vmatpush1.bf16.xpose.msra.mxu0 0
        %969 = vmatprep.subr.bf16.mxu0 0
        %970 = vmatpush1.bf16.xpose.msra.mxu0 0
        %971 = vmatprep.subr.bf16.mxu0 0
        %972 = vmatpush1.bf16.xpose.msra.mxu0 0
        %973 = vmatprep.subr.bf16.mxu0 0
        %974 = vmatpush1.bf16.xpose.msra.mxu0 0
        %975 = vmatprep.subr.bf16.mxu0 0
        %976 = vmatpush1.bf16.xpose.msra.mxu0 0
        %977 = vmatprep.subr.bf16.mxu0 0
        %978 = vmatpush1.bf16.xpose.msra.mxu0 0
        %979 = vmatprep.subr.bf16.mxu0 0
        %980 = vmatpush1.bf16.xpose.msra.mxu0 0
        %981 = vmatprep.subr.bf16.mxu0 0
        %982 = vmatpush1.bf16.xpose.msra.mxu0 %v965
        %983 = vmatprep.subr.bf16.mxu0 0
        %984 = vmatpush2.bf16.xpose.msra.mxu0 0
        %985 = vmatprep.subr.bf16.mxu0 0
        %986 = vmatpush2.bf16.xpose.msra.mxu0 0
        %987 = vmatprep.subr.bf16.mxu0 0
        %988 = vmatpush2.bf16.xpose.msra.mxu0 0
        %989 = vmatprep.subr.bf16.mxu0 0
        %990 = vmatpush2.bf16.xpose.msra.mxu0 0
        %991 = vmatprep.subr.bf16.mxu0 0
        %992 = vmatpush2.bf16.xpose.msra.mxu0 0
        %993 = vmatprep.subr.bf16.mxu0 0
        %994 = vmatpush2.bf16.xpose.msra.mxu0 0
        %995 = vmatprep.subr.bf16.mxu0 0
        %996 = vmatpush2.bf16.xpose.msra.mxu0 0
        %997 = vmatprep.subr.bf16.mxu0 0
        %998 = vmatpush2.bf16.xpose.msra.mxu0 0
        %999 = vmatprep.mubr.bf16.mxu0 0
        %1000 = vmatmul.mubr.bf16.gmra.mxu0 %v962
        %v1001 = vpop.f32.mrf.mxu0
        %v1002 = vadd.f32 0.0, %v1001
        %v1003 = vpop.f32.mrf.mxu0
        %v1004 = vpop.f32.mrf.mxu0
        %v1005 = vpop.f32.mrf.mxu0
        %1006 = vdwg.mxu0
        %1008 = vrot.lane.b32.xlu0 %v957, 120
        %v1009 = vpop.permute.xlu0 %1008
        %1011 = vrot.lane.b32.xlu0 %v958, 120
        %v1012 = vpop.permute.xlu0 %1011
        %v1014 = vsel %vm960, %v1009, 0
        %v1017 = vsel %vm960, %v1012, 0
        %1019 = vmatprep.subr.bf16.mxu0 0
        %1020 = vmatpush1.bf16.xpose.msra.mxu0 0
        %1021 = vmatprep.subr.bf16.mxu0 0
        %1022 = vmatpush1.bf16.xpose.msra.mxu0 0
        %1023 = vmatprep.subr.bf16.mxu0 0
        %1024 = vmatpush1.bf16.xpose.msra.mxu0 0
        %1025 = vmatprep.subr.bf16.mxu0 0
        %1026 = vmatpush1.bf16.xpose.msra.mxu0 0
        %1027 = vmatprep.subr.bf16.mxu0 0
        %1028 = vmatpush1.bf16.xpose.msra.mxu0 0
        %1029 = vmatprep.subr.bf16.mxu0 0
        %1030 = vmatpush1.bf16.xpose.msra.mxu0 0
        %1031 = vmatprep.subr.bf16.mxu0 0
        %1032 = vmatpush1.bf16.xpose.msra.mxu0 0
        %1033 = vmatprep.subr.bf16.mxu0 0
        %1034 = vmatpush1.bf16.xpose.msra.mxu0 %v1017
        %1035 = vmatprep.subr.bf16.mxu0 0
        %1036 = vmatpush2.bf16.xpose.msra.mxu0 0
        %1037 = vmatprep.subr.bf16.mxu0 0
        %1038 = vmatpush2.bf16.xpose.msra.mxu0 0
        %1039 = vmatprep.subr.bf16.mxu0 0
        %1040 = vmatpush2.bf16.xpose.msra.mxu0 0
        %1041 = vmatprep.subr.bf16.mxu0 0
        %1042 = vmatpush2.bf16.xpose.msra.mxu0 0
        %1043 = vmatprep.subr.bf16.mxu0 0
        %1044 = vmatpush2.bf16.xpose.msra.mxu0 0
        %1045 = vmatprep.subr.bf16.mxu0 0
        %1046 = vmatpush2.bf16.xpose.msra.mxu0 0
        %1047 = vmatprep.subr.bf16.mxu0 0
        %1048 = vmatpush2.bf16.xpose.msra.mxu0 0
        %1049 = vmatprep.subr.bf16.mxu0 0
        %1050 = vmatpush2.bf16.xpose.msra.mxu0 0
        %1051 = vmatprep.mubr.bf16.mxu0 0
        %1052 = vmatmul.mubr.bf16.gmra.mxu0 %v1014
        %v1053 = vpop.f32.mrf.mxu0
        %v1054 = vadd.f32 0.0, %v1053
        %v1055 = vpop.f32.mrf.mxu0
        %v1056 = vpop.f32.mrf.mxu0
        %v1057 = vpop.f32.mrf.mxu0
        %1058 = vdwg.mxu0
        %1059 = vrot.lane.b32.xlu0 %v957, 112
        %v1060 = vpop.permute.xlu0 %1059
        %1061 = vrot.lane.b32.xlu0 %v958, 112
        %v1062 = vpop.permute.xlu0 %1061
        %v1064 = vsel %vm960, %v1060, 0
        %v1067 = vsel %vm960, %v1062, 0
        %1069 = vmatprep.subr.bf16.mxu0 0
        %1070 = vmatpush1.bf16.xpose.msra.mxu0 0
        %1071 = vmatprep.subr.bf16.mxu0 0
        %1072 = vmatpush1.bf16.xpose.msra.mxu0 0
        %1073 = vmatprep.subr.bf16.mxu0 0
        %1074 = vmatpush1.bf16.xpose.msra.mxu0 0
        %1075 = vmatprep.subr.bf16.mxu0 0
        %1076 = vmatpush1.bf16.xpose.msra.mxu0 0
        %1077 = vmatprep.subr.bf16.mxu0 0
        %1078 = vmatpush1.bf16.xpose.msra.mxu0 0
        %1079 = vmatprep.subr.bf16.mxu0 0
        %1080 = vmatpush1.bf16.xpose.msra.mxu0 0
        %1081 = vmatprep.subr.bf16.mxu0 0
        %1082 = vmatpush1.bf16.xpose.msra.mxu0 0
        %1083 = vmatprep.subr.bf16.mxu0 0
        %1084 = vmatpush1.bf16.xpose.msra.mxu0 %v1067
        %1085 = vmatprep.subr.bf16.mxu0 0
        %1086 = vmatpush2.bf16.xpose.msra.mxu0 0
        %1087 = vmatprep.subr.bf16.mxu0 0
        %1088 = vmatpush2.bf16.xpose.msra.mxu0 0
        %1089 = vmatprep.subr.bf16.mxu0 0
        %1090 = vmatpush2.bf16.xpose.msra.mxu0 0
        %1091 = vmatprep.subr.bf16.mxu0 0
        %1092 = vmatpush2.bf16.xpose.msra.mxu0 0
        %1093 = vmatprep.subr.bf16.mxu0 0
        %1094 = vmatpush2.bf16.xpose.msra.mxu0 0
        %1095 = vmatprep.subr.bf16.mxu0 0
        %1096 = vmatpush2.bf16.xpose.msra.mxu0 0
        %1097 = vmatprep.subr.bf16.mxu0 0
        %1098 = vmatpush2.bf16.xpose.msra.mxu0 0
        %1099 = vmatprep.subr.bf16.mxu0 0
        %1100 = vmatpush2.bf16.xpose.msra.mxu0 0
        %1101 = vmatprep.mubr.bf16.mxu0 0
        %1102 = vmatmul.mubr.bf16.gmra.mxu0 %v1064
        %v1103 = vpop.f32.mrf.mxu0
        %v1104 = vadd.f32 0.0, %v1103
        %v1105 = vpop.f32.mrf.mxu0
        %v1106 = vpop.f32.mrf.mxu0
        %v1107 = vpop.f32.mrf.mxu0
        %1108 = vdwg.mxu0
        %1109 = vrot.lane.b32.xlu0 %v957, 104
        %v1110 = vpop.permute.xlu0 %1109
        %1111 = vrot.lane.b32.xlu0 %v958, 104
        %v1112 = vpop.permute.xlu0 %1111
        %v1114 = vsel %vm960, %v1110, 0
        %v1117 = vsel %vm960, %v1112, 0
        %1119 = vmatprep.subr.bf16.mxu0 0
        %1120 = vmatpush1.bf16.xpose.msra.mxu0 0
        %1121 = vmatprep.subr.bf16.mxu0 0
        %1122 = vmatpush1.bf16.xpose.msra.mxu0 0
        %1123 = vmatprep.subr.bf16.mxu0 0
        %1124 = vmatpush1.bf16.xpose.msra.mxu0 0
        %1125 = vmatprep.subr.bf16.mxu0 0
        %1126 = vmatpush1.bf16.xpose.msra.mxu0 0
        %1127 = vmatprep.subr.bf16.mxu0 0
        %1128 = vmatpush1.bf16.xpose.msra.mxu0 0
        %1129 = vmatprep.subr.bf16.mxu0 0
        %1130 = vmatpush1.bf16.xpose.msra.mxu0 0
        %1131 = vmatprep.subr.bf16.mxu0 0
        %1132 = vmatpush1.bf16.xpose.msra.mxu0 0
        %1133 = vmatprep.subr.bf16.mxu0 0
        %1134 = vmatpush1.bf16.xpose.msra.mxu0 %v1117
        %1135 = vmatprep.subr.bf16.mxu0 0
        %1136 = vmatpush2.bf16.xpose.msra.mxu0 0
        %1137 = vmatprep.subr.bf16.mxu0 0
        %1138 = vmatpush2.bf16.xpose.msra.mxu0 0
        %1139 = vmatprep.subr.bf16.mxu0 0
        %1140 = vmatpush2.bf16.xpose.msra.mxu0 0
        %1141 = vmatprep.subr.bf16.mxu0 0
        %1142 = vmatpush2.bf16.xpose.msra.mxu0 0
        %1143 = vmatprep.subr.bf16.mxu0 0
        %1144 = vmatpush2.bf16.xpose.msra.mxu0 0
        %1145 = vmatprep.subr.bf16.mxu0 0
        %1146 = vmatpush2.bf16.xpose.msra.mxu0 0
        %1147 = vmatprep.subr.bf16.mxu0 0
        %1148 = vmatpush2.bf16.xpose.msra.mxu0 0
        %1149 = vmatprep.subr.bf16.mxu0 0
        %1150 = vmatpush2.bf16.xpose.msra.mxu0 0
        %1151 = vmatprep.mubr.bf16.mxu0 0
        %1152 = vmatmul.mubr.bf16.gmra.mxu0 %v1114
        %v1153 = vpop.f32.mrf.mxu0
        %v1154 = vadd.f32 0.0, %v1153
        %v1155 = vpop.f32.mrf.mxu0
        %v1156 = vpop.f32.mrf.mxu0
        %v1157 = vpop.f32.mrf.mxu0
        %1158 = vdwg.mxu0
        %v1159 = vadd.f32 %v1002, %v778
        %v1160 = vadd.f32 %v1054, %v778
        %v1161 = vadd.f32 %v1104, %v778
        %v1162 = vadd.f32 %v1154, %v778
        %v1163 = vsel %vm960, %v1159, -inf
        %1164 = vmax.xlane.f32.xlu0 %v1163
        %v1165 = vpop.xlane.xlu0 %1164
        %v1166 = vsel %vm960, %v1160, -inf
        %1167 = vmax.xlane.f32.xlu0 %v1166
        %v1168 = vpop.xlane.xlu0 %1167
        %v1169 = vsel %vm960, %v1161, -inf
        %1170 = vmax.xlane.f32.xlu0 %v1169
        %v1171 = vpop.xlane.xlu0 %1170
        %v1172 = vsel %vm960, %v1162, -inf
        %1173 = vmax.xlane.f32.xlu0 %v1172
        %v1174 = vpop.xlane.xlu0 %1173
        %v1175 = vsub.f32 %v1159, %v1165
        %v1176 = vsub.f32 %v1160, %v1168
        %v1177 = vsub.f32 %v1161, %v1171
        %v1178 = vsub.f32 %v1162, %v1174
        %v1179 = vmul.f32 %v1175, 1.442695
        %v1180 = vpow.pop %v1179
        %v1181 = vmul.f32 %v1176, 1.442695
        %v1182 = vpow.pop %v1181
        %v1183 = vmul.f32 %v1177, 1.442695
        %v1184 = vpow.pop %v1183
        %v1185 = vmul.f32 %v1178, 1.442695
        %v1186 = vpow.pop %v1185
        %v1187 = vsel %vm960, %v1180, 0.0
        %1188 = vadd.xlane.f32.xlu0 %v1187
        %v1189 = vpop.xlane.xlu0 %1188
        %v1190 = vsel %vm960, %v1182, 0.0
        %1191 = vadd.xlane.f32.xlu0 %v1190
        %v1192 = vpop.xlane.xlu0 %1191
        %v1193 = vsel %vm960, %v1184, 0.0
        %1194 = vadd.xlane.f32.xlu0 %v1193
        %v1195 = vpop.xlane.xlu0 %1194
        %v1196 = vsel %vm960, %v1186, 0.0
        %1197 = vadd.xlane.f32.xlu0 %v1196
        %v1198 = vpop.xlane.xlu0 %1197
        %v1199 = vrcp.pop %v1189
        %v1200 = vmul.f32 %v1180, %v1199
        %v1201 = vrcp.pop %v1192
        %v1202 = vmul.f32 %v1182, %v1201
        %v1203 = vrcp.pop %v1195
        %v1204 = vmul.f32 %v1184, %v1203
        %v1205 = vrcp.pop %v1198
        %v1206 = vmul.f32 %v1186, %v1205
        %v1207 = vpack.c.bf16 %v1200, %v1200
        %v1208 = vpack.c.bf16 %v1202, %v1202
        %v1209 = vpack.c.bf16 %v1204, %v1204
        %v1210 = vpack.c.bf16 %v1206, %v1206
        %v1212 = vsel %vm960, %v1207, 0
        %vm1214 = vcmask 1043456
        %v1216 = vsel %vm1214, %v959, 0
        %1218 = vmatprep.subr.bf16.mxu0 0
        %1219 = vmatpush1.bf16.msra.mxu0 0
        %1220 = vmatprep.subr.bf16.mxu0 0
        %1221 = vmatpush1.bf16.msra.mxu0 0
        %1222 = vmatprep.subr.bf16.mxu0 0
        %1223 = vmatpush1.bf16.msra.mxu0 0
        %1224 = vmatprep.subr.bf16.mxu0 0
        %1225 = vmatpush1.bf16.msra.mxu0 0
        %1226 = vmatprep.subr.bf16.mxu0 0
        %1227 = vmatpush1.bf16.msra.mxu0 0
        %1228 = vmatprep.subr.bf16.mxu0 0
        %1229 = vmatpush1.bf16.msra.mxu0 0
        %1230 = vmatprep.subr.bf16.mxu0 0
        %1231 = vmatpush1.bf16.msra.mxu0 0
        %1232 = vmatprep.subr.bf16.mxu0 0
        %1233 = vmatpush1.bf16.msra.mxu0 %v1216
        %1234 = vmatprep.subr.bf16.mxu0 0
        %1235 = vmatpush2.bf16.msra.mxu0 0
        %1236 = vmatprep.subr.bf16.mxu0 0
        %1237 = vmatpush2.bf16.msra.mxu0 0
        %1238 = vmatprep.subr.bf16.mxu0 0
        %1239 = vmatpush2.bf16.msra.mxu0 0
        %1240 = vmatprep.subr.bf16.mxu0 0
        %1241 = vmatpush2.bf16.msra.mxu0 0
        %1242 = vmatprep.subr.bf16.mxu0 0
        %1243 = vmatpush2.bf16.msra.mxu0 0
        %1244 = vmatprep.subr.bf16.mxu0 0
        %1245 = vmatpush2.bf16.msra.mxu0 0
        %1246 = vmatprep.subr.bf16.mxu0 0
        %1247 = vmatpush2.bf16.msra.mxu0 0
        %1248 = vmatprep.subr.bf16.mxu0 0
        %1249 = vmatpush2.bf16.msra.mxu0 0
        %1250 = vmatprep.mubr.bf16.mxu0 0
        %1251 = vmatmul.mubr.bf16.gmra.mxu0 %v1212
        %v1252 = vpop.f32.mrf.mxu0
        %v1253 = vadd.f32 0.0, %v1252
        %v1254 = vpop.f32.mrf.mxu0
        %v1255 = vpop.f32.mrf.mxu0
        %v1256 = vpop.f32.mrf.mxu0
        %1257 = vdwg.mxu0
        %1259 = vrot.lane.b32.xlu0 %v959, 120
        %v1260 = vpop.permute.xlu0 %1259
        %v1262 = vsel %vm960, %v1208, 0
        %v1265 = vsel %vm1214, %v1260, 0
        %1267 = vmatprep.subr.bf16.mxu0 0
        %1268 = vmatpush1.bf16.msra.mxu0 0
        %1269 = vmatprep.subr.bf16.mxu0 0
        %1270 = vmatpush1.bf16.msra.mxu0 0
        %1271 = vmatprep.subr.bf16.mxu0 0
        %1272 = vmatpush1.bf16.msra.mxu0 0
        %1273 = vmatprep.subr.bf16.mxu0 0
        %1274 = vmatpush1.bf16.msra.mxu0 0
        %1275 = vmatprep.subr.bf16.mxu0 0
        %1276 = vmatpush1.bf16.msra.mxu0 0
        %1277 = vmatprep.subr.bf16.mxu0 0
        %1278 = vmatpush1.bf16.msra.mxu0 0
        %1279 = vmatprep.subr.bf16.mxu0 0
        %1280 = vmatpush1.bf16.msra.mxu0 0
        %1281 = vmatprep.subr.bf16.mxu0 0
        %1282 = vmatpush1.bf16.msra.mxu0 %v1265
        %1283 = vmatprep.subr.bf16.mxu0 0
        %1284 = vmatpush2.bf16.msra.mxu0 0
        %1285 = vmatprep.subr.bf16.mxu0 0
        %1286 = vmatpush2.bf16.msra.mxu0 0
        %1287 = vmatprep.subr.bf16.mxu0 0
        %1288 = vmatpush2.bf16.msra.mxu0 0
        %1289 = vmatprep.subr.bf16.mxu0 0
        %1290 = vmatpush2.bf16.msra.mxu0 0
        %1291 = vmatprep.subr.bf16.mxu0 0
        %1292 = vmatpush2.bf16.msra.mxu0 0
        %1293 = vmatprep.subr.bf16.mxu0 0
        %1294 = vmatpush2.bf16.msra.mxu0 0
        %1295 = vmatprep.subr.bf16.mxu0 0
        %1296 = vmatpush2.bf16.msra.mxu0 0
        %1297 = vmatprep.subr.bf16.mxu0 0
        %1298 = vmatpush2.bf16.msra.mxu0 0
        %1299 = vmatprep.mubr.bf16.mxu0 0
        %1300 = vmatmul.mubr.bf16.gmra.mxu0 %v1262
        %v1301 = vpop.f32.mrf.mxu0
        %v1302 = vadd.f32 0.0, %v1301
        %v1303 = vpop.f32.mrf.mxu0
        %v1304 = vpop.f32.mrf.mxu0
        %v1305 = vpop.f32.mrf.mxu0
        %1306 = vdwg.mxu0
        %1307 = vrot.lane.b32.xlu0 %v959, 112
        %v1308 = vpop.permute.xlu0 %1307
        %v1310 = vsel %vm960, %v1209, 0
        %v1313 = vsel %vm1214, %v1308, 0
        %1315 = vmatprep.subr.bf16.mxu0 0
        %1316 = vmatpush1.bf16.msra.mxu0 0
        %1317 = vmatprep.subr.bf16.mxu0 0
        %1318 = vmatpush1.bf16.msra.mxu0 0
        %1319 = vmatprep.subr.bf16.mxu0 0
        %1320 = vmatpush1.bf16.msra.mxu0 0
        %1321 = vmatprep.subr.bf16.mxu0 0
        %1322 = vmatpush1.bf16.msra.mxu0 0
        %1323 = vmatprep.subr.bf16.mxu0 0
        %1324 = vmatpush1.bf16.msra.mxu0 0
        %1325 = vmatprep.subr.bf16.mxu0 0
        %1326 = vmatpush1.bf16.msra.mxu0 0
        %1327 = vmatprep.subr.bf16.mxu0 0
        %1328 = vmatpush1.bf16.msra.mxu0 0
        %1329 = vmatprep.subr.bf16.mxu0 0
        %1330 = vmatpush1.bf16.msra.mxu0 %v1313
        %1331 = vmatprep.subr.bf16.mxu0 0
        %1332 = vmatpush2.bf16.msra.mxu0 0
        %1333 = vmatprep.subr.bf16.mxu0 0
        %1334 = vmatpush2.bf16.msra.mxu0 0
        %1335 = vmatprep.subr.bf16.mxu0 0
        %1336 = vmatpush2.bf16.msra.mxu0 0
        %1337 = vmatprep.subr.bf16.mxu0 0
        %1338 = vmatpush2.bf16.msra.mxu0 0
        %1339 = vmatprep.subr.bf16.mxu0 0
        %1340 = vmatpush2.bf16.msra.mxu0 0
        %1341 = vmatprep.subr.bf16.mxu0 0
        %1342 = vmatpush2.bf16.msra.mxu0 0
        %1343 = vmatprep.subr.bf16.mxu0 0
        %1344 = vmatpush2.bf16.msra.mxu0 0
        %1345 = vmatprep.subr.bf16.mxu0 0
        %1346 = vmatpush2.bf16.msra.mxu0 0
        %1347 = vmatprep.mubr.bf16.mxu0 0
        %1348 = vmatmul.mubr.bf16.gmra.mxu0 %v1310
        %v1349 = vpop.f32.mrf.mxu0
        %v1350 = vadd.f32 0.0, %v1349
        %v1351 = vpop.f32.mrf.mxu0
        %v1352 = vpop.f32.mrf.mxu0
        %v1353 = vpop.f32.mrf.mxu0
        %1354 = vdwg.mxu0
        %1355 = vrot.lane.b32.xlu0 %v959, 104
        %v1356 = vpop.permute.xlu0 %1355
        %v1358 = vsel %vm960, %v1210, 0
        %v1361 = vsel %vm1214, %v1356, 0
        %1363 = vmatprep.subr.bf16.mxu0 0
        %1364 = vmatpush1.bf16.msra.mxu0 0
        %1365 = vmatprep.subr.bf16.mxu0 0
        %1366 = vmatpush1.bf16.msra.mxu0 0
        %1367 = vmatprep.subr.bf16.mxu0 0
        %1368 = vmatpush1.bf16.msra.mxu0 0
        %1369 = vmatprep.subr.bf16.mxu0 0
        %1370 = vmatpush1.bf16.msra.mxu0 0
        %1371 = vmatprep.subr.bf16.mxu0 0
        %1372 = vmatpush1.bf16.msra.mxu0 0
        %1373 = vmatprep.subr.bf16.mxu0 0
        %1374 = vmatpush1.bf16.msra.mxu0 0
        %1375 = vmatprep.subr.bf16.mxu0 0
        %1376 = vmatpush1.bf16.msra.mxu0 0
        %1377 = vmatprep.subr.bf16.mxu0 0
        %1378 = vmatpush1.bf16.msra.mxu0 %v1361
        %1379 = vmatprep.subr.bf16.mxu0 0
        %1380 = vmatpush2.bf16.msra.mxu0 0
        %1381 = vmatprep.subr.bf16.mxu0 0
        %1382 = vmatpush2.bf16.msra.mxu0 0
        %1383 = vmatprep.subr.bf16.mxu0 0
        %1384 = vmatpush2.bf16.msra.mxu0 0
        %1385 = vmatprep.subr.bf16.mxu0 0
        %1386 = vmatpush2.bf16.msra.mxu0 0
        %1387 = vmatprep.subr.bf16.mxu0 0
        %1388 = vmatpush2.bf16.msra.mxu0 0
        %1389 = vmatprep.subr.bf16.mxu0 0
        %1390 = vmatpush2.bf16.msra.mxu0 0
        %1391 = vmatprep.subr.bf16.mxu0 0
        %1392 = vmatpush2.bf16.msra.mxu0 0
        %1393 = vmatprep.subr.bf16.mxu0 0
        %1394 = vmatpush2.bf16.msra.mxu0 0
        %1395 = vmatprep.mubr.bf16.mxu0 0
        %1396 = vmatmul.mubr.bf16.gmra.mxu0 %v1358
        %v1397 = vpop.f32.mrf.mxu0
        %v1398 = vadd.f32 0.0, %v1397
        %v1399 = vpop.f32.mrf.mxu0
        %v1400 = vpop.f32.mrf.mxu0
        %v1401 = vpop.f32.mrf.mxu0
        %1402 = vdwg.mxu0
        %1404 = vrot.lane.b32.xlu0 %v1302, 8
        %v1405 = vpop.permute.xlu0 %1404
        %1408 = vrot.lane.b32.xlu0 %v1350, 16
        %v1409 = vpop.permute.xlu0 %1408
        %1412 = vrot.lane.b32.xlu0 %v1398, 24
        %v1413 = vpop.permute.xlu0 %1412
        %v1415 = vsel %vm960, %v1253, %v1405
        %vm1416 = vcmask 130048
        %v1417 = vsel %vm1416, %v1415, %v1409
        %vm1418 = vcmask 195584
        %v1419 = vsel %vm1418, %v1417, %v1413
        %v1420 = vpack.c.bf16 %v1419, %v1419
        %v1421 = vlaneseq
        %v1422 = vshrl.u32 %v1421, 7
        %v1423 = vsub.s32 0, %v1422
        %v1424 = vrot.slane %v795, %v1423
        %v1429 = vunpack.c.l.b16 %v791
        %v1430 = vunpack.c.l.b16 %v792
        %v1431 = vunpack.c.l.b16 %v793
        %v1432 = vunpack.c.l.b16 %v794
        %v1433 = vpack.c.b16 %v1430, %v1429
        %v1434 = vpack.c.b16 %v1432, %v1431
        %v1438 = vsel %vm809, %v1420, 0
        %1440 = vmatprep.subr.bf16.mxu0 0
        %1441 = vmatpush1.bf16.msra.mxu0 0
        %1442 = vmatprep.subr.bf16.mxu0 0
        %1443 = vmatpush1.bf16.msra.mxu0 0
        %1444 = vmatprep.subr.bf16.mxu0 0
        %1445 = vmatpush1.bf16.msra.mxu0 0
        %1446 = vmatprep.subr.bf16.mxu0 0
        %1447 = vmatpush1.bf16.msra.mxu0 0
        %1448 = vmatprep.subr.bf16.mxu0 0
        %1449 = vmatpush1.bf16.msra.mxu0 0
        %1450 = vmatprep.subr.bf16.mxu0 0
        %1451 = vmatpush1.bf16.msra.mxu0 0
        %1452 = vmatprep.subr.bf16.mxu0 0
        %1453 = vmatpush1.bf16.msra.mxu0 %v1434
        %1454 = vmatprep.subr.bf16.mxu0 0
        %1455 = vmatpush1.bf16.msra.mxu0 %v1433
        %1456 = vmatprep.subr.bf16.mxu0 0
        %1457 = vmatpush2.bf16.msra.mxu0 0
        %1458 = vmatprep.subr.bf16.mxu0 0
        %1459 = vmatpush2.bf16.msra.mxu0 0
        %1460 = vmatprep.subr.bf16.mxu0 0
        %1461 = vmatpush2.bf16.msra.mxu0 0
        %1462 = vmatprep.subr.bf16.mxu0 0
        %1463 = vmatpush2.bf16.msra.mxu0 0
        %1464 = vmatprep.subr.bf16.mxu0 0
        %1465 = vmatpush2.bf16.msra.mxu0 0
        %1466 = vmatprep.subr.bf16.mxu0 0
        %1467 = vmatpush2.bf16.msra.mxu0 0
        %1468 = vmatprep.subr.bf16.mxu0 0
        %1469 = vmatpush2.bf16.msra.mxu0 0
        %1470 = vmatprep.subr.bf16.mxu0 0
        %1471 = vmatpush2.bf16.msra.mxu0 0
        %1472 = vmatprep.mubr.bf16.mxu0 0
        %1473 = vmatmul.mubr.bf16.gmra.mxu0 %v1438
        %v1474 = vpop.f32.mrf.mxu0
        %v1475 = vadd.f32 %v1424, %v1474
        %v1476 = vpop.f32.mrf.mxu0
        %v1477 = vpop.f32.mrf.mxu0
        %v1478 = vpop.f32.mrf.mxu0
        %1479 = vdwg.mxu0
        %v1480 = vadd.f32 %v1475, %v776
        %v1481 = vld [vmem:[%s750 + $0x2] sm:$0x1]
        %v1482 = vld [vmem:[%s750 + $0x3] sm:$0x1]
        %v1483 = vsel %vm809, %v1480, 0.0
        %1484 = vadd.xlane.f32.xlu0 %v1483
        %v1485 = vpop.xlane.xlu0 %1484
        %v1486 = vrcp.pop 32.0
        %v1487 = vmul.f32 %v1485, %v1486
        %v1488 = vsub.f32 %v1480, %v1487
        %v1489 = vmul.f32 %v1488, %v1488
        %v1490 = vsel %vm809, %v1489, 0.0
        %1491 = vadd.xlane.f32.xlu0 %v1490
        %v1492 = vpop.xlane.xlu0 %1491
        %v1493 = vmul.f32 %v1492, %v1486
        %v1494 = vadd.f32 %v1493, 1e-05
        %v1495 = vrsqrt.pop %v1494
        %v1496 = vmul.f32 %v1488, %v1495
        %v1497 = vlaneseq
        %v1498 = vshrl.u32 %v1497, 7
        %v1499 = vsub.s32 0, %v1498
        %v1500 = vrot.slane %v1481, %v1499
        %v1501 = vmul.f32 %v1496, %v1500
        %v1502 = vlaneseq
        %v1503 = vshrl.u32 %v1502, 7
        %v1504 = vsub.s32 0, %v1503
        %v1505 = vrot.slane %v1482, %v1504
        %v1506 = vadd.f32 %v1501, %v1505
        %v1507 = vld [vmem:[%s740] sm:$0xf]
        %v1508 = vld [vmem:[%s740 + $0x4] sm:$0xf]
        %v1509 = vld [vmem:[%s740 + $0x8] sm:$0xf]
        %v1510 = vld [vmem:[%s740 + $0xc] sm:$0xf]
        %v1511 = vld [vmem:[%s745] sm:$0xf]
        %v1512 = vld [vmem:[%s745 + $0x4] sm:$0xf]
        %v1513 = vld [vmem:[%s745 + $0x8] sm:$0xf]
        %v1514 = vld [vmem:[%s745 + $0xc] sm:$0xf]
        %v1515 = vld [vmem:[%s597] sm:$0xf]
        %v1516 = vld [vmem:[%s597 + $0x4] sm:$0xf]
        %v1517 = vld [vmem:[%s597 + $0x8] sm:$0xf]
        %v1518 = vld [vmem:[%s597 + $0xc] sm:$0xf]
        %v1519 = vld [vmem:[%s606] sm:$0xf]
        %v1520 = vld [vmem:[%s606 + $0x4] sm:$0xf]
        %v1521 = vld [vmem:[%s606 + $0x8] sm:$0xf]
        %v1522 = vld [vmem:[%s606 + $0xc] sm:$0xf]
        %v1523 = vld [vmem:[%s750 + $0x1] sm:$0x1]
        %v1524 = vpack.c.bf16 %v1475, %v1475
        %v1529 = vunpack.c.l.b16 %v1507
        %v1530 = vunpack.c.l.b16 %v1508
        %v1531 = vunpack.c.l.b16 %v1509
        %v1532 = vunpack.c.l.b16 %v1510
        %v1533 = vpack.c.b16 %v1530, %v1529
        %v1534 = vpack.c.b16 %v1532, %v1531
        %v1538 = vsel %vm809, %v1524, 0
        %1540 = vmatprep.subr.bf16.mxu0 0
        %1541 = vmatpush1.bf16.msra.mxu0 0
        %1542 = vmatprep.subr.bf16.mxu0 0
        %1543 = vmatpush1.bf16.msra.mxu0 0
        %1544 = vmatprep.subr.bf16.mxu0 0
        %1545 = vmatpush1.bf16.msra.mxu0 0
        %1546 = vmatprep.subr.bf16.mxu0 0
        %1547 = vmatpush1.bf16.msra.mxu0 0
        %1548 = vmatprep.subr.bf16.mxu0 0
        %1549 = vmatpush1.bf16.msra.mxu0 0
        %1550 = vmatprep.subr.bf16.mxu0 0
        %1551 = vmatpush1.bf16.msra.mxu0 0
        %1552 = vmatprep.subr.bf16.mxu0 0
        %1553 = vmatpush1.bf16.msra.mxu0 %v1534
        %1554 = vmatprep.subr.bf16.mxu0 0
        %1555 = vmatpush1.bf16.msra.mxu0 %v1533
        %1556 = vmatprep.subr.bf16.mxu0 0
        %1557 = vmatpush2.bf16.msra.mxu0 0
        %1558 = vmatprep.subr.bf16.mxu0 0
        %1559 = vmatpush2.bf16.msra.mxu0 0
        %1560 = vmatprep.subr.bf16.mxu0 0
        %1561 = vmatpush2.bf16.msra.mxu0 0
        %1562 = vmatprep.subr.bf16.mxu0 0
        %1563 = vmatpush2.bf16.msra.mxu0 0
        %1564 = vmatprep.subr.bf16.mxu0 0
        %1565 = vmatpush2.bf16.msra.mxu0 0
        %1566 = vmatprep.subr.bf16.mxu0 0
        %1567 = vmatpush2.bf16.msra.mxu0 0
        %1568 = vmatprep.subr.bf16.mxu0 0
        %1569 = vmatpush2.bf16.msra.mxu0 0
        %1570 = vmatprep.subr.bf16.mxu0 0
        %1571 = vmatpush2.bf16.msra.mxu0 0
        %1572 = vmatprep.mubr.bf16.mxu0 0
        %1573 = vmatmul.mubr.bf16.gmra.mxu0 %v1538
        %v1574 = vpop.f32.mrf.mxu0
        %v1575 = vadd.f32 0.0, %v1574
        %v1576 = vpop.f32.mrf.mxu0
        %v1577 = vpop.f32.mrf.mxu0
        %v1578 = vpop.f32.mrf.mxu0
        %1579 = vdwg.mxu0
        %v1584 = vunpack.c.l.b16 %v1511
        %v1585 = vunpack.c.l.b16 %v1512
        %v1586 = vunpack.c.l.b16 %v1513
        %v1587 = vunpack.c.l.b16 %v1514
        %v1588 = vpack.c.b16 %v1585, %v1584
        %v1589 = vpack.c.b16 %v1587, %v1586
        %v1593 = vsel %vm809, %v777, 0
        %1595 = vmatprep.subr.bf16.mxu0 0
        %1596 = vmatpush1.bf16.msra.mxu0 0
        %1597 = vmatprep.subr.bf16.mxu0 0
        %1598 = vmatpush1.bf16.msra.mxu0 0
        %1599 = vmatprep.subr.bf16.mxu0 0
        %1600 = vmatpush1.bf16.msra.mxu0 0
        %1601 = vmatprep.subr.bf16.mxu0 0
        %1602 = vmatpush1.bf16.msra.mxu0 0
        %1603 = vmatprep.subr.bf16.mxu0 0
        %1604 = vmatpush1.bf16.msra.mxu0 0
        %1605 = vmatprep.subr.bf16.mxu0 0
        %1606 = vmatpush1.bf16.msra.mxu0 0
        %1607 = vmatprep.subr.bf16.mxu0 0
        %1608 = vmatpush1.bf16.msra.mxu0 %v1589
        %1609 = vmatprep.subr.bf16.mxu0 0
        %1610 = vmatpush1.bf16.msra.mxu0 %v1588
        %1611 = vmatprep.subr.bf16.mxu0 0
        %1612 = vmatpush2.bf16.msra.mxu0 0
        %1613 = vmatprep.subr.bf16.mxu0 0
        %1614 = vmatpush2.bf16.msra.mxu0 0
        %1615 = vmatprep.subr.bf16.mxu0 0
        %1616 = vmatpush2.bf16.msra.mxu0 0
        %1617 = vmatprep.subr.bf16.mxu0 0
        %1618 = vmatpush2.bf16.msra.mxu0 0
        %1619 = vmatprep.subr.bf16.mxu0 0
        %1620 = vmatpush2.bf16.msra.mxu0 0
        %1621 = vmatprep.subr.bf16.mxu0 0
        %1622 = vmatpush2.bf16.msra.mxu0 0
        %1623 = vmatprep.subr.bf16.mxu0 0
        %1624 = vmatpush2.bf16.msra.mxu0 0
        %1625 = vmatprep.subr.bf16.mxu0 0
        %1626 = vmatpush2.bf16.msra.mxu0 0
        %1627 = vmatprep.mubr.bf16.mxu0 0
        %1628 = vmatmul.mubr.bf16.gmra.mxu0 %v1593
        %v1629 = vpop.f32.mrf.mxu0
        %v1630 = vadd.f32 0.0, %v1629
        %v1631 = vpop.f32.mrf.mxu0
        %v1632 = vpop.f32.mrf.mxu0
        %v1633 = vpop.f32.mrf.mxu0
        %1634 = vdwg.mxu0
        %v1639 = vunpack.c.l.b16 %v1515
        %v1640 = vunpack.c.l.b16 %v1516
        %v1641 = vunpack.c.l.b16 %v1517
        %v1642 = vunpack.c.l.b16 %v1518
        %v1643 = vpack.c.b16 %v1640, %v1639
        %v1644 = vpack.c.b16 %v1642, %v1641
        %1647 = vmatprep.subr.bf16.mxu0 0
        %1648 = vmatpush1.bf16.msra.mxu0 0
        %1649 = vmatprep.subr.bf16.mxu0 0
        %1650 = vmatpush1.bf16.msra.mxu0 0
        %1651 = vmatprep.subr.bf16.mxu0 0
        %1652 = vmatpush1.bf16.msra.mxu0 0
        %1653 = vmatprep.subr.bf16.mxu0 0
        %1654 = vmatpush1.bf16.msra.mxu0 0
        %1655 = vmatprep.subr.bf16.mxu0 0
        %1656 = vmatpush1.bf16.msra.mxu0 0
        %1657 = vmatprep.subr.bf16.mxu0 0
        %1658 = vmatpush1.bf16.msra.mxu0 0
        %1659 = vmatprep.subr.bf16.mxu0 0
        %1660 = vmatpush1.bf16.msra.mxu0 %v1644
        %1661 = vmatprep.subr.bf16.mxu0 0
        %1662 = vmatpush1.bf16.msra.mxu0 %v1643
        %1663 = vmatprep.subr.bf16.mxu0 0
        %1664 = vmatpush2.bf16.msra.mxu0 0
        %1665 = vmatprep.subr.bf16.mxu0 0
        %1666 = vmatpush2.bf16.msra.mxu0 0
        %1667 = vmatprep.subr.bf16.mxu0 0
        %1668 = vmatpush2.bf16.msra.mxu0 0
        %1669 = vmatprep.subr.bf16.mxu0 0
        %1670 = vmatpush2.bf16.msra.mxu0 0
        %1671 = vmatprep.subr.bf16.mxu0 0
        %1672 = vmatpush2.bf16.msra.mxu0 0
        %1673 = vmatprep.subr.bf16.mxu0 0
        %1674 = vmatpush2.bf16.msra.mxu0 0
        %1675 = vmatprep.subr.bf16.mxu0 0
        %1676 = vmatpush2.bf16.msra.mxu0 0
        %1677 = vmatprep.subr.bf16.mxu0 0
        %1678 = vmatpush2.bf16.msra.mxu0 0
        %1679 = vmatprep.mubr.bf16.mxu0 0
        %1680 = vmatmul.mubr.bf16.gmra.mxu0 %v1593
        %v1681 = vpop.f32.mrf.mxu0
        %v1682 = vadd.f32 0.0, %v1681
        %v1683 = vpop.f32.mrf.mxu0
        %v1684 = vpop.f32.mrf.mxu0
        %v1685 = vpop.f32.mrf.mxu0
        %1686 = vdwg.mxu0
        %v1687 = vpack.c.bf16 %v1575, %v1575
        %v1688 = vpack.c.bf16 %v1630, %v1630
        %v1689 = vpack.c.bf16 %v1682, %v1682
        %v1691 = vsel %vm960, %v1687, 0
        %v1694 = vsel %vm960, %v1688, 0
        %1696 = vmatprep.subr.bf16.mxu0 0
        %1697 = vmatpush1.bf16.xpose.msra.mxu0 0
        %1698 = vmatprep.subr.bf16.mxu0 0
        %1699 = vmatpush1.bf16.xpose.msra.mxu0 0
        %1700 = vmatprep.subr.bf16.mxu0 0
        %1701 = vmatpush1.bf16.xpose.msra.mxu0 0
        %1702 = vmatprep.subr.bf16.mxu0 0
        %1703 = vmatpush1.bf16.xpose.msra.mxu0 0
        %1704 = vmatprep.subr.bf16.mxu0 0
        %1705 = vmatpush1.bf16.xpose.msra.mxu0 0
        %1706 = vmatprep.subr.bf16.mxu0 0
        %1707 = vmatpush1.bf16.xpose.msra.mxu0 0
        %1708 = vmatprep.subr.bf16.mxu0 0
        %1709 = vmatpush1.bf16.xpose.msra.mxu0 0
        %1710 = vmatprep.subr.bf16.mxu0 0
        %1711 = vmatpush1.bf16.xpose.msra.mxu0 %v1694
        %1712 = vmatprep.subr.bf16.mxu0 0
        %1713 = vmatpush2.bf16.xpose.msra.mxu0 0
        %1714 = vmatprep.subr.bf16.mxu0 0
        %1715 = vmatpush2.bf16.xpose.msra.mxu0 0
        %1716 = vmatprep.subr.bf16.mxu0 0
        %1717 = vmatpush2.bf16.xpose.msra.mxu0 0
        %1718 = vmatprep.subr.bf16.mxu0 0
        %1719 = vmatpush2.bf16.xpose.msra.mxu0 0
        %1720 = vmatprep.subr.bf16.mxu0 0
        %1721 = vmatpush2.bf16.xpose.msra.mxu0 0
        %1722 = vmatprep.subr.bf16.mxu0 0
        %1723 = vmatpush2.bf16.xpose.msra.mxu0 0
        %1724 = vmatprep.subr.bf16.mxu0 0
        %1725 = vmatpush2.bf16.xpose.msra.mxu0 0
        %1726 = vmatprep.subr.bf16.mxu0 0
        %1727 = vmatpush2.bf16.xpose.msra.mxu0 0
        %1728 = vmatprep.mubr.bf16.mxu0 0
        %1729 = vmatmul.mubr.bf16.gmra.mxu0 %v1691
        %v1730 = vpop.f32.mrf.mxu0
        %v1731 = vadd.f32 0.0, %v1730
        %v1732 = vpop.f32.mrf.mxu0
        %v1733 = vpop.f32.mrf.mxu0
        %v1734 = vpop.f32.mrf.mxu0
        %1735 = vdwg.mxu0
        %1737 = vrot.lane.b32.xlu0 %v1687, 120
        %v1738 = vpop.permute.xlu0 %1737
        %1740 = vrot.lane.b32.xlu0 %v1688, 120
        %v1741 = vpop.permute.xlu0 %1740
        %v1743 = vsel %vm960, %v1738, 0
        %v1746 = vsel %vm960, %v1741, 0
        %1748 = vmatprep.subr.bf16.mxu0 0
        %1749 = vmatpush1.bf16.xpose.msra.mxu0 0
        %1750 = vmatprep.subr.bf16.mxu0 0
        %1751 = vmatpush1.bf16.xpose.msra.mxu0 0
        %1752 = vmatprep.subr.bf16.mxu0 0
        %1753 = vmatpush1.bf16.xpose.msra.mxu0 0
        %1754 = vmatprep.subr.bf16.mxu0 0
        %1755 = vmatpush1.bf16.xpose.msra.mxu0 0
        %1756 = vmatprep.subr.bf16.mxu0 0
        %1757 = vmatpush1.bf16.xpose.msra.mxu0 0
        %1758 = vmatprep.subr.bf16.mxu0 0
        %1759 = vmatpush1.bf16.xpose.msra.mxu0 0
        %1760 = vmatprep.subr.bf16.mxu0 0
        %1761 = vmatpush1.bf16.xpose.msra.mxu0 0
        %1762 = vmatprep.subr.bf16.mxu0 0
        %1763 = vmatpush1.bf16.xpose.msra.mxu0 %v1746
        %1764 = vmatprep.subr.bf16.mxu0 0
        %1765 = vmatpush2.bf16.xpose.msra.mxu0 0
        %1766 = vmatprep.subr.bf16.mxu0 0
        %1767 = vmatpush2.bf16.xpose.msra.mxu0 0
        %1768 = vmatprep.subr.bf16.mxu0 0
        %1769 = vmatpush2.bf16.xpose.msra.mxu0 0
        %1770 = vmatprep.subr.bf16.mxu0 0
        %1771 = vmatpush2.bf16.xpose.msra.mxu0 0
        %1772 = vmatprep.subr.bf16.mxu0 0
        %1773 = vmatpush2.bf16.xpose.msra.mxu0 0
        %1774 = vmatprep.subr.bf16.mxu0 0
        %1775 = vmatpush2.bf16.xpose.msra.mxu0 0
        %1776 = vmatprep.subr.bf16.mxu0 0
        %1777 = vmatpush2.bf16.xpose.msra.mxu0 0
        %1778 = vmatprep.subr.bf16.mxu0 0
        %1779 = vmatpush2.bf16.xpose.msra.mxu0 0
        %1780 = vmatprep.mubr.bf16.mxu0 0
        %1781 = vmatmul.mubr.bf16.gmra.mxu0 %v1743
        %v1782 = vpop.f32.mrf.mxu0
        %v1783 = vadd.f32 0.0, %v1782
        %v1784 = vpop.f32.mrf.mxu0
        %v1785 = vpop.f32.mrf.mxu0
        %v1786 = vpop.f32.mrf.mxu0
        %1787 = vdwg.mxu0
        %1788 = vrot.lane.b32.xlu0 %v1687, 112
        %v1789 = vpop.permute.xlu0 %1788
        %1790 = vrot.lane.b32.xlu0 %v1688, 112
        %v1791 = vpop.permute.xlu0 %1790
        %v1793 = vsel %vm960, %v1789, 0
        %v1796 = vsel %vm960, %v1791, 0
        %1798 = vmatprep.subr.bf16.mxu0 0
        %1799 = vmatpush1.bf16.xpose.msra.mxu0 0
        %1800 = vmatprep.subr.bf16.mxu0 0
        %1801 = vmatpush1.bf16.xpose.msra.mxu0 0
        %1802 = vmatprep.subr.bf16.mxu0 0
        %1803 = vmatpush1.bf16.xpose.msra.mxu0 0
        %1804 = vmatprep.subr.bf16.mxu0 0
        %1805 = vmatpush1.bf16.xpose.msra.mxu0 0
        %1806 = vmatprep.subr.bf16.mxu0 0
        %1807 = vmatpush1.bf16.xpose.msra.mxu0 0
        %1808 = vmatprep.subr.bf16.mxu0 0
        %1809 = vmatpush1.bf16.xpose.msra.mxu0 0
        %1810 = vmatprep.subr.bf16.mxu0 0
        %1811 = vmatpush1.bf16.xpose.msra.mxu0 0
        %1812 = vmatprep.subr.bf16.mxu0 0
        %1813 = vmatpush1.bf16.xpose.msra.mxu0 %v1796
        %1814 = vmatprep.subr.bf16.mxu0 0
        %1815 = vmatpush2.bf16.xpose.msra.mxu0 0
        %1816 = vmatprep.subr.bf16.mxu0 0
        %1817 = vmatpush2.bf16.xpose.msra.mxu0 0
        %1818 = vmatprep.subr.bf16.mxu0 0
        %1819 = vmatpush2.bf16.xpose.msra.mxu0 0
        %1820 = vmatprep.subr.bf16.mxu0 0
        %1821 = vmatpush2.bf16.xpose.msra.mxu0 0
        %1822 = vmatprep.subr.bf16.mxu0 0
        %1823 = vmatpush2.bf16.xpose.msra.mxu0 0
        %1824 = vmatprep.subr.bf16.mxu0 0
        %1825 = vmatpush2.bf16.xpose.msra.mxu0 0
        %1826 = vmatprep.subr.bf16.mxu0 0
        %1827 = vmatpush2.bf16.xpose.msra.mxu0 0
        %1828 = vmatprep.subr.bf16.mxu0 0
        %1829 = vmatpush2.bf16.xpose.msra.mxu0 0
        %1830 = vmatprep.mubr.bf16.mxu0 0
        %1831 = vmatmul.mubr.bf16.gmra.mxu0 %v1793
        %v1832 = vpop.f32.mrf.mxu0
        %v1833 = vadd.f32 0.0, %v1832
        %v1834 = vpop.f32.mrf.mxu0
        %v1835 = vpop.f32.mrf.mxu0
        %v1836 = vpop.f32.mrf.mxu0
        %1837 = vdwg.mxu0
        %1838 = vrot.lane.b32.xlu0 %v1687, 104
        %v1839 = vpop.permute.xlu0 %1838
        %1840 = vrot.lane.b32.xlu0 %v1688, 104
        %v1841 = vpop.permute.xlu0 %1840
        %v1843 = vsel %vm960, %v1839, 0
        %v1846 = vsel %vm960, %v1841, 0
        %1848 = vmatprep.subr.bf16.mxu0 0
        %1849 = vmatpush1.bf16.xpose.msra.mxu0 0
        %1850 = vmatprep.subr.bf16.mxu0 0
        %1851 = vmatpush1.bf16.xpose.msra.mxu0 0
        %1852 = vmatprep.subr.bf16.mxu0 0
        %1853 = vmatpush1.bf16.xpose.msra.mxu0 0
        %1854 = vmatprep.subr.bf16.mxu0 0
        %1855 = vmatpush1.bf16.xpose.msra.mxu0 0
        %1856 = vmatprep.subr.bf16.mxu0 0
        %1857 = vmatpush1.bf16.xpose.msra.mxu0 0
        %1858 = vmatprep.subr.bf16.mxu0 0
        %1859 = vmatpush1.bf16.xpose.msra.mxu0 0
        %1860 = vmatprep.subr.bf16.mxu0 0
        %1861 = vmatpush1.bf16.xpose.msra.mxu0 0
        %1862 = vmatprep.subr.bf16.mxu0 0
        %1863 = vmatpush1.bf16.xpose.msra.mxu0 %v1846
        %1864 = vmatprep.subr.bf16.mxu0 0
        %1865 = vmatpush2.bf16.xpose.msra.mxu0 0
        %1866 = vmatprep.subr.bf16.mxu0 0
        %1867 = vmatpush2.bf16.xpose.msra.mxu0 0
        %1868 = vmatprep.subr.bf16.mxu0 0
        %1869 = vmatpush2.bf16.xpose.msra.mxu0 0
        %1870 = vmatprep.subr.bf16.mxu0 0
        %1871 = vmatpush2.bf16.xpose.msra.mxu0 0
        %1872 = vmatprep.subr.bf16.mxu0 0
        %1873 = vmatpush2.bf16.xpose.msra.mxu0 0
        %1874 = vmatprep.subr.bf16.mxu0 0
        %1875 = vmatpush2.bf16.xpose.msra.mxu0 0
        %1876 = vmatprep.subr.bf16.mxu0 0
        %1877 = vmatpush2.bf16.xpose.msra.mxu0 0
        %1878 = vmatprep.subr.bf16.mxu0 0
        %1879 = vmatpush2.bf16.xpose.msra.mxu0 0
        %1880 = vmatprep.mubr.bf16.mxu0 0
        %1881 = vmatmul.mubr.bf16.gmra.mxu0 %v1843
        %v1882 = vpop.f32.mrf.mxu0
        %v1883 = vadd.f32 0.0, %v1882
        %v1884 = vpop.f32.mrf.mxu0
        %v1885 = vpop.f32.mrf.mxu0
        %v1886 = vpop.f32.mrf.mxu0
        %1887 = vdwg.mxu0
        %v1888 = vsel %vm960, %v1731, -inf
        %1889 = vmax.xlane.f32.xlu0 %v1888
        %v1890 = vpop.xlane.xlu0 %1889
        %v1891 = vsel %vm960, %v1783, -inf
        %1892 = vmax.xlane.f32.xlu0 %v1891
        %v1893 = vpop.xlane.xlu0 %1892
        %v1894 = vsel %vm960, %v1833, -inf
        %1895 = vmax.xlane.f32.xlu0 %v1894
        %v1896 = vpop.xlane.xlu0 %1895
        %v1897 = vsel %vm960, %v1883, -inf
        %1898 = vmax.xlane.f32.xlu0 %v1897
        %v1899 = vpop.xlane.xlu0 %1898
        %v1900 = vsub.f32 %v1731, %v1890
        %v1901 = vsub.f32 %v1783, %v1893
        %v1902 = vsub.f32 %v1833, %v1896
        %v1903 = vsub.f32 %v1883, %v1899
        %v1904 = vmul.f32 %v1900, 1.442695
        %v1905 = vpow.pop %v1904
        %v1906 = vmul.f32 %v1901, 1.442695
        %v1907 = vpow.pop %v1906
        %v1908 = vmul.f32 %v1902, 1.442695
        %v1909 = vpow.pop %v1908
        %v1910 = vmul.f32 %v1903, 1.442695
        %v1911 = vpow.pop %v1910
        %v1912 = vsel %vm960, %v1905, 0.0
        %1913 = vadd.xlane.f32.xlu0 %v1912
        %v1914 = vpop.xlane.xlu0 %1913
        %v1915 = vsel %vm960, %v1907, 0.0
        %1916 = vadd.xlane.f32.xlu0 %v1915
        %v1917 = vpop.xlane.xlu0 %1916
        %v1918 = vsel %vm960, %v1909, 0.0
        %1919 = vadd.xlane.f32.xlu0 %v1918
        %v1920 = vpop.xlane.xlu0 %1919
        %v1921 = vsel %vm960, %v1911, 0.0
        %1922 = vadd.xlane.f32.xlu0 %v1921
        %v1923 = vpop.xlane.xlu0 %1922
        %v1924 = vrcp.pop %v1914
        %v1925 = vmul.f32 %v1905, %v1924
        %v1926 = vrcp.pop %v1917
        %v1927 = vmul.f32 %v1907, %v1926
        %v1928 = vrcp.pop %v1920
        %v1929 = vmul.f32 %v1909, %v1928
        %v1930 = vrcp.pop %v1923
        %v1931 = vmul.f32 %v1911, %v1930
        %v1932 = vpack.c.bf16 %v1925, %v1925
        %v1933 = vpack.c.bf16 %v1927, %v1927
        %v1934 = vpack.c.bf16 %v1929, %v1929
        %v1935 = vpack.c.bf16 %v1931, %v1931
        %v1937 = vsel %vm960, %v1932, 0
        %v1940 = vsel %vm1214, %v1689, 0
        %1942 = vmatprep.subr.bf16.mxu0 0
        %1943 = vmatpush1.bf16.msra.mxu0 0
        %1944 = vmatprep.subr.bf16.mxu0 0
        %1945 = vmatpush1.bf16.msra.mxu0 0
        %1946 = vmatprep.subr.bf16.mxu0 0
        %1947 = vmatpush1.bf16.msra.mxu0 0
        %1948 = vmatprep.subr.bf16.mxu0 0
        %1949 = vmatpush1.bf16.msra.mxu0 0
        %1950 = vmatprep.subr.bf16.mxu0 0
        %1951 = vmatpush1.bf16.msra.mxu0 0
        %1952 = vmatprep.subr.bf16.mxu0 0
        %1953 = vmatpush1.bf16.msra.mxu0 0
        %1954 = vmatprep.subr.bf16.mxu0 0
        %1955 = vmatpush1.bf16.msra.mxu0 0
        %1956 = vmatprep.subr.bf16.mxu0 0
        %1957 = vmatpush1.bf16.msra.mxu0 %v1940
        %1958 = vmatprep.subr.bf16.mxu0 0
        %1959 = vmatpush2.bf16.msra.mxu0 0
        %1960 = vmatprep.subr.bf16.mxu0 0
        %1961 = vmatpush2.bf16.msra.mxu0 0
        %1962 = vmatprep.subr.bf16.mxu0 0
        %1963 = vmatpush2.bf16.msra.mxu0 0
        %1964 = vmatprep.subr.bf16.mxu0 0
        %1965 = vmatpush2.bf16.msra.mxu0 0
        %1966 = vmatprep.subr.bf16.mxu0 0
        %1967 = vmatpush2.bf16.msra.mxu0 0
        %1968 = vmatprep.subr.bf16.mxu0 0
        %1969 = vmatpush2.bf16.msra.mxu0 0
        %1970 = vmatprep.subr.bf16.mxu0 0
        %1971 = vmatpush2.bf16.msra.mxu0 0
        %1972 = vmatprep.subr.bf16.mxu0 0
        %1973 = vmatpush2.bf16.msra.mxu0 0
        %1974 = vmatprep.mubr.bf16.mxu0 0
        %1975 = vmatmul.mubr.bf16.gmra.mxu0 %v1937
        %v1976 = vpop.f32.mrf.mxu0
        %v1977 = vadd.f32 0.0, %v1976
        %v1978 = vpop.f32.mrf.mxu0
        %v1979 = vpop.f32.mrf.mxu0
        %v1980 = vpop.f32.mrf.mxu0
        %1981 = vdwg.mxu0
        %1983 = vrot.lane.b32.xlu0 %v1689, 120
        %v1984 = vpop.permute.xlu0 %1983
        %v1986 = vsel %vm960, %v1933, 0
        %v1989 = vsel %vm1214, %v1984, 0
        %1991 = vmatprep.subr.bf16.mxu0 0
        %1992 = vmatpush1.bf16.msra.mxu0 0
        %1993 = vmatprep.subr.bf16.mxu0 0
        %1994 = vmatpush1.bf16.msra.mxu0 0
        %1995 = vmatprep.subr.bf16.mxu0 0
        %1996 = vmatpush1.bf16.msra.mxu0 0
        %1997 = vmatprep.subr.bf16.mxu0 0
        %1998 = vmatpush1.bf16.msra.mxu0 0
        %1999 = vmatprep.subr.bf16.mxu0 0
        %2000 = vmatpush1.bf16.msra.mxu0 0
        %2001 = vmatprep.subr.bf16.mxu0 0
        %2002 = vmatpush1.bf16.msra.mxu0 0
        %2003 = vmatprep.subr.bf16.mxu0 0
        %2004 = vmatpush1.bf16.msra.mxu0 0
        %2005 = vmatprep.subr.bf16.mxu0 0
        %2006 = vmatpush1.bf16.msra.mxu0 %v1989
        %2007 = vmatprep.subr.bf16.mxu0 0
        %2008 = vmatpush2.bf16.msra.mxu0 0
        %2009 = vmatprep.subr.bf16.mxu0 0
        %2010 = vmatpush2.bf16.msra.mxu0 0
        %2011 = vmatprep.subr.bf16.mxu0 0
        %2012 = vmatpush2.bf16.msra.mxu0 0
        %2013 = vmatprep.subr.bf16.mxu0 0
        %2014 = vmatpush2.bf16.msra.mxu0 0
        %2015 = vmatprep.subr.bf16.mxu0 0
        %2016 = vmatpush2.bf16.msra.mxu0 0
        %2017 = vmatprep.subr.bf16.mxu0 0
        %2018 = vmatpush2.bf16.msra.mxu0 0
        %2019 = vmatprep.subr.bf16.mxu0 0
        %2020 = vmatpush2.bf16.msra.mxu0 0
        %2021 = vmatprep.subr.bf16.mxu0 0
        %2022 = vmatpush2.bf16.msra.mxu0 0
        %2023 = vmatprep.mubr.bf16.mxu0 0
        %2024 = vmatmul.mubr.bf16.gmra.mxu0 %v1986
        %v2025 = vpop.f32.mrf.mxu0
        %v2026 = vadd.f32 0.0, %v2025
        %v2027 = vpop.f32.mrf.mxu0
        %v2028 = vpop.f32.mrf.mxu0
        %v2029 = vpop.f32.mrf.mxu0
        %2030 = vdwg.mxu0
        %2031 = vrot.lane.b32.xlu0 %v1689, 112
        %v2032 = vpop.permute.xlu0 %2031
        %v2034 = vsel %vm960, %v1934, 0
        %v2037 = vsel %vm1214, %v2032, 0
        %2039 = vmatprep.subr.bf16.mxu0 0
        %2040 = vmatpush1.bf16.msra.mxu0 0
        %2041 = vmatprep.subr.bf16.mxu0 0
        %2042 = vmatpush1.bf16.msra.mxu0 0
        %2043 = vmatprep.subr.bf16.mxu0 0
        %2044 = vmatpush1.bf16.msra.mxu0 0
        %2045 = vmatprep.subr.bf16.mxu0 0
        %2046 = vmatpush1.bf16.msra.mxu0 0
        %2047 = vmatprep.subr.bf16.mxu0 0
        %2048 = vmatpush1.bf16.msra.mxu0 0
        %2049 = vmatprep.subr.bf16.mxu0 0
        %2050 = vmatpush1.bf16.msra.mxu0 0
        %2051 = vmatprep.subr.bf16.mxu0 0
        %2052 = vmatpush1.bf16.msra.mxu0 0
        %2053 = vmatprep.subr.bf16.mxu0 0
        %2054 = vmatpush1.bf16.msra.mxu0 %v2037
        %2055 = vmatprep.subr.bf16.mxu0 0
        %2056 = vmatpush2.bf16.msra.mxu0 0
        %2057 = vmatprep.subr.bf16.mxu0 0
        %2058 = vmatpush2.bf16.msra.mxu0 0
        %2059 = vmatprep.subr.bf16.mxu0 0
        %2060 = vmatpush2.bf16.msra.mxu0 0
        %2061 = vmatprep.subr.bf16.mxu0 0
        %2062 = vmatpush2.bf16.msra.mxu0 0
        %2063 = vmatprep.subr.bf16.mxu0 0
        %2064 = vmatpush2.bf16.msra.mxu0 0
        %2065 = vmatprep.subr.bf16.mxu0 0
        %2066 = vmatpush2.bf16.msra.mxu0 0
        %2067 = vmatprep.subr.bf16.mxu0 0
        %2068 = vmatpush2.bf16.msra.mxu0 0
        %2069 = vmatprep.subr.bf16.mxu0 0
        %2070 = vmatpush2.bf16.msra.mxu0 0
        %2071 = vmatprep.mubr.bf16.mxu0 0
        %2072 = vmatmul.mubr.bf16.gmra.mxu0 %v2034
        %v2073 = vpop.f32.mrf.mxu0
        %v2074 = vadd.f32 0.0, %v2073
        %v2075 = vpop.f32.mrf.mxu0
        %v2076 = vpop.f32.mrf.mxu0
        %v2077 = vpop.f32.mrf.mxu0
        %2078 = vdwg.mxu0
        %2079 = vrot.lane.b32.xlu0 %v1689, 104
        %v2080 = vpop.permute.xlu0 %2079
        %v2082 = vsel %vm960, %v1935, 0
        %v2085 = vsel %vm1214, %v2080, 0
        %2087 = vmatprep.subr.bf16.mxu0 0
        %2088 = vmatpush1.bf16.msra.mxu0 0
        %2089 = vmatprep.subr.bf16.mxu0 0
        %2090 = vmatpush1.bf16.msra.mxu0 0
        %2091 = vmatprep.subr.bf16.mxu0 0
        %2092 = vmatpush1.bf16.msra.mxu0 0
        %2093 = vmatprep.subr.bf16.mxu0 0
        %2094 = vmatpush1.bf16.msra.mxu0 0
        %2095 = vmatprep.subr.bf16.mxu0 0
        %2096 = vmatpush1.bf16.msra.mxu0 0
        %2097 = vmatprep.subr.bf16.mxu0 0
        %2098 = vmatpush1.bf16.msra.mxu0 0
        %2099 = vmatprep.subr.bf16.mxu0 0
        %2100 = vmatpush1.bf16.msra.mxu0 0
        %2101 = vmatprep.subr.bf16.mxu0 0
        %2102 = vmatpush1.bf16.msra.mxu0 %v2085
        %2103 = vmatprep.subr.bf16.mxu0 0
        %2104 = vmatpush2.bf16.msra.mxu0 0
        %2105 = vmatprep.subr.bf16.mxu0 0
        %2106 = vmatpush2.bf16.msra.mxu0 0
        %2107 = vmatprep.subr.bf16.mxu0 0
        %2108 = vmatpush2.bf16.msra.mxu0 0
        %2109 = vmatprep.subr.bf16.mxu0 0
        %2110 = vmatpush2.bf16.msra.mxu0 0
        %2111 = vmatprep.subr.bf16.mxu0 0
        %2112 = vmatpush2.bf16.msra.mxu0 0
        %2113 = vmatprep.subr.bf16.mxu0 0
        %2114 = vmatpush2.bf16.msra.mxu0 0
        %2115 = vmatprep.subr.bf16.mxu0 0
        %2116 = vmatpush2.bf16.msra.mxu0 0
        %2117 = vmatprep.subr.bf16.mxu0 0
        %2118 = vmatpush2.bf16.msra.mxu0 0
        %2119 = vmatprep.mubr.bf16.mxu0 0
        %2120 = vmatmul.mubr.bf16.gmra.mxu0 %v2082
        %v2121 = vpop.f32.mrf.mxu0
        %v2122 = vadd.f32 0.0, %v2121
        %v2123 = vpop.f32.mrf.mxu0
        %v2124 = vpop.f32.mrf.mxu0
        %v2125 = vpop.f32.mrf.mxu0
        %2126 = vdwg.mxu0
        %2128 = vrot.lane.b32.xlu0 %v2026, 8
        %v2129 = vpop.permute.xlu0 %2128
        %2132 = vrot.lane.b32.xlu0 %v2074, 16
        %v2133 = vpop.permute.xlu0 %2132
        %2136 = vrot.lane.b32.xlu0 %v2122, 24
        %v2137 = vpop.permute.xlu0 %2136
        %v2139 = vsel %vm960, %v1977, %v2129
        %v2140 = vsel %vm1416, %v2139, %v2133
        %v2141 = vsel %vm1418, %v2140, %v2137
        %v2142 = vpack.c.bf16 %v2141, %v2141
        %v2143 = vlaneseq
        %v2144 = vshrl.u32 %v2143, 7
        %v2145 = vsub.s32 0, %v2144
        %v2146 = vrot.slane %v1523, %v2145
        %v2151 = vunpack.c.l.b16 %v1519
        %v2152 = vunpack.c.l.b16 %v1520
        %v2153 = vunpack.c.l.b16 %v1521
        %v2154 = vunpack.c.l.b16 %v1522
        %v2155 = vpack.c.b16 %v2152, %v2151
        %v2156 = vpack.c.b16 %v2154, %v2153
        %v2160 = vsel %vm809, %v2142, 0
        %2162 = vmatprep.subr.bf16.mxu0 0
        %2163 = vmatpush1.bf16.msra.mxu0 0
        %2164 = vmatprep.subr.bf16.mxu0 0
        %2165 = vmatpush1.bf16.msra.mxu0 0
        %2166 = vmatprep.subr.bf16.mxu0 0
        %2167 = vmatpush1.bf16.msra.mxu0 0
        %2168 = vmatprep.subr.bf16.mxu0 0
        %2169 = vmatpush1.bf16.msra.mxu0 0
        %2170 = vmatprep.subr.bf16.mxu0 0
        %2171 = vmatpush1.bf16.msra.mxu0 0
        %2172 = vmatprep.subr.bf16.mxu0 0
        %2173 = vmatpush1.bf16.msra.mxu0 0
        %2174 = vmatprep.subr.bf16.mxu0 0
        %2175 = vmatpush1.bf16.msra.mxu0 %v2156
        %2176 = vmatprep.subr.bf16.mxu0 0
        %2177 = vmatpush1.bf16.msra.mxu0 %v2155
        %2178 = vmatprep.subr.bf16.mxu0 0
        %2179 = vmatpush2.bf16.msra.mxu0 0
        %2180 = vmatprep.subr.bf16.mxu0 0
        %2181 = vmatpush2.bf16.msra.mxu0 0
        %2182 = vmatprep.subr.bf16.mxu0 0
        %2183 = vmatpush2.bf16.msra.mxu0 0
        %2184 = vmatprep.subr.bf16.mxu0 0
        %2185 = vmatpush2.bf16.msra.mxu0 0
        %2186 = vmatprep.subr.bf16.mxu0 0
        %2187 = vmatpush2.bf16.msra.mxu0 0
        %2188 = vmatprep.subr.bf16.mxu0 0
        %2189 = vmatpush2.bf16.msra.mxu0 0
        %2190 = vmatprep.subr.bf16.mxu0 0
        %2191 = vmatpush2.bf16.msra.mxu0 0
        %2192 = vmatprep.subr.bf16.mxu0 0
        %2193 = vmatpush2.bf16.msra.mxu0 0
        %2194 = vmatprep.mubr.bf16.mxu0 0
        %2195 = vmatmul.mubr.bf16.gmra.mxu0 %v2160
        %v2196 = vpop.f32.mrf.mxu0
        %v2197 = vadd.f32 %v2146, %v2196
        %v2198 = vpop.f32.mrf.mxu0
        %v2199 = vpop.f32.mrf.mxu0
        %v2200 = vpop.f32.mrf.mxu0
        %2201 = vdwg.mxu0
        %v2202 = vadd.f32 %v2197, %v1506
        %v2203 = vld [vmem:[%s750 + $0x4] sm:$0x1]
        %v2204 = vld [vmem:[%s750 + $0x5] sm:$0x1]
        %v2205 = vsel %vm809, %v2202, 0.0
        %2206 = vadd.xlane.f32.xlu0 %v2205
        %v2207 = vpop.xlane.xlu0 %2206
        %v2208 = vmul.f32 %v2207, %v1486
        %v2209 = vsub.f32 %v2202, %v2208
        %v2210 = vmul.f32 %v2209, %v2209
        %v2211 = vsel %vm809, %v2210, 0.0
        %2212 = vadd.xlane.f32.xlu0 %v2211
        %v2213 = vpop.xlane.xlu0 %2212
        %v2214 = vmul.f32 %v2213, %v1486
        %v2215 = vadd.f32 %v2214, 1e-05
        %v2216 = vrsqrt.pop %v2215
        %v2217 = vmul.f32 %v2209, %v2216
        %v2218 = vlaneseq
        %v2219 = vshrl.u32 %v2218, 7
        %v2220 = vsub.s32 0, %v2219
        %v2221 = vrot.slane %v2203, %v2220
        %v2222 = vmul.f32 %v2217, %v2221
        %v2223 = vlaneseq
        %v2224 = vshrl.u32 %v2223, 7
        %v2225 = vsub.s32 0, %v2224
        %v2226 = vrot.slane %v2204, %v2225
        %v2227 = vadd.f32 %v2222, %v2226
        %v2228 = vpack.c.bf16 %v2227, %v2227
        %v2229 = vld [vmem:[%s615] sm:$0xf]
        %v2230 = vld [vmem:[%s615 + $0x4] sm:$0xf]
        %v2231 = vld [vmem:[%s615 + $0x8] sm:$0xf]
        %v2232 = vld [vmem:[%s615 + $0xc] sm:$0xf]
        %v2233 = vld [vmem:[%s753] sm:$0x1]
        %v2235 = vlaneseq
        %v2236 = vshrl.u32 %v2235, 7
        %v2237 = vsub.s32 0, %v2236
        %v2238 = vrot.slane %v2233, %v2237
        %v2244 = vunpack.c.l.b16 %v2229
        %v2245 = vunpack.c.l.b16 %v2230
        %v2246 = vunpack.c.l.b16 %v2231
        %v2247 = vunpack.c.l.b16 %v2232
        %v2248 = vpack.c.b16 %v2245, %v2244
        %v2249 = vpack.c.b16 %v2247, %v2246
        %v2253 = vsel %vm809, %v2228, 0
        %2255 = vmatprep.subr.bf16.mxu0 0
        %2256 = vmatpush1.bf16.msra.mxu0 0
        %2257 = vmatprep.subr.bf16.mxu0 0
        %2258 = vmatpush1.bf16.msra.mxu0 0
        %2259 = vmatprep.subr.bf16.mxu0 0
        %2260 = vmatpush1.bf16.msra.mxu0 0
        %2261 = vmatprep.subr.bf16.mxu0 0
        %2262 = vmatpush1.bf16.msra.mxu0 0
        %2263 = vmatprep.subr.bf16.mxu0 0
        %2264 = vmatpush1.bf16.msra.mxu0 0
        %2265 = vmatprep.subr.bf16.mxu0 0
        %2266 = vmatpush1.bf16.msra.mxu0 0
        %2267 = vmatprep.subr.bf16.mxu0 0
        %2268 = vmatpush1.bf16.msra.mxu0 %v2249
        %2269 = vmatprep.subr.bf16.mxu0 0
        %2270 = vmatpush1.bf16.msra.mxu0 %v2248
        %2271 = vmatprep.subr.bf16.mxu0 0
        %2272 = vmatpush2.bf16.msra.mxu0 0
        %2273 = vmatprep.subr.bf16.mxu0 0
        %2274 = vmatpush2.bf16.msra.mxu0 0
        %2275 = vmatprep.subr.bf16.mxu0 0
        %2276 = vmatpush2.bf16.msra.mxu0 0
        %2277 = vmatprep.subr.bf16.mxu0 0
        %2278 = vmatpush2.bf16.msra.mxu0 0
        %2279 = vmatprep.subr.bf16.mxu0 0
        %2280 = vmatpush2.bf16.msra.mxu0 0
        %2281 = vmatprep.subr.bf16.mxu0 0
        %2282 = vmatpush2.bf16.msra.mxu0 0
        %2283 = vmatprep.subr.bf16.mxu0 0
        %2284 = vmatpush2.bf16.msra.mxu0 0
        %2285 = vmatprep.subr.bf16.mxu0 0
        %2286 = vmatpush2.bf16.msra.mxu0 0
        %2287 = vmatprep.mubr.bf16.mxu0 0
        %2288 = vmatmul.mubr.bf16.gmra.mxu0 %v2253
        %v2289 = vpop.f32.mrf.mxu0
        %v2290 = vadd.f32 %v2238, %v2289
        %v2291 = vpop.f32.mrf.mxu0
        %v2292 = vpop.f32.mrf.mxu0
        %v2293 = vpop.f32.mrf.mxu0
        %2294 = vdwg.mxu0
        %v2295 = vmax.f32 %v2290, 0.0
        %v2296 = vpack.c.bf16 %v2295, %v2295
        %v2297 = vld [vmem:[%s758] sm:$0xf]
        %v2298 = vld [vmem:[%s758 + $0x4] sm:$0xf]
        %v2299 = vld [vmem:[%s758 + $0x8] sm:$0xf]
        %v2300 = vld [vmem:[%s758 + $0xc] sm:$0xf]
        %v2301 = vld [vmem:[%s758 + $0x10] sm:$0xf]
        %v2302 = vld [vmem:[%s758 + $0x14] sm:$0xf]
        %v2303 = vld [vmem:[%s758 + $0x18] sm:$0xf]
        %v2304 = vld [vmem:[%s758 + $0x1c] sm:$0xf]
        %v2305 = vld [vmem:[%s758 + $0x20] sm:$0xf]
        %v2306 = vld [vmem:[%s758 + $0x24] sm:$0xf]
        %v2307 = vld [vmem:[%s758 + $0x28] sm:$0xf]
        %v2308 = vld [vmem:[%s758 + $0x2c] sm:$0xf]
        %v2309 = vld [vmem:[%s758 + $0x30] sm:$0xf]
        %v2310 = vld [vmem:[%s758 + $0x34] sm:$0xf]
        %v2311 = vld [vmem:[%s758 + $0x38] sm:$0xf]
        %v2312 = vld [vmem:[%s758 + $0x3c] sm:$0xf]
        %v2313 = vld [vmem:[%s750 + $0x8] sm:$0x1]
        %v2314 = vlaneseq
        %v2315 = vshrl.u32 %v2314, 7
        %v2316 = vsub.s32 0, %v2315
        %v2317 = vrot.slane %v2313, %v2316
        %v2334 = vunpack.c.l.b16 %v2297
        %v2335 = vunpack.c.l.b16 %v2298
        %v2336 = vunpack.c.l.b16 %v2299
        %v2337 = vunpack.c.l.b16 %v2300
        %v2338 = vunpack.c.l.b16 %v2301
        %v2339 = vunpack.c.l.b16 %v2302
        %v2340 = vunpack.c.l.b16 %v2303
        %v2341 = vunpack.c.l.b16 %v2304
        %v2342 = vunpack.c.l.b16 %v2305
        %v2343 = vunpack.c.l.b16 %v2306
        %v2344 = vunpack.c.l.b16 %v2307
        %v2345 = vunpack.c.l.b16 %v2308
        %v2346 = vunpack.c.l.b16 %v2309
        %v2347 = vunpack.c.l.b16 %v2310
        %v2348 = vunpack.c.l.b16 %v2311
        %v2349 = vunpack.c.l.b16 %v2312
        %v2350 = vpack.c.b16 %v2335, %v2334
        %v2351 = vpack.c.b16 %v2337, %v2336
        %v2352 = vpack.c.b16 %v2339, %v2338
        %v2353 = vpack.c.b16 %v2341, %v2340
        %v2354 = vpack.c.b16 %v2343, %v2342
        %v2355 = vpack.c.b16 %v2345, %v2344
        %v2356 = vpack.c.b16 %v2347, %v2346
        %v2357 = vpack.c.b16 %v2349, %v2348
        %2366 = vmatprep.subr.bf16.mxu0 0
        %2367 = vmatpush1.bf16.msra.mxu0 %v2357
        %2368 = vmatprep.subr.bf16.mxu0 0
        %2369 = vmatpush1.bf16.msra.mxu0 %v2356
        %2370 = vmatprep.subr.bf16.mxu0 0
        %2371 = vmatpush1.bf16.msra.mxu0 %v2355
        %2372 = vmatprep.subr.bf16.mxu0 0
        %2373 = vmatpush1.bf16.msra.mxu0 %v2354
        %2374 = vmatprep.subr.bf16.mxu0 0
        %2375 = vmatpush1.bf16.msra.mxu0 %v2353
        %2376 = vmatprep.subr.bf16.mxu0 0
        %2377 = vmatpush1.bf16.msra.mxu0 %v2352
        %2378 = vmatprep.subr.bf16.mxu0 0
        %2379 = vmatpush1.bf16.msra.mxu0 %v2351
        %2380 = vmatprep.subr.bf16.mxu0 0
        %2381 = vmatpush1.bf16.msra.mxu0 %v2350
        %2382 = vmatprep.subr.bf16.mxu0 0
        %2383 = vmatpush2.bf16.msra.mxu0 0
        %2384 = vmatprep.subr.bf16.mxu0 0
        %2385 = vmatpush2.bf16.msra.mxu0 0
        %2386 = vmatprep.subr.bf16.mxu0 0
        %2387 = vmatpush2.bf16.msra.mxu0 0
        %2388 = vmatprep.subr.bf16.mxu0 0
        %2389 = vmatpush2.bf16.msra.mxu0 0
        %2390 = vmatprep.subr.bf16.mxu0 0
        %2391 = vmatpush2.bf16.msra.mxu0 0
        %2392 = vmatprep.subr.bf16.mxu0 0
        %2393 = vmatpush2.bf16.msra.mxu0 0
        %2394 = vmatprep.subr.bf16.mxu0 0
        %2395 = vmatpush2.bf16.msra.mxu0 0
        %2396 = vmatprep.subr.bf16.mxu0 0
        %2397 = vmatpush2.bf16.msra.mxu0 0
        %2398 = vmatprep.mubr.bf16.mxu0 0
        %2399 = vmatmul.mubr.bf16.gmra.mxu0 %v2296
        %v2400 = vpop.f32.mrf.mxu0
        %v2401 = vadd.f32 %v2317, %v2400
        %v2402 = vpop.f32.mrf.mxu0
        %v2403 = vpop.f32.mrf.mxu0
        %v2404 = vpop.f32.mrf.mxu0
        %2405 = vdwg.mxu0
        %v2406 = vadd.f32 %v2401, %v2227
        %v2407 = vld [vmem:[%s750 + $0x6] sm:$0x1]
        %v2408 = vld [vmem:[%s750 + $0x7] sm:$0x1]
        %v2409 = vsel %vm809, %v2406, 0.0
        %2410 = vadd.xlane.f32.xlu0 %v2409
        %v2411 = vpop.xlane.xlu0 %2410
        %v2412 = vmul.f32 %v2411, %v1486
        %v2413 = vsub.f32 %v2406, %v2412
        %v2414 = vmul.f32 %v2413, %v2413
        %v2415 = vsel %vm809, %v2414, 0.0
        %2416 = vadd.xlane.f32.xlu0 %v2415
        %v2417 = vpop.xlane.xlu0 %2416
        %v2418 = vmul.f32 %v2417, %v1486
        %v2419 = vadd.f32 %v2418, 1e-05
        %v2420 = vrsqrt.pop %v2419
        %v2421 = vmul.f32 %v2413, %v2420
        %v2422 = vlaneseq
        %v2423 = vshrl.u32 %v2422, 7
        %v2424 = vsub.s32 0, %v2423
        %v2425 = vrot.slane %v2407, %v2424
        %v2426 = vmul.f32 %v2421, %v2425
        %v2427 = vlaneseq
        %v2428 = vshrl.u32 %v2427, 7
        %v2429 = vsub.s32 0, %v2428
        %v2430 = vrot.slane %v2408, %v2429
        %v2431 = vadd.f32 %v2426, %v2430
        %2432 = vst.msk [vmem:[#allocation2] sm:$0xff] %vm809, %v2431
        %p2433 = scmp.eq.s32.totalorder %s41, 1
        // Predicated region
        $region93: #{tpu_custom_call.1} parent=71 // pred_check
          %p2434 = pneg %p2433
        $region94: #{tpu_custom_call.1} parent=71 // pred_check_branch
          %2436 = sbr.rel (%p2434) target = $region96
        $region95: #{tpu_custom_call.1} parent=71 // pred_region
          %v2437 = vpack.c.bf16 %v2431, %v2431
          %vm2438 = vcmask 257024
          %2439 = vst.msk [vmem:[%s715] sm:$0xf] %vm2438, %v2437
        $region96: #{tpu_custom_call.1} parent=71 // pred_fallthru
          _
        %s2440 = sand.u32 %s394, 1
        %s2441 = scalar_lea.sflag [#allocation6], %s2440
        %s2442 = sand.u32 %s394, 1
        %s2443 = smul.addr %s2442, 4
        %s2444 = scalar_lea.vmem [#allocation12], %s2443
        // Predicated region
        $region97: #{tpu_custom_call.1} parent=71 // pred_check
          %p2445 = pneg %p404
        $region98: #{tpu_custom_call.1} parent=71 // pred_check_branch
          %2447 = sbr.rel (%p2445) target = $region100
        $region99: #{tpu_custom_call.1} parent=71 // pred_region
          %s2449 = ssub.s32 64, 64
          %2450 = vsyncadd %s2441, %s2449
          %s2451 = smul.addr %s40, 64
          %s2452 = scalar_lea.hbm %s13, %s2451
          %s2454 = sshll.u32 %s2444, 4
          %s2455 = int_to_ptr.vmem [resolvable:$true] %s2454
          %2457 = dma.vmem_to_hbm [thread:$0]  %s2455, 64, %s2452, %s2441
        $region100: #{tpu_custom_call.1} parent=71 // pred_fallthru
          _
      $region72: #{tpu_custom_call.1} parent=5 // pred_fallthru
        _
      %p2458 = scmp.le.s32.totalorder 2, %s31
      // Predicated region
      $region101: #{tpu_custom_call.1} parent=5 // pred_check
        %p2459 = pneg %p2458
      $region102: #{tpu_custom_call.1} parent=5 // pred_check_branch
        %2461 = sbr.rel (%p2459) target = $region104
      $region103: #{tpu_custom_call.1} parent=5 // pred_region
        %s2462 = ssub.s32 %s31, 2
        // Predicated region
        $region105: #{tpu_custom_call.1} parent=103 // pred_check
          %p2463 = pneg %p410
        $region106: #{tpu_custom_call.1} parent=103 // pred_check_branch
          %2465 = sbr.rel (%p2463) target = $region108
        $region107: #{tpu_custom_call.1} parent=103 // pred_region
          %s2466 = sand.u32 %s395, 1
          %s2467 = scalar_lea.sflag [#allocation6], %s2466
          %s2468 = sand.u32 %s395, 1
          %s2469 = smul.addr %s2468, 4
          %s2470 = scalar_lea.vmem [#allocation12], %s2469
          %2471 = dma.done %s2467, 64
        $region108: #{tpu_custom_call.1} parent=103 // pred_fallthru
          _
      $region104: #{tpu_custom_call.1} parent=5 // pred_fallthru
        _
    $region6: #{tpu_custom_call.1} parent=1 // loop_footer
      %s35 = sadd.s32 1, %s31
    $region7: #{tpu_custom_call.1} parent=1 // loop_footer_branch
      %30 = sbr.rel target = $region3
    $region8: #{tpu_custom_call.1} parent=1 // loop_exit
      _
    %2472 = vsyncpa [#allocation5], 1
    %s2473 = scalar_lea.sflag [#allocation5], 1
    %2474 = vsyncpa %s2473, 1
    %2475 = vsyncpa [#allocation8], 1
    %s2476 = scalar_lea.sflag [#allocation8], 1
    %2477 = vsyncpa %s2476, 1
    %2478 = vsyncpa [#allocation11], 1
    %s2479 = scalar_lea.sflag [#allocation11], 1
    %2480 = vsyncpa %s2479, 1
    %2481 = vsyncpa [#allocation6], 1
    %s2482 = scalar_lea.sflag [#allocation6], 1
    %2483 = vsyncpa %s2482, 1

</llo_original>
